<compile_context>
chip_gen: v6e
topology: v6e:2x2x1
jax: 0.10.0
libtpu: 0.0.40
codegen_flags: <defaults>
</compile_context>

<pallas_src>
import math

import numpy as np
import jax
import jax.numpy as jnp
from jax.experimental import pallas as pl
from jax.experimental.pallas import tpu as pltpu

# --- config (mirrors the cfg the module would receive) -----------------------
NUM_FREQS = 6              # cfg['gs.pe.num_freqs']
INCLUDE_INPUT = True       # cfg['training.pe.include_input']
LOG_SAMPLING = True        # cfg['training.pe.log_sampling']
N_EXPR = 16                # cfg['flame.n_expr']
DEFORM_LAYERS = [128, 64]  # cfg['gs.deform_layers']
OUT_DIM = 10               # sum(attr_dims[attr] for attr in cfg['gs.deform_attr'])
INPUT_CH = 3 * int(INCLUDE_INPUT) + 3 * 2 * NUM_FREQS  # 39


def _freq_bands():
    if LOG_SAMPLING:
        return [float(2.0 ** k) for k in range(NUM_FREQS)]
    return [float(f) for f in np.linspace(1.0, 2.0 ** (NUM_FREQS - 1), NUM_FREQS)]


# --- Pallas kernel -------------------------------------------------------------
def _make_kernel(softplus_dtype):
    """Build the fused kernel; `softplus_dtype` controls the EUP (exp/log1p) dtype."""

    def softplus(x):
        # numerically stable softplus (beta=1); max/abs/add combine stays f32,
        # only the transcendentals optionally drop to bf16 (v6e/v7x EUP lever).
        ax = jnp.abs(x)
        t = jnp.log1p(jnp.exp((-ax).astype(softplus_dtype))).astype(jnp.float32)
        return jnp.maximum(x, 0.0) + t

    def kernel(xin_ref, pe_ref, w1_ref, b1_ref, w2_ref, b2_ref, w3_ref, b3_ref,
               out_ref):
        xin = xin_ref[...]                       # (tn, 3 + n_expr), f32
        xyz = xin[:, :3]

        # Lane-batched PE: replicate xyz across 2*NUM_FREQS 3-lane groups, one
        # vector mul + add against the resident (2,36) PE constant, then a single
        # sin pass produces [sin(f0..f5) | cos(f0..f5)] (cos = sin(x + pi/2)).
        rep = jnp.concatenate([xyz] * (2 * NUM_FREQS), axis=-1)       # (tn, 36)
        sc = jnp.sin(rep * pe_ref[0:1, :] + pe_ref[1:2, :])           # (tn, 36)

        # Feature order matches the host-permuted W1: [xyz | expr | sin | cos]
        base = xin if INCLUDE_INPUT else xin[:, 3:]
        feats = jnp.concatenate([base, sc], axis=-1)                  # (tn, 55)

        md = w1_ref.dtype   # bf16 MXU operands on the fast path, else f32
        h = jnp.dot(feats.astype(md), w1_ref[...],
                    preferred_element_type=jnp.float32) + b1_ref[...]
        h = softplus(h)
        h = jnp.dot(h.astype(md), w2_ref[...],
                    preferred_element_type=jnp.float32) + b2_ref[...]
        h = softplus(h)
        out = jnp.dot(h.astype(md), w3_ref[...],
                      preferred_element_type=jnp.float32) + b3_ref[...]
        out_ref[...] = out.astype(out_ref.dtype)

    return kernel


# --- parameter prep (host side) --------------------------------------------------
def _w1_row_perm(n_expr):
    """Row permutation of W1 so features can be [xyz | expr | sin-block | cos-block]."""
    off = 3 if INCLUDE_INPUT else 0
    pe_end = off + 6 * NUM_FREQS
    perm = list(range(off))                       # xyz (if included)
    perm += list(range(pe_end, pe_end + n_expr))  # expr
    sin_rows, cos_rows = [], []
    for k in range(NUM_FREQS):
        base = off + 6 * k
        sin_rows += [base, base + 1, base + 2]
        cos_rows += [base + 3, base + 4, base + 5]
    perm += sin_rows + cos_rows
    return np.asarray(perm, np.int32)


def _prep_params(params, n_expr, use_bf16, pad_out):
    w1, b1, w2, b2, w3, b3 = params
    w1 = w1[jnp.asarray(_w1_row_perm(n_expr))]    # (55, H1), rows reordered
    if pad_out:
        # lane-dense 128-wide output store; extra columns produce exact zeros
        pad = (-w3.shape[1]) % 128
        if pad:
            w3 = jnp.pad(w3, ((0, 0), (0, pad)))
            b3 = jnp.pad(b3, ((0, 0), (0, pad)))
    if use_bf16:
        # bf16 MXU operands, f32 accumulation; biases stay f32.
        w1 = w1.astype(jnp.bfloat16)
        w2 = w2.astype(jnp.bfloat16)
        w3 = w3.astype(jnp.bfloat16)
    return w1, b1, w2, b2, w3, b3


def _pe_const():
    freqs = np.asarray(_freq_bands(), np.float32)
    scale = np.tile(np.repeat(freqs, 3), 2)                       # (36,)
    phase = np.concatenate([np.zeros(3 * NUM_FREQS, np.float32),
                            np.full(3 * NUM_FREQS, np.pi / 2, np.float32)])
    return jnp.asarray(np.stack([scale, phase]), jnp.float32)     # (2, 36)


def _pick_tile(n, tile_n, min_grid):
    """Shrink tile_n for small N so the grid has >= min_grid steps; keep >=128, %8==0."""
    t = max(128, (tile_n // 8) * 8)
    while t > 128 and pl.cdiv(n, t) < min_grid:
        t = max(128, t // 2)
    return t


# --- wrapper ---------------------------------------------------------------------
def deform_mlp(xyz, expr_params, params, *, tile_n=2048, use_bf16=True,
               softplus_bf16=False, pad_out=True, min_grid=8, trim=True):
    """xyz: (N, 3) f32; expr_params: (N, n_expr) f32 -> offsets (N, OUT_DIM) f32.

    tile_n:       sweep 1024-4096 (per-step VMEM is only ~1-3 MiB); auto-clamped so
                  the grid stays >= min_grid and even (v7x dual-TC occupancy).
    use_bf16:     bf16 MXU operands / f32 accumulate on all generations (v5e's MXU
                  is bf16-native too; elementwise math stays f32 regardless).
    softplus_bf16: run the softplus exp/log1p on the EUP in bf16 (v6e/v7x lever).
    pad_out:      128-wide lane-dense output stores (avoids masked vst.msk).
    trim:         slice back to (N, OUT_DIM); pass False to skip the post-kernel
                  copy and hand the padded slab straight to the consumer.
    """
    N = xyz.shape[0]
    n_expr = expr_params.shape[1]
    out_true = params[4].shape[1]

    w1r, b1, w2, b2, w3, b3 = _prep_params(params, n_expr, use_bf16, pad_out)
    outdim = w3.shape[1]
    pe_const = _pe_const()

    # single merged input stream: [xyz | expr]
    xin = jnp.concatenate([xyz, expr_params], axis=-1).astype(jnp.float32)

    t = _pick_tile(N, tile_n, min_grid)
    grid = pl.cdiv(N, t)
    if grid > 1 and grid % 2:
        grid += 1          # even grid keeps v7x's two TensorCores balanced
    n_total = grid * t
    if n_total != N:
        xin = jnp.pad(xin, ((0, n_total - N), (0, 0)))

    kernel = _make_kernel(jnp.bfloat16 if softplus_bf16 else jnp.float32)

    def resident(shape):
        # constant block index -> fetched once, stays resident in VMEM across steps
        return pl.BlockSpec(shape, lambda i: (0, 0))

    out = pl.pallas_call(
        kernel,
        out_shape=jax.ShapeDtypeStruct((n_total, outdim), jnp.float32),
        grid_spec=pltpu.PrefetchScalarGridSpec(
            num_scalar_prefetch=0,
            grid=(grid,),
            in_specs=[
                pl.BlockSpec((t, xin.shape[1]), lambda i: (i, 0)),
                resident(pe_const.shape),
                resident(w1r.shape), resident(b1.shape),
                resident(w2.shape), resident(b2.shape),
                resident(w3.shape), resident(b3.shape),
            ],
            out_specs=pl.BlockSpec((t, outdim), lambda i: (i, 0)),
        ),
        compiler_params=pltpu.CompilerParams(dimension_semantics=("parallel",)),
    )(xin, pe_const, w1r, b1, w2, b2, w3, b3)

    if not trim:
        return out
    return out[:N, :out_true]


# --- pure-JAX reference (faithful to the PyTorch forward) --------------------------
def deform_mlp_reference(xyz, expr_params, params):
    feats = [xyz] if INCLUDE_INPUT else []
    for f in _freq_bands():
        feats.append(jnp.sin(xyz * f))
        feats.append(jnp.cos(xyz * f))
    x = jnp.concatenate(feats + [expr_params], axis=-1)
    w1, b1, w2, b2, w3, b3 = params
    h = jax.nn.softplus(x @ w1 + b1[0])
    h = jax.nn.softplus(h @ w2 + b2[0])
    return h @ w3 + b3[0]


# --- deterministic parameter init (mirrors the module's __init__) ------------------
def init_params(key, *, zero_last_layer=True):
    dims = [INPUT_CH + N_EXPR] + DEFORM_LAYERS + [OUT_DIM]
    params = []
    for l in range(len(dims) - 1):
        cin, cout = dims[l], dims[l + 1]
        key, wk, bk = jax.random.split(key, 3)
        if l == len(dims) - 2 and zero_last_layer:
            # faithful to the module: last layer weight & bias zero-initialized
            w = jnp.zeros((cin, cout), jnp.float32)
            b = jnp.zeros((1, cout), jnp.float32)
        else:
            std = math.sqrt(2.0) / math.sqrt(cout)
            w = jax.random.normal(wk, (cin, cout), jnp.float32) * std
            b = jnp.zeros((1, cout), jnp.float32)
        params += [w, b]
    return tuple(params)


if __name__ == "__main__":
    key = jax.random.PRNGKey(0)
    k_xyz, k_expr, k_param, k_param2 = jax.random.split(key, 4)

    N = 1000  # not a multiple of tile_n on purpose: exercises pad / clamp / slice
    xyz = jax.random.normal(k_xyz, (N, 3), jnp.float32)
    expr = 0.1 * jax.random.normal(k_expr, (N, N_EXPR), jnp.float32)

    # 1) faithful init (last layer zero, exactly like the PyTorch __init__), defaults
    params = init_params(k_param, zero_last_layer=True)
    out = jax.block_until_ready(deform_mlp(xyz, expr, params))
    assert out.shape == (N, OUT_DIM) and out.dtype == jnp.float32

    # non-degenerate params for the math checks
    params_nz = init_params(k_param2, zero_last_layer=False)
    ref = np.asarray(jax.block_until_ready(deform_mlp_reference(xyz, expr, params_nz)))

    # 2) f32 MXU path (tight check; small slack for the cos = sin(x+pi/2) fusion)
    out_f32 = np.asarray(jax.block_until_ready(
        deform_mlp(xyz, expr, params_nz, use_bf16=False)))
    np.testing.assert_allclose(out_f32, ref, rtol=2e-3, atol=2e-3)

    # 3) default fast path: bf16 MXU operands + lane-dense output
    out_bf16 = np.asarray(jax.block_until_ready(deform_mlp(xyz, expr, params_nz)))
    rel = np.linalg.norm(out_bf16 - ref) / np.linalg.norm(ref)
    assert rel < 2e-2, f"bf16 relative L2 error too large: {rel}"

    # 4) bf16 softplus transcendentals (v6e/v7x EUP lever)
    out_sp = np.asarray(jax.block_until_ready(
        deform_mlp(xyz, expr, params_nz, softplus_bf16=True)))
    rel_sp = np.linalg.norm(out_sp - ref) / np.linalg.norm(ref)
    assert rel_sp < 5e-2, f"bf16-softplus relative L2 error too large: {rel_sp}"

    # 5) lane-sparse output fallback (pad_out=False) still matches
    out_ns = np.asarray(jax.block_until_ready(
        deform_mlp(xyz, expr, params_nz, use_bf16=False, pad_out=False)))
    np.testing.assert_allclose(out_ns, ref, rtol=2e-3, atol=2e-3)

    print("KERNEL_OK")
</pallas_src>

<mosaic_0001>
module attributes {stable_mosaic.version = 11 : i64} {
  func.func @kernel(%arg0: i32, %arg1: memref<128x19xf32, #tpu.memory_space<vmem>>, %arg2: memref<2x36xf32, #tpu.memory_space<vmem>>, %arg3: memref<55x128xbf16, #tpu.memory_space<vmem>>, %arg4: memref<1x128xf32, #tpu.memory_space<vmem>>, %arg5: memref<128x64xbf16, #tpu.memory_space<vmem>>, %arg6: memref<1x64xf32, #tpu.memory_space<vmem>>, %arg7: memref<64x128xbf16, #tpu.memory_space<vmem>>, %arg8: memref<1x128xf32, #tpu.memory_space<vmem>>, %arg9: memref<128x128xf32, #tpu.memory_space<vmem>>) attributes {dimension_semantics = [#tpu.dimension_semantics<parallel>], iteration_bounds = array<i64: 8>, scalar_prefetch = 0 : i64, scratch_operands = 0 : i64, tpu.core_type = #tpu.core_type<tc>, window_params = [{transform_indices = @transform_0, window_bounds = array<i64: 128, 19>}, {pipeline_mode = #tpu.pipeline_mode<synchronous>, transform_indices = @transform_1, window_bounds = array<i64: 2, 36>}, {pipeline_mode = #tpu.pipeline_mode<synchronous>, transform_indices = @transform_2, window_bounds = array<i64: 55, 128>}, {pipeline_mode = #tpu.pipeline_mode<synchronous>, transform_indices = @transform_3, window_bounds = array<i64: 1, 128>}, {pipeline_mode = #tpu.pipeline_mode<synchronous>, transform_indices = @transform_4, window_bounds = array<i64: 128, 64>}, {pipeline_mode = #tpu.pipeline_mode<synchronous>, transform_indices = @transform_5, window_bounds = array<i64: 1, 64>}, {pipeline_mode = #tpu.pipeline_mode<synchronous>, transform_indices = @transform_6, window_bounds = array<i64: 64, 128>}, {pipeline_mode = #tpu.pipeline_mode<synchronous>, transform_indices = @transform_7, window_bounds = array<i64: 1, 128>}, {transform_indices = @transform_8, window_bounds = array<i64: 128, 128>}]} {
    %c0 = arith.constant 0 : index
    %c0_0 = arith.constant 0 : index
    %0 = vector.load %arg1[%c0, %c0_0] : memref<128x19xf32, #tpu.memory_space<vmem>>, vector<128x19xf32>
    %1 = vector.extract_strided_slice %0 {offsets = [0, 0], sizes = [128, 3], strides = [1, 1]} : vector<128x19xf32> to vector<128x3xf32>
    %2 = tpu.concatenate %1, %1, %1, %1, %1, %1, %1, %1, %1, %1, %1, %1 in 1 : vector<128x3xf32>, vector<128x3xf32>, vector<128x3xf32>, vector<128x3xf32>, vector<128x3xf32>, vector<128x3xf32>, vector<128x3xf32>, vector<128x3xf32>, vector<128x3xf32>, vector<128x3xf32>, vector<128x3xf32>, vector<128x3xf32> -> vector<128x36xf32>
    %c0_1 = arith.constant 0 : index
    %c0_2 = arith.constant 0 : index
    %3 = vector.load %arg2[%c0_1, %c0_2] : memref<2x36xf32, #tpu.memory_space<vmem>>, vector<1x36xf32>
    %4 = vector.broadcast %3 : vector<1x36xf32> to vector<128x36xf32>
    %5 = arith.mulf %2, %4 : vector<128x36xf32>
    %c1 = arith.constant 1 : index
    %c0_3 = arith.constant 0 : index
    %6 = vector.load %arg2[%c1, %c0_3] : memref<2x36xf32, #tpu.memory_space<vmem>>, vector<1x36xf32>
    %7 = vector.broadcast %6 : vector<1x36xf32> to vector<128x36xf32>
    %8 = arith.addf %5, %7 : vector<128x36xf32>
    %9 = math.sin %8 : vector<128x36xf32>
    %10 = tpu.concatenate %0, %9 in 1 : vector<128x19xf32>, vector<128x36xf32> -> vector<128x55xf32>
    %11 = arith.truncf %10 : vector<128x55xf32> to vector<128x55xbf16>
    %c0_4 = arith.constant 0 : index
    %c0_5 = arith.constant 0 : index
    %12 = vector.load %arg3[%c0_4, %c0_5] : memref<55x128xbf16, #tpu.memory_space<vmem>>, vector<55x128xbf16>
    %cst = arith.constant dense<0.000000e+00> : vector<128x128xf32>
    %13 = tpu.matmul %11, %12, %cst {dimension_numbers = #tpu.dot_dimension_numbers<[1], [0], [0], [1], [0, 0, 1, 1], [], []>} : vector<128x55xbf16>, vector<55x128xbf16>, vector<128x128xf32> -> vector<128x128xf32>
    %c0_6 = arith.constant 0 : index
    %c0_7 = arith.constant 0 : index
    %14 = vector.load %arg4[%c0_6, %c0_7] : memref<1x128xf32, #tpu.memory_space<vmem>>, vector<1x128xf32>
    %15 = vector.broadcast %14 : vector<1x128xf32> to vector<128x128xf32>
    %16 = arith.addf %13, %15 : vector<128x128xf32>
    %17 = math.absf %16 : vector<128x128xf32>
    %cst_8 = arith.constant 0.000000e+00 : f32
    %18 = vector.broadcast %cst_8 : f32 to vector<128x128xf32>
    %19 = arith.subf %18, %17 : vector<128x128xf32>
    %20 = math.exp %19 : vector<128x128xf32>
    %21 = math.log1p %20 : vector<128x128xf32>
    %cst_9 = arith.constant 0.000000e+00 : f32
    %22 = vector.broadcast %cst_9 : f32 to vector<128x128xf32>
    %23 = arith.maximumf %16, %22 : vector<128x128xf32>
    %24 = arith.addf %23, %21 : vector<128x128xf32>
    %25 = arith.truncf %24 : vector<128x128xf32> to vector<128x128xbf16>
    %c0_10 = arith.constant 0 : index
    %c0_11 = arith.constant 0 : index
    %26 = vector.load %arg5[%c0_10, %c0_11] : memref<128x64xbf16, #tpu.memory_space<vmem>>, vector<128x64xbf16>
    %cst_12 = arith.constant dense<0.000000e+00> : vector<128x64xf32>
    %27 = tpu.matmul %25, %26, %cst_12 {dimension_numbers = #tpu.dot_dimension_numbers<[1], [0], [0], [1], [0, 0, 1, 1], [], []>} : vector<128x128xbf16>, vector<128x64xbf16>, vector<128x64xf32> -> vector<128x64xf32>
    %c0_13 = arith.constant 0 : index
    %c0_14 = arith.constant 0 : index
    %28 = vector.load %arg6[%c0_13, %c0_14] : memref<1x64xf32, #tpu.memory_space<vmem>>, vector<1x64xf32>
    %29 = vector.broadcast %28 : vector<1x64xf32> to vector<128x64xf32>
    %30 = arith.addf %27, %29 : vector<128x64xf32>
    %31 = math.absf %30 : vector<128x64xf32>
    %cst_15 = arith.constant 0.000000e+00 : f32
    %32 = vector.broadcast %cst_15 : f32 to vector<128x64xf32>
    %33 = arith.subf %32, %31 : vector<128x64xf32>
    %34 = math.exp %33 : vector<128x64xf32>
    %35 = math.log1p %34 : vector<128x64xf32>
    %cst_16 = arith.constant 0.000000e+00 : f32
    %36 = vector.broadcast %cst_16 : f32 to vector<128x64xf32>
    %37 = arith.maximumf %30, %36 : vector<128x64xf32>
    %38 = arith.addf %37, %35 : vector<128x64xf32>
    %39 = arith.truncf %38 : vector<128x64xf32> to vector<128x64xbf16>
    %c0_17 = arith.constant 0 : index
    %c0_18 = arith.constant 0 : index
    %40 = vector.load %arg7[%c0_17, %c0_18] : memref<64x128xbf16, #tpu.memory_space<vmem>>, vector<64x128xbf16>
    %cst_19 = arith.constant dense<0.000000e+00> : vector<128x128xf32>
    %41 = tpu.matmul %39, %40, %cst_19 {dimension_numbers = #tpu.dot_dimension_numbers<[1], [0], [0], [1], [0, 0, 1, 1], [], []>} : vector<128x64xbf16>, vector<64x128xbf16>, vector<128x128xf32> -> vector<128x128xf32>
    %c0_20 = arith.constant 0 : index
    %c0_21 = arith.constant 0 : index
    %42 = vector.load %arg8[%c0_20, %c0_21] : memref<1x128xf32, #tpu.memory_space<vmem>>, vector<1x128xf32>
    %43 = vector.broadcast %42 : vector<1x128xf32> to vector<128x128xf32>
    %44 = arith.addf %41, %43 : vector<128x128xf32>
    %c0_22 = arith.constant 0 : index
    %c0_23 = arith.constant 0 : index
    %45 = vector.load %arg9[%c0_22, %c0_23] : memref<128x128xf32, #tpu.memory_space<vmem>>, vector<128x128xf32>
    tpu.vector_store %arg9[%c0_22, %c0_23], %44 {strides = array<i32>} : memref<128x128xf32, #tpu.memory_space<vmem>>, vector<128x128xf32>,
    return
  }
  func.func @transform_0(%arg0: i32) -> (i32, i32) {
    %c0_i32 = arith.constant 0 : i32
    %c0_i32_0 = arith.constant 0 : i32
    return %arg0, %c0_i32 : i32, i32
  }
  func.func @transform_1(%arg0: i32) -> (i32, i32) {
    %c0_i32 = arith.constant 0 : i32
    %c0_i32_0 = arith.constant 0 : i32
    %c0_i32_1 = arith.constant 0 : i32
    return %c0_i32, %c0_i32_0 : i32, i32
  }
  func.func @transform_2(%arg0: i32) -> (i32, i32) {
    %c0_i32 = arith.constant 0 : i32
    %c0_i32_0 = arith.constant 0 : i32
    %c0_i32_1 = arith.constant 0 : i32
    return %c0_i32, %c0_i32_0 : i32, i32
  }
  func.func @transform_3(%arg0: i32) -> (i32, i32) {
    %c0_i32 = arith.constant 0 : i32
    %c0_i32_0 = arith.constant 0 : i32
    %c0_i32_1 = arith.constant 0 : i32
    return %c0_i32, %c0_i32_0 : i32, i32
  }
  func.func @transform_4(%arg0: i32) -> (i32, i32) {
    %c0_i32 = arith.constant 0 : i32
    %c0_i32_0 = arith.constant 0 : i32
    %c0_i32_1 = arith.constant 0 : i32
    return %c0_i32, %c0_i32_0 : i32, i32
  }
  func.func @transform_5(%arg0: i32) -> (i32, i32) {
    %c0_i32 = arith.constant 0 : i32
    %c0_i32_0 = arith.constant 0 : i32
    %c0_i32_1 = arith.constant 0 : i32
    return %c0_i32, %c0_i32_0 : i32, i32
  }
  func.func @transform_6(%arg0: i32) -> (i32, i32) {
    %c0_i32 = arith.constant 0 : i32
    %c0_i32_0 = arith.constant 0 : i32
    %c0_i32_1 = arith.constant 0 : i32
    return %c0_i32, %c0_i32_0 : i32, i32
  }
  func.func @transform_7(%arg0: i32) -> (i32, i32) {
    %c0_i32 = arith.constant 0 : i32
    %c0_i32_0 = arith.constant 0 : i32
    %c0_i32_1 = arith.constant 0 : i32
    return %c0_i32, %c0_i32_0 : i32, i32
  }
  func.func @transform_8(%arg0: i32) -> (i32, i32) {
    %c0_i32 = arith.constant 0 : i32
    %c0_i32_0 = arith.constant 0 : i32
    return %arg0, %c0_i32 : i32, i32
  }
}

</mosaic_0001>

<llo_original>
// kernel: tpu_custom_call.1
$region0: #{tpu_custom_call.1}
  #allocation0 [shape = 'u32[]', space=smem, size = 0x4, offset = 0x4, fixed_abs, tag = 'smem constant byte address 0x4 - core index']
  #allocation1 [shape = 'u32[144,128]{1,0:T(1,128)}', space=vmem, size = 0x12000, scoped, tag = 'internal scratch']
  %s0 = inlined_call_operand.vmem [shape: f32[1024,19], index: 0, kind: input, shape index: {}]
  %s1 = inlined_call_operand.vmem [shape: f32[2,36], index: 1, kind: input, shape index: {}]
  %s2 = inlined_call_operand.vmem [shape: bf16[55,128], index: 2, kind: input, shape index: {}]
  %s3 = inlined_call_operand.vmem [shape: f32[1,128], index: 3, kind: input, shape index: {}]
  %s4 = inlined_call_operand.vmem [shape: bf16[128,64], index: 4, kind: input, shape index: {}]
  %s5 = inlined_call_operand.vmem [shape: f32[1,64], index: 5, kind: input, shape index: {}]
  %s6 = inlined_call_operand.vmem [shape: bf16[64,128], index: 6, kind: input, shape index: {}]
  %s7 = inlined_call_operand.vmem [shape: f32[1,128], index: 7, kind: input, shape index: {}]
  %s8 = inlined_call_operand.hbm [shape: f32[1024,128], index: 8, kind: output, shape index: {}]
  %s9 = sld [smem:[#allocation0]]
  $region65: #{tpu_custom_call.1} parent=0
    _
  %s11 = ssub.s32 1, %s9
  %s12 = scalar_select 0, %s11, %s9
  $region1: #{tpu_custom_call.1} parent=0
    #allocation2 [shape = 'u8[131072]{0}', space=vmem, size = 0x20000, scoped, tag = 'output window, operand 0']
    #allocation3 [shape = 's32[2]{0}', space=sflag, size = 0x8, scoped, tag = 'scoped memory for tpu_custom_call.1']
    %13 = vsyncpa [#allocation3], 0
    %s14 = scalar_lea.sflag [#allocation3], 1
    %15 = vsyncpa %s14, 0
    loop: start=0, step=1, limit=10
    $region2: #{tpu_custom_call.1} parent=1 // loop_pre_header
      _
    $region3: #{tpu_custom_call.1} parent=1 // loop_header
      %s17 = sphi 0, %s21
      %p18 = scmp.ge.s32.totalorder %s17, 10
      %s27 = sphi 0, %s29
      %s30 = sphi 0, %s27
      %s31 = sphi 0, %s30
      %s47 = sphi 0, %s31
      %s51 = sphi 0, %s51
      %s53 = sphi 0, %s51
      %s54 = sphi 0, %s53
      %s68 = sphi 0, %s54
      %s72 = sphi 0, %s72
      %s74 = sphi 0, %s72
      %s75 = sphi 0, %s74
      %s89 = sphi 0, %s75
      %s93 = sphi 0, %s93
      %s95 = sphi 0, %s93
      %s96 = sphi 0, %s95
      %s110 = sphi 0, %s96
      %s114 = sphi 0, %s114
      %s116 = sphi 0, %s114
      %s117 = sphi 0, %s116
      %s131 = sphi 0, %s117
      %s135 = sphi 0, %s135
      %s137 = sphi 0, %s135
      %s138 = sphi 0, %s137
      %s152 = sphi 0, %s138
      %s156 = sphi 0, %s156
      %s158 = sphi 0, %s156
      %s159 = sphi 0, %s158
      %s173 = sphi 0, %s159
      %s177 = sphi 0, %s177
      %s179 = sphi 0, %s177
      %s180 = sphi 0, %s179
      %s194 = sphi 0, %s180
      %s200 = sphi 0, %s202
      %s203 = sphi 0, %s200
      %s204 = sphi 0, %s203
      %s220 = sphi 0, %s204
    $region4: #{tpu_custom_call.1} parent=1 // loop_header_branch
      %20 = sbr.rel (%p18) target = $region8
    $region5: #{tpu_custom_call.1} parent=1 // loop_body
      %s22 = ssub.s32 %s17, 1
      %s23 = ssub.s32 %s17, 2
      %s24 = sadd.s32 %s17, 1
      %s25 = ssub.s32 %s17, %s24
      %p26 = scmp.eq.s32.totalorder %s25, 0
      %s28 = sadd.s32 %s27, 1
      %s29 = scalar_select %p26, %s27, %s28
      %p32 = pneg %p26
      %p33 = scmp.eq.s32.totalorder %s17, 7
      %p34 = por %p32, %p33
      %p35 = scmp.ne.s32.totalorder %s27, %s30
      %p36 = scmp.eq.s32.totalorder %s17, 0
      %p37 = por %p35, %p36
      %p38 = scmp.ne.s32.totalorder %s27, %s30
      %p39 = scmp.eq.s32.totalorder %s22, 7
      %p40 = por %p38, %p39
      %p41 = scmp.ne.s32.totalorder %s30, %s31
      %p42 = scmp.eq.s32.totalorder %s22, 0
      %p43 = por %p41, %p42
      %p44 = scmp.ne.s32.totalorder %s30, %s31
      %p45 = scmp.eq.s32.totalorder %s23, 7
      %p46 = por %p44, %p45
      %p48 = scmp.ne.s32.totalorder %s31, %s47
      %p49 = scmp.eq.s32.totalorder %s23, 0
      %p50 = por %p48, %p49
      %s52 = sadd.s32 %s51, 1
      %p55 = scmp.eq.s32.totalorder %s17, 7
      %p56 = scmp.ne.s32.totalorder %s51, %s53
      %p57 = scmp.eq.s32.totalorder %s17, 0
      %p58 = por %p56, %p57
      %p59 = scmp.ne.s32.totalorder %s51, %s53
      %p60 = scmp.eq.s32.totalorder %s22, 7
      %p61 = por %p59, %p60
      %p62 = scmp.ne.s32.totalorder %s53, %s54
      %p63 = scmp.eq.s32.totalorder %s22, 0
      %p64 = por %p62, %p63
      %p65 = scmp.ne.s32.totalorder %s53, %s54
      %p66 = scmp.eq.s32.totalorder %s23, 7
      %p67 = por %p65, %p66
      %p69 = scmp.ne.s32.totalorder %s54, %s68
      %p70 = scmp.eq.s32.totalorder %s23, 0
      %p71 = por %p69, %p70
      %s73 = sadd.s32 %s72, 1
      %p76 = scmp.eq.s32.totalorder %s17, 7
      %p77 = scmp.ne.s32.totalorder %s72, %s74
      %p78 = scmp.eq.s32.totalorder %s17, 0
      %p79 = por %p77, %p78
      %p80 = scmp.ne.s32.totalorder %s72, %s74
      %p81 = scmp.eq.s32.totalorder %s22, 7
      %p82 = por %p80, %p81
      %p83 = scmp.ne.s32.totalorder %s74, %s75
      %p84 = scmp.eq.s32.totalorder %s22, 0
      %p85 = por %p83, %p84
      %p86 = scmp.ne.s32.totalorder %s74, %s75
      %p87 = scmp.eq.s32.totalorder %s23, 7
      %p88 = por %p86, %p87
      %p90 = scmp.ne.s32.totalorder %s75, %s89
      %p91 = scmp.eq.s32.totalorder %s23, 0
      %p92 = por %p90, %p91
      %s94 = sadd.s32 %s93, 1
      %p97 = scmp.eq.s32.totalorder %s17, 7
      %p98 = scmp.ne.s32.totalorder %s93, %s95
      %p99 = scmp.eq.s32.totalorder %s17, 0
      %p100 = por %p98, %p99
      %p101 = scmp.ne.s32.totalorder %s93, %s95
      %p102 = scmp.eq.s32.totalorder %s22, 7
      %p103 = por %p101, %p102
      %p104 = scmp.ne.s32.totalorder %s95, %s96
      %p105 = scmp.eq.s32.totalorder %s22, 0
      %p106 = por %p104, %p105
      %p107 = scmp.ne.s32.totalorder %s95, %s96
      %p108 = scmp.eq.s32.totalorder %s23, 7
      %p109 = por %p107, %p108
      %p111 = scmp.ne.s32.totalorder %s96, %s110
      %p112 = scmp.eq.s32.totalorder %s23, 0
      %p113 = por %p111, %p112
      %s115 = sadd.s32 %s114, 1
      %p118 = scmp.eq.s32.totalorder %s17, 7
      %p119 = scmp.ne.s32.totalorder %s114, %s116
      %p120 = scmp.eq.s32.totalorder %s17, 0
      %p121 = por %p119, %p120
      %p122 = scmp.ne.s32.totalorder %s114, %s116
      %p123 = scmp.eq.s32.totalorder %s22, 7
      %p124 = por %p122, %p123
      %p125 = scmp.ne.s32.totalorder %s116, %s117
      %p126 = scmp.eq.s32.totalorder %s22, 0
      %p127 = por %p125, %p126
      %p128 = scmp.ne.s32.totalorder %s116, %s117
      %p129 = scmp.eq.s32.totalorder %s23, 7
      %p130 = por %p128, %p129
      %p132 = scmp.ne.s32.totalorder %s117, %s131
      %p133 = scmp.eq.s32.totalorder %s23, 0
      %p134 = por %p132, %p133
      %s136 = sadd.s32 %s135, 1
      %p139 = scmp.eq.s32.totalorder %s17, 7
      %p140 = scmp.ne.s32.totalorder %s135, %s137
      %p141 = scmp.eq.s32.totalorder %s17, 0
      %p142 = por %p140, %p141
      %p143 = scmp.ne.s32.totalorder %s135, %s137
      %p144 = scmp.eq.s32.totalorder %s22, 7
      %p145 = por %p143, %p144
      %p146 = scmp.ne.s32.totalorder %s137, %s138
      %p147 = scmp.eq.s32.totalorder %s22, 0
      %p148 = por %p146, %p147
      %p149 = scmp.ne.s32.totalorder %s137, %s138
      %p150 = scmp.eq.s32.totalorder %s23, 7
      %p151 = por %p149, %p150
      %p153 = scmp.ne.s32.totalorder %s138, %s152
      %p154 = scmp.eq.s32.totalorder %s23, 0
      %p155 = por %p153, %p154
      %s157 = sadd.s32 %s156, 1
      %p160 = scmp.eq.s32.totalorder %s17, 7
      %p161 = scmp.ne.s32.totalorder %s156, %s158
      %p162 = scmp.eq.s32.totalorder %s17, 0
      %p163 = por %p161, %p162
      %p164 = scmp.ne.s32.totalorder %s156, %s158
      %p165 = scmp.eq.s32.totalorder %s22, 7
      %p166 = por %p164, %p165
      %p167 = scmp.ne.s32.totalorder %s158, %s159
      %p168 = scmp.eq.s32.totalorder %s22, 0
      %p169 = por %p167, %p168
      %p170 = scmp.ne.s32.totalorder %s158, %s159
      %p171 = scmp.eq.s32.totalorder %s23, 7
      %p172 = por %p170, %p171
      %p174 = scmp.ne.s32.totalorder %s159, %s173
      %p175 = scmp.eq.s32.totalorder %s23, 0
      %p176 = por %p174, %p175
      %s178 = sadd.s32 %s177, 1
      %p181 = scmp.eq.s32.totalorder %s17, 7
      %p182 = scmp.ne.s32.totalorder %s177, %s179
      %p183 = scmp.eq.s32.totalorder %s17, 0
      %p184 = por %p182, %p183
      %p185 = scmp.ne.s32.totalorder %s177, %s179
      %p186 = scmp.eq.s32.totalorder %s22, 7
      %p187 = por %p185, %p186
      %p188 = scmp.ne.s32.totalorder %s179, %s180
      %p189 = scmp.eq.s32.totalorder %s22, 0
      %p190 = por %p188, %p189
      %p191 = scmp.ne.s32.totalorder %s179, %s180
      %p192 = scmp.eq.s32.totalorder %s23, 7
      %p193 = por %p191, %p192
      %p195 = scmp.ne.s32.totalorder %s180, %s194
      %p196 = scmp.eq.s32.totalorder %s23, 0
      %p197 = por %p195, %p196
      %s198 = ssub.s32 %s17, %s24
      %p199 = scmp.eq.s32.totalorder %s198, 0
      %s201 = sadd.s32 %s200, 1
      %s202 = scalar_select %p199, %s200, %s201
      %p205 = pneg %p199
      %p206 = scmp.eq.s32.totalorder %s17, 7
      %p207 = por %p205, %p206
      %p208 = scmp.ne.s32.totalorder %s200, %s203
      %p209 = scmp.eq.s32.totalorder %s17, 0
      %p210 = por %p208, %p209
      %p211 = scmp.ne.s32.totalorder %s200, %s203
      %p212 = scmp.eq.s32.totalorder %s22, 7
      %p213 = por %p211, %p212
      %p214 = scmp.ne.s32.totalorder %s203, %s204
      %p215 = scmp.eq.s32.totalorder %s22, 0
      %p216 = por %p214, %p215
      %p217 = scmp.ne.s32.totalorder %s203, %s204
      %p218 = scmp.eq.s32.totalorder %s23, 7
      %p219 = por %p217, %p218
      %p221 = scmp.ne.s32.totalorder %s204, %s220
      %p222 = scmp.eq.s32.totalorder %s23, 0
      %p223 = por %p221, %p222
      %p224 = scmp.le.s32.totalorder 1, %s17
      %p225 = scmp.lt.s32.totalorder %s17, 9
      %p226 = pnand %p224, %p225
      %p227 = pneg %p226
      // Predicated region
      $region9: #{tpu_custom_call.1} parent=5 // pred_check
        _
      $region10: #{tpu_custom_call.1} parent=5 // pred_check_branch
        %229 = sbr.rel (%p226) target = $region12
      $region11: #{tpu_custom_call.1} parent=5 // pred_region
        %s230 = ssub.s32 %s17, 1
        // Predicated region
        $region13: #{tpu_custom_call.1} parent=11 // pred_check
          %p231 = pneg %p64
        $region14: #{tpu_custom_call.1} parent=11 // pred_check_branch
          %233 = sbr.rel (%p231) target = $region16
        $region15: #{tpu_custom_call.1} parent=11 // pred_region
          _
        $region16: #{tpu_custom_call.1} parent=11 // pred_fallthru
          _
        // Predicated region
        $region17: #{tpu_custom_call.1} parent=11 // pred_check
          %p234 = pneg %p85
        $region18: #{tpu_custom_call.1} parent=11 // pred_check_branch
          %236 = sbr.rel (%p234) target = $region20
        $region19: #{tpu_custom_call.1} parent=11 // pred_region
          _
        $region20: #{tpu_custom_call.1} parent=11 // pred_fallthru
          _
        // Predicated region
        $region21: #{tpu_custom_call.1} parent=11 // pred_check
          %p237 = pneg %p106
        $region22: #{tpu_custom_call.1} parent=11 // pred_check_branch
          %239 = sbr.rel (%p237) target = $region24
        $region23: #{tpu_custom_call.1} parent=11 // pred_region
          _
        $region24: #{tpu_custom_call.1} parent=11 // pred_fallthru
          _
        // Predicated region
        $region25: #{tpu_custom_call.1} parent=11 // pred_check
          %p240 = pneg %p127
        $region26: #{tpu_custom_call.1} parent=11 // pred_check_branch
          %242 = sbr.rel (%p240) target = $region28
        $region27: #{tpu_custom_call.1} parent=11 // pred_region
          _
        $region28: #{tpu_custom_call.1} parent=11 // pred_fallthru
          _
        // Predicated region
        $region29: #{tpu_custom_call.1} parent=11 // pred_check
          %p243 = pneg %p148
        $region30: #{tpu_custom_call.1} parent=11 // pred_check_branch
          %245 = sbr.rel (%p243) target = $region32
        $region31: #{tpu_custom_call.1} parent=11 // pred_region
          _
        $region32: #{tpu_custom_call.1} parent=11 // pred_fallthru
          _
        // Predicated region
        $region33: #{tpu_custom_call.1} parent=11 // pred_check
          %p246 = pneg %p169
        $region34: #{tpu_custom_call.1} parent=11 // pred_check_branch
          %248 = sbr.rel (%p246) target = $region36
        $region35: #{tpu_custom_call.1} parent=11 // pred_region
          _
        $region36: #{tpu_custom_call.1} parent=11 // pred_fallthru
          _
        // Predicated region
        $region37: #{tpu_custom_call.1} parent=11 // pred_check
          %p249 = pneg %p190
        $region38: #{tpu_custom_call.1} parent=11 // pred_check_branch
          %251 = sbr.rel (%p249) target = $region40
        $region39: #{tpu_custom_call.1} parent=11 // pred_region
          _
        $region40: #{tpu_custom_call.1} parent=11 // pred_fallthru
          _
      $region12: #{tpu_custom_call.1} parent=5 // pred_fallthru
        _
      %p252 = scmp.lt.s32.totalorder %s17, 8
      // Predicated region
      $region41: #{tpu_custom_call.1} parent=5 // pred_check
        %p253 = pneg %p252
      $region42: #{tpu_custom_call.1} parent=5 // pred_check_branch
        %255 = sbr.rel (%p253) target = $region44
      $region43: #{tpu_custom_call.1} parent=5 // pred_region
        // Predicated region
        $region45: #{tpu_custom_call.1} parent=43 // pred_check
          %p256 = pneg %p37
        $region46: #{tpu_custom_call.1} parent=43 // pred_check_branch
          %258 = sbr.rel (%p256) target = $region48
        $region47: #{tpu_custom_call.1} parent=43 // pred_region
          %s259 = smul.u32 16, %s17
          %p260 = scmp.lt.s32.totalorder %s259, 127
          %s261 = scalar_select %p260, %s259, 127
          %s262 = smul.addr %s261, 8
          %s263 = scalar_lea.vmem %s0, %s262
          %s264 = smul.u32 16, %s17
        $region48: #{tpu_custom_call.1} parent=43 // pred_fallthru
          _
      $region44: #{tpu_custom_call.1} parent=5 // pred_fallthru
        _
      %p265 = scmp.le.s32.totalorder 1, %s17
      %p266 = scmp.lt.s32.totalorder %s17, 9
      %p267 = pnand %p265, %p266
      %p268 = pneg %p267
      // Predicated region
      $region49: #{tpu_custom_call.1} parent=5 // pred_check
        _
      $region50: #{tpu_custom_call.1} parent=5 // pred_check_branch
        %270 = sbr.rel (%p267) target = $region52
      $region51: #{tpu_custom_call.1} parent=5 // pred_region
        %s271 = ssub.s32 %s17, 1
        %s272 = smul.u32 16, %s22
        %p273 = scmp.lt.s32.totalorder %s272, 127
        %s274 = scalar_select %p273, %s272, 127
        %s275 = smul.addr %s274, 8
        %s276 = scalar_lea.vmem %s0, %s275
        %p277 = pneg %p43
        %p278 = pneg %p40
        %p279 = pneg %p64
        %p280 = pneg %p61
        %p281 = pneg %p85
        %p282 = pneg %p82
        %p283 = pneg %p106
        %p284 = pneg %p103
        %p285 = pneg %p127
        %p286 = pneg %p124
        %p287 = pneg %p148
        %p288 = pneg %p145
        %p289 = pneg %p169
        %p290 = pneg %p166
        %p291 = pneg %p190
        %p292 = pneg %p187
        %p293 = pneg %p216
        %p294 = pneg %p213
        %s295 = sand.u32 %s203, 1
        %s296 = scalar_lea.sflag [#allocation3], %s295
        %s297 = sand.u32 %s203, 1
        %s298 = smul.addr %s297, 128
        %s299 = scalar_lea.vmem [#allocation2], %s298
        %s300 = smul.u32 16, %s22
        %p301 = scmp.lt.s32.totalorder %s300, 127
        %s302 = scalar_select %p301, %s300, 127
        %s303 = smul.addr %s302, 8
        %s304 = scalar_lea.vmem %s0, %s303
        %s305 = smul.u32 16, %s22
        %s306 = smul.u32 16, %s22
        %v308 = vld [vmem:[%s304] sm:$0xff]
        %v309 = vld [vmem:[%s304 + $0x8] sm:$0xff]
        %v310 = vld [vmem:[%s304 + $0x10] sm:$0xff]
        %v311 = vld [vmem:[%s304 + $0x18] sm:$0xff]
        %v312 = vld [vmem:[%s304 + $0x20] sm:$0xff]
        %v313 = vld [vmem:[%s304 + $0x28] sm:$0xff]
        %v314 = vld [vmem:[%s304 + $0x30] sm:$0xff]
        %v315 = vld [vmem:[%s304 + $0x38] sm:$0xff]
        %v316 = vld [vmem:[%s304 + $0x40] sm:$0xff]
        %v317 = vld [vmem:[%s304 + $0x48] sm:$0xff]
        %v318 = vld [vmem:[%s304 + $0x50] sm:$0xff]
        %v319 = vld [vmem:[%s304 + $0x58] sm:$0xff]
        %v320 = vld [vmem:[%s304 + $0x60] sm:$0xff]
        %v321 = vld [vmem:[%s304 + $0x68] sm:$0xff]
        %v322 = vld [vmem:[%s304 + $0x70] sm:$0xff]
        %v323 = vld [vmem:[%s304 + $0x78] sm:$0xff]
        %340 = vrot.lane.b32.xlu0 %v308, 3
        %v341 = vpop.permute.xlu0 %340
        %342 = vrot.lane.b32.xlu0 %v309, 3
        %v343 = vpop.permute.xlu0 %342
        %344 = vrot.lane.b32.xlu0 %v310, 3
        %v345 = vpop.permute.xlu0 %344
        %346 = vrot.lane.b32.xlu0 %v311, 3
        %v347 = vpop.permute.xlu0 %346
        %348 = vrot.lane.b32.xlu0 %v312, 3
        %v349 = vpop.permute.xlu0 %348
        %350 = vrot.lane.b32.xlu0 %v313, 3
        %v351 = vpop.permute.xlu0 %350
        %352 = vrot.lane.b32.xlu0 %v314, 3
        %v353 = vpop.permute.xlu0 %352
        %354 = vrot.lane.b32.xlu0 %v315, 3
        %v355 = vpop.permute.xlu0 %354
        %356 = vrot.lane.b32.xlu0 %v316, 3
        %v357 = vpop.permute.xlu0 %356
        %358 = vrot.lane.b32.xlu0 %v317, 3
        %v359 = vpop.permute.xlu0 %358
        %360 = vrot.lane.b32.xlu0 %v318, 3
        %v361 = vpop.permute.xlu0 %360
        %362 = vrot.lane.b32.xlu0 %v319, 3
        %v363 = vpop.permute.xlu0 %362
        %364 = vrot.lane.b32.xlu0 %v320, 3
        %v365 = vpop.permute.xlu0 %364
        %366 = vrot.lane.b32.xlu0 %v321, 3
        %v367 = vpop.permute.xlu0 %366
        %368 = vrot.lane.b32.xlu0 %v322, 3
        %v369 = vpop.permute.xlu0 %368
        %370 = vrot.lane.b32.xlu0 %v323, 3
        %v371 = vpop.permute.xlu0 %370
        %388 = vrot.lane.b32.xlu0 %v308, 6
        %v389 = vpop.permute.xlu0 %388
        %390 = vrot.lane.b32.xlu0 %v309, 6
        %v391 = vpop.permute.xlu0 %390
        %392 = vrot.lane.b32.xlu0 %v310, 6
        %v393 = vpop.permute.xlu0 %392
        %394 = vrot.lane.b32.xlu0 %v311, 6
        %v395 = vpop.permute.xlu0 %394
        %396 = vrot.lane.b32.xlu0 %v312, 6
        %v397 = vpop.permute.xlu0 %396
        %398 = vrot.lane.b32.xlu0 %v313, 6
        %v399 = vpop.permute.xlu0 %398
        %400 = vrot.lane.b32.xlu0 %v314, 6
        %v401 = vpop.permute.xlu0 %400
        %402 = vrot.lane.b32.xlu0 %v315, 6
        %v403 = vpop.permute.xlu0 %402
        %404 = vrot.lane.b32.xlu0 %v316, 6
        %v405 = vpop.permute.xlu0 %404
        %406 = vrot.lane.b32.xlu0 %v317, 6
        %v407 = vpop.permute.xlu0 %406
        %408 = vrot.lane.b32.xlu0 %v318, 6
        %v409 = vpop.permute.xlu0 %408
        %410 = vrot.lane.b32.xlu0 %v319, 6
        %v411 = vpop.permute.xlu0 %410
        %412 = vrot.lane.b32.xlu0 %v320, 6
        %v413 = vpop.permute.xlu0 %412
        %414 = vrot.lane.b32.xlu0 %v321, 6
        %v415 = vpop.permute.xlu0 %414
        %416 = vrot.lane.b32.xlu0 %v322, 6
        %v417 = vpop.permute.xlu0 %416
        %418 = vrot.lane.b32.xlu0 %v323, 6
        %v419 = vpop.permute.xlu0 %418
        %436 = vrot.lane.b32.xlu0 %v308, 9
        %v437 = vpop.permute.xlu0 %436
        %438 = vrot.lane.b32.xlu0 %v309, 9
        %v439 = vpop.permute.xlu0 %438
        %440 = vrot.lane.b32.xlu0 %v310, 9
        %v441 = vpop.permute.xlu0 %440
        %442 = vrot.lane.b32.xlu0 %v311, 9
        %v443 = vpop.permute.xlu0 %442
        %444 = vrot.lane.b32.xlu0 %v312, 9
        %v445 = vpop.permute.xlu0 %444
        %446 = vrot.lane.b32.xlu0 %v313, 9
        %v447 = vpop.permute.xlu0 %446
        %448 = vrot.lane.b32.xlu0 %v314, 9
        %v449 = vpop.permute.xlu0 %448
        %450 = vrot.lane.b32.xlu0 %v315, 9
        %v451 = vpop.permute.xlu0 %450
        %452 = vrot.lane.b32.xlu0 %v316, 9
        %v453 = vpop.permute.xlu0 %452
        %454 = vrot.lane.b32.xlu0 %v317, 9
        %v455 = vpop.permute.xlu0 %454
        %456 = vrot.lane.b32.xlu0 %v318, 9
        %v457 = vpop.permute.xlu0 %456
        %458 = vrot.lane.b32.xlu0 %v319, 9
        %v459 = vpop.permute.xlu0 %458
        %460 = vrot.lane.b32.xlu0 %v320, 9
        %v461 = vpop.permute.xlu0 %460
        %462 = vrot.lane.b32.xlu0 %v321, 9
        %v463 = vpop.permute.xlu0 %462
        %464 = vrot.lane.b32.xlu0 %v322, 9
        %v465 = vpop.permute.xlu0 %464
        %466 = vrot.lane.b32.xlu0 %v323, 9
        %v467 = vpop.permute.xlu0 %466
        %484 = vrot.lane.b32.xlu0 %v308, 12
        %v485 = vpop.permute.xlu0 %484
        %486 = vrot.lane.b32.xlu0 %v309, 12
        %v487 = vpop.permute.xlu0 %486
        %488 = vrot.lane.b32.xlu0 %v310, 12
        %v489 = vpop.permute.xlu0 %488
        %490 = vrot.lane.b32.xlu0 %v311, 12
        %v491 = vpop.permute.xlu0 %490
        %492 = vrot.lane.b32.xlu0 %v312, 12
        %v493 = vpop.permute.xlu0 %492
        %494 = vrot.lane.b32.xlu0 %v313, 12
        %v495 = vpop.permute.xlu0 %494
        %496 = vrot.lane.b32.xlu0 %v314, 12
        %v497 = vpop.permute.xlu0 %496
        %498 = vrot.lane.b32.xlu0 %v315, 12
        %v499 = vpop.permute.xlu0 %498
        %500 = vrot.lane.b32.xlu0 %v316, 12
        %v501 = vpop.permute.xlu0 %500
        %502 = vrot.lane.b32.xlu0 %v317, 12
        %v503 = vpop.permute.xlu0 %502
        %504 = vrot.lane.b32.xlu0 %v318, 12
        %v505 = vpop.permute.xlu0 %504
        %506 = vrot.lane.b32.xlu0 %v319, 12
        %v507 = vpop.permute.xlu0 %506
        %508 = vrot.lane.b32.xlu0 %v320, 12
        %v509 = vpop.permute.xlu0 %508
        %510 = vrot.lane.b32.xlu0 %v321, 12
        %v511 = vpop.permute.xlu0 %510
        %512 = vrot.lane.b32.xlu0 %v322, 12
        %v513 = vpop.permute.xlu0 %512
        %514 = vrot.lane.b32.xlu0 %v323, 12
        %v515 = vpop.permute.xlu0 %514
        %532 = vrot.lane.b32.xlu0 %v308, 15
        %v533 = vpop.permute.xlu0 %532
        %534 = vrot.lane.b32.xlu0 %v309, 15
        %v535 = vpop.permute.xlu0 %534
        %536 = vrot.lane.b32.xlu0 %v310, 15
        %v537 = vpop.permute.xlu0 %536
        %538 = vrot.lane.b32.xlu0 %v311, 15
        %v539 = vpop.permute.xlu0 %538
        %540 = vrot.lane.b32.xlu0 %v312, 15
        %v541 = vpop.permute.xlu0 %540
        %542 = vrot.lane.b32.xlu0 %v313, 15
        %v543 = vpop.permute.xlu0 %542
        %544 = vrot.lane.b32.xlu0 %v314, 15
        %v545 = vpop.permute.xlu0 %544
        %546 = vrot.lane.b32.xlu0 %v315, 15
        %v547 = vpop.permute.xlu0 %546
        %548 = vrot.lane.b32.xlu0 %v316, 15
        %v549 = vpop.permute.xlu0 %548
        %550 = vrot.lane.b32.xlu0 %v317, 15
        %v551 = vpop.permute.xlu0 %550
        %552 = vrot.lane.b32.xlu0 %v318, 15
        %v553 = vpop.permute.xlu0 %552
        %554 = vrot.lane.b32.xlu0 %v319, 15
        %v555 = vpop.permute.xlu0 %554
        %556 = vrot.lane.b32.xlu0 %v320, 15
        %v557 = vpop.permute.xlu0 %556
        %558 = vrot.lane.b32.xlu0 %v321, 15
        %v559 = vpop.permute.xlu0 %558
        %560 = vrot.lane.b32.xlu0 %v322, 15
        %v561 = vpop.permute.xlu0 %560
        %562 = vrot.lane.b32.xlu0 %v323, 15
        %v563 = vpop.permute.xlu0 %562
        %580 = vrot.lane.b32.xlu0 %v308, 18
        %v581 = vpop.permute.xlu0 %580
        %582 = vrot.lane.b32.xlu0 %v309, 18
        %v583 = vpop.permute.xlu0 %582
        %584 = vrot.lane.b32.xlu0 %v310, 18
        %v585 = vpop.permute.xlu0 %584
        %586 = vrot.lane.b32.xlu0 %v311, 18
        %v587 = vpop.permute.xlu0 %586
        %588 = vrot.lane.b32.xlu0 %v312, 18
        %v589 = vpop.permute.xlu0 %588
        %590 = vrot.lane.b32.xlu0 %v313, 18
        %v591 = vpop.permute.xlu0 %590
        %592 = vrot.lane.b32.xlu0 %v314, 18
        %v593 = vpop.permute.xlu0 %592
        %594 = vrot.lane.b32.xlu0 %v315, 18
        %v595 = vpop.permute.xlu0 %594
        %596 = vrot.lane.b32.xlu0 %v316, 18
        %v597 = vpop.permute.xlu0 %596
        %598 = vrot.lane.b32.xlu0 %v317, 18
        %v599 = vpop.permute.xlu0 %598
        %600 = vrot.lane.b32.xlu0 %v318, 18
        %v601 = vpop.permute.xlu0 %600
        %602 = vrot.lane.b32.xlu0 %v319, 18
        %v603 = vpop.permute.xlu0 %602
        %604 = vrot.lane.b32.xlu0 %v320, 18
        %v605 = vpop.permute.xlu0 %604
        %606 = vrot.lane.b32.xlu0 %v321, 18
        %v607 = vpop.permute.xlu0 %606
        %608 = vrot.lane.b32.xlu0 %v322, 18
        %v609 = vpop.permute.xlu0 %608
        %610 = vrot.lane.b32.xlu0 %v323, 18
        %v611 = vpop.permute.xlu0 %610
        %628 = vrot.lane.b32.xlu0 %v308, 21
        %v629 = vpop.permute.xlu0 %628
        %630 = vrot.lane.b32.xlu0 %v309, 21
        %v631 = vpop.permute.xlu0 %630
        %632 = vrot.lane.b32.xlu0 %v310, 21
        %v633 = vpop.permute.xlu0 %632
        %634 = vrot.lane.b32.xlu0 %v311, 21
        %v635 = vpop.permute.xlu0 %634
        %636 = vrot.lane.b32.xlu0 %v312, 21
        %v637 = vpop.permute.xlu0 %636
        %638 = vrot.lane.b32.xlu0 %v313, 21
        %v639 = vpop.permute.xlu0 %638
        %640 = vrot.lane.b32.xlu0 %v314, 21
        %v641 = vpop.permute.xlu0 %640
        %642 = vrot.lane.b32.xlu0 %v315, 21
        %v643 = vpop.permute.xlu0 %642
        %644 = vrot.lane.b32.xlu0 %v316, 21
        %v645 = vpop.permute.xlu0 %644
        %646 = vrot.lane.b32.xlu0 %v317, 21
        %v647 = vpop.permute.xlu0 %646
        %648 = vrot.lane.b32.xlu0 %v318, 21
        %v649 = vpop.permute.xlu0 %648
        %650 = vrot.lane.b32.xlu0 %v319, 21
        %v651 = vpop.permute.xlu0 %650
        %652 = vrot.lane.b32.xlu0 %v320, 21
        %v653 = vpop.permute.xlu0 %652
        %654 = vrot.lane.b32.xlu0 %v321, 21
        %v655 = vpop.permute.xlu0 %654
        %656 = vrot.lane.b32.xlu0 %v322, 21
        %v657 = vpop.permute.xlu0 %656
        %658 = vrot.lane.b32.xlu0 %v323, 21
        %v659 = vpop.permute.xlu0 %658
        %676 = vrot.lane.b32.xlu0 %v308, 24
        %v677 = vpop.permute.xlu0 %676
        %678 = vrot.lane.b32.xlu0 %v309, 24
        %v679 = vpop.permute.xlu0 %678
        %680 = vrot.lane.b32.xlu0 %v310, 24
        %v681 = vpop.permute.xlu0 %680
        %682 = vrot.lane.b32.xlu0 %v311, 24
        %v683 = vpop.permute.xlu0 %682
        %684 = vrot.lane.b32.xlu0 %v312, 24
        %v685 = vpop.permute.xlu0 %684
        %686 = vrot.lane.b32.xlu0 %v313, 24
        %v687 = vpop.permute.xlu0 %686
        %688 = vrot.lane.b32.xlu0 %v314, 24
        %v689 = vpop.permute.xlu0 %688
        %690 = vrot.lane.b32.xlu0 %v315, 24
        %v691 = vpop.permute.xlu0 %690
        %692 = vrot.lane.b32.xlu0 %v316, 24
        %v693 = vpop.permute.xlu0 %692
        %694 = vrot.lane.b32.xlu0 %v317, 24
        %v695 = vpop.permute.xlu0 %694
        %696 = vrot.lane.b32.xlu0 %v318, 24
        %v697 = vpop.permute.xlu0 %696
        %698 = vrot.lane.b32.xlu0 %v319, 24
        %v699 = vpop.permute.xlu0 %698
        %700 = vrot.lane.b32.xlu0 %v320, 24
        %v701 = vpop.permute.xlu0 %700
        %702 = vrot.lane.b32.xlu0 %v321, 24
        %v703 = vpop.permute.xlu0 %702
        %704 = vrot.lane.b32.xlu0 %v322, 24
        %v705 = vpop.permute.xlu0 %704
        %706 = vrot.lane.b32.xlu0 %v323, 24
        %v707 = vpop.permute.xlu0 %706
        %724 = vrot.lane.b32.xlu0 %v308, 27
        %v725 = vpop.permute.xlu0 %724
        %726 = vrot.lane.b32.xlu0 %v309, 27
        %v727 = vpop.permute.xlu0 %726
        %728 = vrot.lane.b32.xlu0 %v310, 27
        %v729 = vpop.permute.xlu0 %728
        %730 = vrot.lane.b32.xlu0 %v311, 27
        %v731 = vpop.permute.xlu0 %730
        %732 = vrot.lane.b32.xlu0 %v312, 27
        %v733 = vpop.permute.xlu0 %732
        %734 = vrot.lane.b32.xlu0 %v313, 27
        %v735 = vpop.permute.xlu0 %734
        %736 = vrot.lane.b32.xlu0 %v314, 27
        %v737 = vpop.permute.xlu0 %736
        %738 = vrot.lane.b32.xlu0 %v315, 27
        %v739 = vpop.permute.xlu0 %738
        %740 = vrot.lane.b32.xlu0 %v316, 27
        %v741 = vpop.permute.xlu0 %740
        %742 = vrot.lane.b32.xlu0 %v317, 27
        %v743 = vpop.permute.xlu0 %742
        %744 = vrot.lane.b32.xlu0 %v318, 27
        %v745 = vpop.permute.xlu0 %744
        %746 = vrot.lane.b32.xlu0 %v319, 27
        %v747 = vpop.permute.xlu0 %746
        %748 = vrot.lane.b32.xlu0 %v320, 27
        %v749 = vpop.permute.xlu0 %748
        %750 = vrot.lane.b32.xlu0 %v321, 27
        %v751 = vpop.permute.xlu0 %750
        %752 = vrot.lane.b32.xlu0 %v322, 27
        %v753 = vpop.permute.xlu0 %752
        %754 = vrot.lane.b32.xlu0 %v323, 27
        %v755 = vpop.permute.xlu0 %754
        %772 = vrot.lane.b32.xlu0 %v308, 30
        %v773 = vpop.permute.xlu0 %772
        %774 = vrot.lane.b32.xlu0 %v309, 30
        %v775 = vpop.permute.xlu0 %774
        %776 = vrot.lane.b32.xlu0 %v310, 30
        %v777 = vpop.permute.xlu0 %776
        %778 = vrot.lane.b32.xlu0 %v311, 30
        %v779 = vpop.permute.xlu0 %778
        %780 = vrot.lane.b32.xlu0 %v312, 30
        %v781 = vpop.permute.xlu0 %780
        %782 = vrot.lane.b32.xlu0 %v313, 30
        %v783 = vpop.permute.xlu0 %782
        %784 = vrot.lane.b32.xlu0 %v314, 30
        %v785 = vpop.permute.xlu0 %784
        %786 = vrot.lane.b32.xlu0 %v315, 30
        %v787 = vpop.permute.xlu0 %786
        %788 = vrot.lane.b32.xlu0 %v316, 30
        %v789 = vpop.permute.xlu0 %788
        %790 = vrot.lane.b32.xlu0 %v317, 30
        %v791 = vpop.permute.xlu0 %790
        %792 = vrot.lane.b32.xlu0 %v318, 30
        %v793 = vpop.permute.xlu0 %792
        %794 = vrot.lane.b32.xlu0 %v319, 30
        %v795 = vpop.permute.xlu0 %794
        %796 = vrot.lane.b32.xlu0 %v320, 30
        %v797 = vpop.permute.xlu0 %796
        %798 = vrot.lane.b32.xlu0 %v321, 30
        %v799 = vpop.permute.xlu0 %798
        %800 = vrot.lane.b32.xlu0 %v322, 30
        %v801 = vpop.permute.xlu0 %800
        %802 = vrot.lane.b32.xlu0 %v323, 30
        %v803 = vpop.permute.xlu0 %802
        %820 = vrot.lane.b32.xlu0 %v308, 33
        %v821 = vpop.permute.xlu0 %820
        %822 = vrot.lane.b32.xlu0 %v309, 33
        %v823 = vpop.permute.xlu0 %822
        %824 = vrot.lane.b32.xlu0 %v310, 33
        %v825 = vpop.permute.xlu0 %824
        %826 = vrot.lane.b32.xlu0 %v311, 33
        %v827 = vpop.permute.xlu0 %826
        %828 = vrot.lane.b32.xlu0 %v312, 33
        %v829 = vpop.permute.xlu0 %828
        %830 = vrot.lane.b32.xlu0 %v313, 33
        %v831 = vpop.permute.xlu0 %830
        %832 = vrot.lane.b32.xlu0 %v314, 33
        %v833 = vpop.permute.xlu0 %832
        %834 = vrot.lane.b32.xlu0 %v315, 33
        %v835 = vpop.permute.xlu0 %834
        %836 = vrot.lane.b32.xlu0 %v316, 33
        %v837 = vpop.permute.xlu0 %836
        %838 = vrot.lane.b32.xlu0 %v317, 33
        %v839 = vpop.permute.xlu0 %838
        %840 = vrot.lane.b32.xlu0 %v318, 33
        %v841 = vpop.permute.xlu0 %840
        %842 = vrot.lane.b32.xlu0 %v319, 33
        %v843 = vpop.permute.xlu0 %842
        %844 = vrot.lane.b32.xlu0 %v320, 33
        %v845 = vpop.permute.xlu0 %844
        %846 = vrot.lane.b32.xlu0 %v321, 33
        %v847 = vpop.permute.xlu0 %846
        %848 = vrot.lane.b32.xlu0 %v322, 33
        %v849 = vpop.permute.xlu0 %848
        %850 = vrot.lane.b32.xlu0 %v323, 33
        %v851 = vpop.permute.xlu0 %850
        %vm868 = vcmask 23552
        %v869 = vsel %vm868, %v308, %v341
        %v870 = vsel %vm868, %v309, %v343
        %v871 = vsel %vm868, %v310, %v345
        %v872 = vsel %vm868, %v311, %v347
        %v873 = vsel %vm868, %v312, %v349
        %v874 = vsel %vm868, %v313, %v351
        %v875 = vsel %vm868, %v314, %v353
        %v876 = vsel %vm868, %v315, %v355
        %v877 = vsel %vm868, %v316, %v357
        %v878 = vsel %vm868, %v317, %v359
        %v879 = vsel %vm868, %v318, %v361
        %v880 = vsel %vm868, %v319, %v363
        %v881 = vsel %vm868, %v320, %v365
        %v882 = vsel %vm868, %v321, %v367
        %v883 = vsel %vm868, %v322, %v369
        %v884 = vsel %vm868, %v323, %v371
        %vm885 = vcmask 48128
        %v886 = vsel %vm885, %v869, %v389
        %v887 = vsel %vm885, %v870, %v391
        %v888 = vsel %vm885, %v871, %v393
        %v889 = vsel %vm885, %v872, %v395
        %v890 = vsel %vm885, %v873, %v397
        %v891 = vsel %vm885, %v874, %v399
        %v892 = vsel %vm885, %v875, %v401
        %v893 = vsel %vm885, %v876, %v403
        %v894 = vsel %vm885, %v877, %v405
        %v895 = vsel %vm885, %v878, %v407
        %v896 = vsel %vm885, %v879, %v409
        %v897 = vsel %vm885, %v880, %v411
        %v898 = vsel %vm885, %v881, %v413
        %v899 = vsel %vm885, %v882, %v415
        %v900 = vsel %vm885, %v883, %v417
        %v901 = vsel %vm885, %v884, %v419
        %vm902 = vcmask 72704
        %v903 = vsel %vm902, %v886, %v437
        %v904 = vsel %vm902, %v887, %v439
        %v905 = vsel %vm902, %v888, %v441
        %v906 = vsel %vm902, %v889, %v443
        %v907 = vsel %vm902, %v890, %v445
        %v908 = vsel %vm902, %v891, %v447
        %v909 = vsel %vm902, %v892, %v449
        %v910 = vsel %vm902, %v893, %v451
        %v911 = vsel %vm902, %v894, %v453
        %v912 = vsel %vm902, %v895, %v455
        %v913 = vsel %vm902, %v896, %v457
        %v914 = vsel %vm902, %v897, %v459
        %v915 = vsel %vm902, %v898, %v461
        %v916 = vsel %vm902, %v899, %v463
        %v917 = vsel %vm902, %v900, %v465
        %v918 = vsel %vm902, %v901, %v467
        %vm919 = vcmask 97280
        %v920 = vsel %vm919, %v903, %v485
        %v921 = vsel %vm919, %v904, %v487
        %v922 = vsel %vm919, %v905, %v489
        %v923 = vsel %vm919, %v906, %v491
        %v924 = vsel %vm919, %v907, %v493
        %v925 = vsel %vm919, %v908, %v495
        %v926 = vsel %vm919, %v909, %v497
        %v927 = vsel %vm919, %v910, %v499
        %v928 = vsel %vm919, %v911, %v501
        %v929 = vsel %vm919, %v912, %v503
        %v930 = vsel %vm919, %v913, %v505
        %v931 = vsel %vm919, %v914, %v507
        %v932 = vsel %vm919, %v915, %v509
        %v933 = vsel %vm919, %v916, %v511
        %v934 = vsel %vm919, %v917, %v513
        %v935 = vsel %vm919, %v918, %v515
        %vm936 = vcmask 121856
        %v937 = vsel %vm936, %v920, %v533
        %v938 = vsel %vm936, %v921, %v535
        %v939 = vsel %vm936, %v922, %v537
        %v940 = vsel %vm936, %v923, %v539
        %v941 = vsel %vm936, %v924, %v541
        %v942 = vsel %vm936, %v925, %v543
        %v943 = vsel %vm936, %v926, %v545
        %v944 = vsel %vm936, %v927, %v547
        %v945 = vsel %vm936, %v928, %v549
        %v946 = vsel %vm936, %v929, %v551
        %v947 = vsel %vm936, %v930, %v553
        %v948 = vsel %vm936, %v931, %v555
        %v949 = vsel %vm936, %v932, %v557
        %v950 = vsel %vm936, %v933, %v559
        %v951 = vsel %vm936, %v934, %v561
        %v952 = vsel %vm936, %v935, %v563
        %vm953 = vcmask 146432
        %v954 = vsel %vm953, %v937, %v581
        %v955 = vsel %vm953, %v938, %v583
        %v956 = vsel %vm953, %v939, %v585
        %v957 = vsel %vm953, %v940, %v587
        %v958 = vsel %vm953, %v941, %v589
        %v959 = vsel %vm953, %v942, %v591
        %v960 = vsel %vm953, %v943, %v593
        %v961 = vsel %vm953, %v944, %v595
        %v962 = vsel %vm953, %v945, %v597
        %v963 = vsel %vm953, %v946, %v599
        %v964 = vsel %vm953, %v947, %v601
        %v965 = vsel %vm953, %v948, %v603
        %v966 = vsel %vm953, %v949, %v605
        %v967 = vsel %vm953, %v950, %v607
        %v968 = vsel %vm953, %v951, %v609
        %v969 = vsel %vm953, %v952, %v611
        %vm970 = vcmask 171008
        %v971 = vsel %vm970, %v954, %v629
        %v972 = vsel %vm970, %v955, %v631
        %v973 = vsel %vm970, %v956, %v633
        %v974 = vsel %vm970, %v957, %v635
        %v975 = vsel %vm970, %v958, %v637
        %v976 = vsel %vm970, %v959, %v639
        %v977 = vsel %vm970, %v960, %v641
        %v978 = vsel %vm970, %v961, %v643
        %v979 = vsel %vm970, %v962, %v645
        %v980 = vsel %vm970, %v963, %v647
        %v981 = vsel %vm970, %v964, %v649
        %v982 = vsel %vm970, %v965, %v651
        %v983 = vsel %vm970, %v966, %v653
        %v984 = vsel %vm970, %v967, %v655
        %v985 = vsel %vm970, %v968, %v657
        %v986 = vsel %vm970, %v969, %v659
        %vm987 = vcmask 195584
        %v988 = vsel %vm987, %v971, %v677
        %v989 = vsel %vm987, %v972, %v679
        %v990 = vsel %vm987, %v973, %v681
        %v991 = vsel %vm987, %v974, %v683
        %v992 = vsel %vm987, %v975, %v685
        %v993 = vsel %vm987, %v976, %v687
        %v994 = vsel %vm987, %v977, %v689
        %v995 = vsel %vm987, %v978, %v691
        %v996 = vsel %vm987, %v979, %v693
        %v997 = vsel %vm987, %v980, %v695
        %v998 = vsel %vm987, %v981, %v697
        %v999 = vsel %vm987, %v982, %v699
        %v1000 = vsel %vm987, %v983, %v701
        %v1001 = vsel %vm987, %v984, %v703
        %v1002 = vsel %vm987, %v985, %v705
        %v1003 = vsel %vm987, %v986, %v707
        %vm1004 = vcmask 220160
        %v1005 = vsel %vm1004, %v988, %v725
        %v1006 = vsel %vm1004, %v989, %v727
        %v1007 = vsel %vm1004, %v990, %v729
        %v1008 = vsel %vm1004, %v991, %v731
        %v1009 = vsel %vm1004, %v992, %v733
        %v1010 = vsel %vm1004, %v993, %v735
        %v1011 = vsel %vm1004, %v994, %v737
        %v1012 = vsel %vm1004, %v995, %v739
        %v1013 = vsel %vm1004, %v996, %v741
        %v1014 = vsel %vm1004, %v997, %v743
        %v1015 = vsel %vm1004, %v998, %v745
        %v1016 = vsel %vm1004, %v999, %v747
        %v1017 = vsel %vm1004, %v1000, %v749
        %v1018 = vsel %vm1004, %v1001, %v751
        %v1019 = vsel %vm1004, %v1002, %v753
        %v1020 = vsel %vm1004, %v1003, %v755
        %vm1021 = vcmask 244736
        %v1022 = vsel %vm1021, %v1005, %v773
        %v1023 = vsel %vm1021, %v1006, %v775
        %v1024 = vsel %vm1021, %v1007, %v777
        %v1025 = vsel %vm1021, %v1008, %v779
        %v1026 = vsel %vm1021, %v1009, %v781
        %v1027 = vsel %vm1021, %v1010, %v783
        %v1028 = vsel %vm1021, %v1011, %v785
        %v1029 = vsel %vm1021, %v1012, %v787
        %v1030 = vsel %vm1021, %v1013, %v789
        %v1031 = vsel %vm1021, %v1014, %v791
        %v1032 = vsel %vm1021, %v1015, %v793
        %v1033 = vsel %vm1021, %v1016, %v795
        %v1034 = vsel %vm1021, %v1017, %v797
        %v1035 = vsel %vm1021, %v1018, %v799
        %v1036 = vsel %vm1021, %v1019, %v801
        %v1037 = vsel %vm1021, %v1020, %v803
        %vm1038 = vcmask 269312
        %v1039 = vsel %vm1038, %v1022, %v821
        %v1040 = vsel %vm1038, %v1023, %v823
        %v1041 = vsel %vm1038, %v1024, %v825
        %v1042 = vsel %vm1038, %v1025, %v827
        %v1043 = vsel %vm1038, %v1026, %v829
        %v1044 = vsel %vm1038, %v1027, %v831
        %v1045 = vsel %vm1038, %v1028, %v833
        %v1046 = vsel %vm1038, %v1029, %v835
        %v1047 = vsel %vm1038, %v1030, %v837
        %v1048 = vsel %vm1038, %v1031, %v839
        %v1049 = vsel %vm1038, %v1032, %v841
        %v1050 = vsel %vm1038, %v1033, %v843
        %v1051 = vsel %vm1038, %v1034, %v845
        %v1052 = vsel %vm1038, %v1035, %v847
        %v1053 = vsel %vm1038, %v1036, %v849
        %v1054 = vsel %vm1038, %v1037, %v851
        %v1055 = vld [vmem:[%s1] sm:$0x1]
        %v1056 = vlaneseq
        %v1057 = vshrl.u32 %v1056, 7
        %v1058 = vsub.s32 0, %v1057
        %v1059 = vrot.slane %v1055, %v1058
        %v1060 = vmul.f32 %v1039, %v1059
        %v1061 = vmul.f32 %v1040, %v1059
        %v1062 = vmul.f32 %v1041, %v1059
        %v1063 = vmul.f32 %v1042, %v1059
        %v1064 = vmul.f32 %v1043, %v1059
        %v1065 = vmul.f32 %v1044, %v1059
        %v1066 = vmul.f32 %v1045, %v1059
        %v1067 = vmul.f32 %v1046, %v1059
        %v1068 = vmul.f32 %v1047, %v1059
        %v1069 = vmul.f32 %v1048, %v1059
        %v1070 = vmul.f32 %v1049, %v1059
        %v1071 = vmul.f32 %v1050, %v1059
        %v1072 = vmul.f32 %v1051, %v1059
        %v1073 = vmul.f32 %v1052, %v1059
        %v1074 = vmul.f32 %v1053, %v1059
        %v1075 = vmul.f32 %v1054, %v1059
        %v1076 = vld [vmem:[%s1 + $0x1] sm:$0x1]
        %v1077 = vlaneseq
        %v1078 = vshrl.u32 %v1077, 7
        %v1079 = vsub.s32 0, %v1078
        %v1080 = vrot.slane %v1076, %v1079
        %v1081 = vadd.f32 %v1060, %v1080
        %v1082 = vadd.f32 %v1061, %v1080
        %v1083 = vadd.f32 %v1062, %v1080
        %v1084 = vadd.f32 %v1063, %v1080
        %v1085 = vadd.f32 %v1064, %v1080
        %v1086 = vadd.f32 %v1065, %v1080
        %v1087 = vadd.f32 %v1066, %v1080
        %v1088 = vadd.f32 %v1067, %v1080
        %v1089 = vadd.f32 %v1068, %v1080
        %v1090 = vadd.f32 %v1069, %v1080
        %v1091 = vadd.f32 %v1070, %v1080
        %v1092 = vadd.f32 %v1071, %v1080
        %v1093 = vadd.f32 %v1072, %v1080
        %v1094 = vadd.f32 %v1073, %v1080
        %v1095 = vadd.f32 %v1074, %v1080
        %v1096 = vadd.f32 %v1075, %v1080
        %v1097 = vand.u32 2147483647, %v1081
        %vm1098 = vcmp.le.f32.partialorder %v1097, 0.7853982
        %vm1099 = vcmp.lt.s32.totalorder %v1081, 0
        %v1100 = vand.u32 %v1081, 2139095040
        %v1101 = vshrl.u32 %v1100, 23
        %v1102 = vsub.s32 %v1101, 127
        %v1103 = vand.u32 2147483647, %v1081
        %v1104 = vand.u32 %v1103, 8388607
        %v1105 = vor.u32 %v1104, 8388608
        %v1106 = vsub.s32 0, %v1105
        %v1107 = vadd.s32 %v1102, 1
        %vm1108 = vcmp.gt.s32.totalorder %v1107, 0
        %v1109 = vsel %vm1108, %v1107, 0
        %v1110 = vshrl.u32 %v1109, 5
        %v1111 = vand.u32 %v1109, 31
        %v1112 = vsub.s32 32, %v1111
        %v1113 = vshrl.u32 683565275, %v1112
        %v1114 = vshll.u32 683565275, %v1111
        %v1115 = vshrl.u32 2475754826, %v1112
        %v1116 = vor.u32 %v1114, %v1115
        %v1117 = vshll.u32 2475754826, %v1111
        %v1118 = vshrl.u32 2131351028, %v1112
        %v1119 = vor.u32 %v1117, %v1118
        %v1120 = vshll.u32 2131351028, %v1111
        %v1121 = vshrl.u32 2102212464, %v1112
        %v1122 = vor.u32 %v1120, %v1121
        %v1123 = vshll.u32 2102212464, %v1111
        %v1124 = vshrl.u32 920167782, %v1112
        %v1125 = vor.u32 %v1123, %v1124
        %v1126 = vshll.u32 920167782, %v1111
        %v1127 = vshrl.u32 1326507024, %v1112
        %v1128 = vor.u32 %v1126, %v1127
        %vm1129 = vcmp.lt.s32.totalorder %v1110, 1
        %vm1130 = vcmp.lt.s32.totalorder %v1110, 2
        %vm1131 = vcmp.lt.s32.totalorder %v1110, 3
        %vm1132 = vcmp.lt.s32.totalorder %v1110, 4
        %v1133 = vsel %vm1129, %v1113, %v1116
        %v1134 = vsel %vm1132, %v1122, 2102212464
        %v1135 = vsel %vm1131, %v1119, %v1134
        %v1136 = vsel %vm1130, %v1133, %v1135
        %v1137 = vsel %vm1129, %v1116, %v1119
        %v1138 = vsel %vm1132, %v1125, 920167782
        %v1139 = vsel %vm1131, %v1122, %v1138
        %v1140 = vsel %vm1130, %v1137, %v1139
        %v1141 = vsel %vm1129, %v1119, %v1122
        %v1142 = vsel %vm1132, %v1128, 1326507024
        %v1143 = vsel %vm1131, %v1125, %v1142
        %v1144 = vsel %vm1130, %v1141, %v1143
        %v1145 = vshll.u32 %v1105, 8
        %v1146 = vmul.u32.u64.compose %v1145, %v1144
        %v1147 = vextract.low.u32 %v1146
        %v1148 = vextract.high.u32 %v1146
        %v1149 = vmul.u32.u64.compose %v1145, %v1140
        %v1150 = vextract.low.u32 %v1149
        %v1151 = vextract.high.u32 %v1149
        %v1152 = vmul.u32 %v1145, %v1136
        %v1153 = vadd.s32 %v1148, %v1150
        %vm1154 = vc.u32 %v1148, %v1150
        %v1155 = vadd.s32 %v1151, 1
        %v1156 = vsel %vm1154, %v1155, %v1151
        %v1157 = vadd.s32 %v1152, %v1156
        %v1158 = vadd.s32 %v1157, 536870912
        %v1159 = vshrl.u32 %v1158, 30
        %v1160 = vshll.u32 %v1159, 30
        %v1161 = vsub.s32 %v1157, %v1160
        %vm1162 = vcmp.lt.s32.totalorder %v1161, 0
        %v1163 = vsub.s32 0, %v1161
        %v1164 = vsel %vm1162, %v1163, %v1161
        %v1165 = vclz %v1164
        %v1166 = vsub.s32 %v1165, 2
        %vm1167 = vcmp.gt.s32.totalorder 0, %v1166
        %v1168 = vsel %vm1167, 0, %v1166
        %v1169 = vsub.s32 32, %v1168
        %v1170 = vshll.u32 %v1161, %v1168
        %v1171 = vshrl.u32 %v1153, %v1169
        %v1172 = vor.u32 %v1170, %v1171
        %v1173 = vsub.s32 4294967266, %v1168
        %v1174 = vadd.s32 %v1173, 127
        %v1175 = vshll.u32 %v1174, 23
        %v1176 = vor.u32 4788187, %v1175
        %v1177 = vand.u32 2147483647, %v1176
        %v1179 = vcvt.s32.f32 %v1172
        %v1180 = vmul.f32 %v1179, %v1177
        %v1181 = vxor.u32 %v1180, 2147483648
        %v1182 = vsel %vm1099, %v1181, %v1180
        %v1183 = vsub.s32 4, %v1159
        %v1184 = vsel %vm1099, %v1183, %v1159
        %v1185 = vsel %vm1098, %v1081, %v1182
        %v1186 = vsel %vm1098, 0, %v1184
        %v1187 = vcosq.f32.pop %v1185
        %v1188 = vsinq.f32.pop %v1185
        %vm1189 = vweird.f32 %v1081
        %v1190 = vadd.s32 %v1186, 3
        %v1191 = vand.u32 %v1190, 3
        %vm1192 = vcmp.lt.s32.totalorder %v1191, 2
        %vm1193 = vcmp.eq.s32.totalorder %v1191, 0
        %v1194 = vxor.u32 %v1188, 2147483648
        %v1195 = vsel %vm1193, %v1187, %v1194
        %vm1196 = vcmp.eq.s32.totalorder %v1191, 2
        %v1197 = vxor.u32 %v1187, 2147483648
        %v1198 = vsel %vm1196, %v1197, %v1188
        %v1199 = vsel %vm1192, %v1195, %v1198
        %v1200 = vsel %vm1189, nan, %v1199
        %v1201 = vand.u32 2147483647, %v1082
        %vm1202 = vcmp.le.f32.partialorder %v1201, 0.7853982
        %vm1203 = vcmp.lt.s32.totalorder %v1082, 0
        %v1204 = vand.u32 %v1082, 2139095040
        %v1205 = vshrl.u32 %v1204, 23
        %v1206 = vsub.s32 %v1205, 127
        %v1207 = vand.u32 2147483647, %v1082
        %v1208 = vand.u32 %v1207, 8388607
        %v1209 = vor.u32 %v1208, 8388608
        %v1210 = vsub.s32 0, %v1209
        %v1211 = vadd.s32 %v1206, 1
        %vm1212 = vcmp.gt.s32.totalorder %v1211, 0
        %v1213 = vsel %vm1212, %v1211, 0
        %v1214 = vshrl.u32 %v1213, 5
        %v1215 = vand.u32 %v1213, 31
        %v1216 = vsub.s32 32, %v1215
        %v1217 = vshrl.u32 683565275, %v1216
        %v1218 = vshll.u32 683565275, %v1215
        %v1219 = vshrl.u32 2475754826, %v1216
        %v1220 = vor.u32 %v1218, %v1219
        %v1221 = vshll.u32 2475754826, %v1215
        %v1222 = vshrl.u32 2131351028, %v1216
        %v1223 = vor.u32 %v1221, %v1222
        %v1224 = vshll.u32 2131351028, %v1215
        %v1225 = vshrl.u32 2102212464, %v1216
        %v1226 = vor.u32 %v1224, %v1225
        %v1227 = vshll.u32 2102212464, %v1215
        %v1228 = vshrl.u32 920167782, %v1216
        %v1229 = vor.u32 %v1227, %v1228
        %v1230 = vshll.u32 920167782, %v1215
        %v1231 = vshrl.u32 1326507024, %v1216
        %v1232 = vor.u32 %v1230, %v1231
        %vm1233 = vcmp.lt.s32.totalorder %v1214, 1
        %vm1234 = vcmp.lt.s32.totalorder %v1214, 2
        %vm1235 = vcmp.lt.s32.totalorder %v1214, 3
        %vm1236 = vcmp.lt.s32.totalorder %v1214, 4
        %v1237 = vsel %vm1233, %v1217, %v1220
        %v1238 = vsel %vm1236, %v1226, 2102212464
        %v1239 = vsel %vm1235, %v1223, %v1238
        %v1240 = vsel %vm1234, %v1237, %v1239
        %v1241 = vsel %vm1233, %v1220, %v1223
        %v1242 = vsel %vm1236, %v1229, 920167782
        %v1243 = vsel %vm1235, %v1226, %v1242
        %v1244 = vsel %vm1234, %v1241, %v1243
        %v1245 = vsel %vm1233, %v1223, %v1226
        %v1246 = vsel %vm1236, %v1232, 1326507024
        %v1247 = vsel %vm1235, %v1229, %v1246
        %v1248 = vsel %vm1234, %v1245, %v1247
        %v1249 = vshll.u32 %v1209, 8
        %v1250 = vmul.u32.u64.compose %v1249, %v1248
        %v1251 = vextract.low.u32 %v1250
        %v1252 = vextract.high.u32 %v1250
        %v1253 = vmul.u32.u64.compose %v1249, %v1244
        %v1254 = vextract.low.u32 %v1253
        %v1255 = vextract.high.u32 %v1253
        %v1256 = vmul.u32 %v1249, %v1240
        %v1257 = vadd.s32 %v1252, %v1254
        %vm1258 = vc.u32 %v1252, %v1254
        %v1259 = vadd.s32 %v1255, 1
        %v1260 = vsel %vm1258, %v1259, %v1255
        %v1261 = vadd.s32 %v1256, %v1260
        %v1262 = vadd.s32 %v1261, 536870912
        %v1263 = vshrl.u32 %v1262, 30
        %v1264 = vshll.u32 %v1263, 30
        %v1265 = vsub.s32 %v1261, %v1264
        %vm1266 = vcmp.lt.s32.totalorder %v1265, 0
        %v1267 = vsub.s32 0, %v1265
        %v1268 = vsel %vm1266, %v1267, %v1265
        %v1269 = vclz %v1268
        %v1270 = vsub.s32 %v1269, 2
        %vm1271 = vcmp.gt.s32.totalorder 0, %v1270
        %v1272 = vsel %vm1271, 0, %v1270
        %v1273 = vsub.s32 32, %v1272
        %v1274 = vshll.u32 %v1265, %v1272
        %v1275 = vshrl.u32 %v1257, %v1273
        %v1276 = vor.u32 %v1274, %v1275
        %v1277 = vsub.s32 4294967266, %v1272
        %v1278 = vadd.s32 %v1277, 127
        %v1279 = vshll.u32 %v1278, 23
        %v1280 = vor.u32 4788187, %v1279
        %v1281 = vand.u32 2147483647, %v1280
        %v1283 = vcvt.s32.f32 %v1276
        %v1284 = vmul.f32 %v1283, %v1281
        %v1285 = vxor.u32 %v1284, 2147483648
        %v1286 = vsel %vm1203, %v1285, %v1284
        %v1287 = vsub.s32 4, %v1263
        %v1288 = vsel %vm1203, %v1287, %v1263
        %v1289 = vsel %vm1202, %v1082, %v1286
        %v1290 = vsel %vm1202, 0, %v1288
        %v1291 = vcosq.f32.pop %v1289
        %v1292 = vsinq.f32.pop %v1289
        %vm1293 = vweird.f32 %v1082
        %v1294 = vadd.s32 %v1290, 3
        %v1295 = vand.u32 %v1294, 3
        %vm1296 = vcmp.lt.s32.totalorder %v1295, 2
        %vm1297 = vcmp.eq.s32.totalorder %v1295, 0
        %v1298 = vxor.u32 %v1292, 2147483648
        %v1299 = vsel %vm1297, %v1291, %v1298
        %vm1300 = vcmp.eq.s32.totalorder %v1295, 2
        %v1301 = vxor.u32 %v1291, 2147483648
        %v1302 = vsel %vm1300, %v1301, %v1292
        %v1303 = vsel %vm1296, %v1299, %v1302
        %v1304 = vsel %vm1293, nan, %v1303
        %v1305 = vand.u32 2147483647, %v1083
        %vm1306 = vcmp.le.f32.partialorder %v1305, 0.7853982
        %vm1307 = vcmp.lt.s32.totalorder %v1083, 0
        %v1308 = vand.u32 %v1083, 2139095040
        %v1309 = vshrl.u32 %v1308, 23
        %v1310 = vsub.s32 %v1309, 127
        %v1311 = vand.u32 2147483647, %v1083
        %v1312 = vand.u32 %v1311, 8388607
        %v1313 = vor.u32 %v1312, 8388608
        %v1314 = vsub.s32 0, %v1313
        %v1315 = vadd.s32 %v1310, 1
        %vm1316 = vcmp.gt.s32.totalorder %v1315, 0
        %v1317 = vsel %vm1316, %v1315, 0
        %v1318 = vshrl.u32 %v1317, 5
        %v1319 = vand.u32 %v1317, 31
        %v1320 = vsub.s32 32, %v1319
        %v1321 = vshrl.u32 683565275, %v1320
        %v1322 = vshll.u32 683565275, %v1319
        %v1323 = vshrl.u32 2475754826, %v1320
        %v1324 = vor.u32 %v1322, %v1323
        %v1325 = vshll.u32 2475754826, %v1319
        %v1326 = vshrl.u32 2131351028, %v1320
        %v1327 = vor.u32 %v1325, %v1326
        %v1328 = vshll.u32 2131351028, %v1319
        %v1329 = vshrl.u32 2102212464, %v1320
        %v1330 = vor.u32 %v1328, %v1329
        %v1331 = vshll.u32 2102212464, %v1319
        %v1332 = vshrl.u32 920167782, %v1320
        %v1333 = vor.u32 %v1331, %v1332
        %v1334 = vshll.u32 920167782, %v1319
        %v1335 = vshrl.u32 1326507024, %v1320
        %v1336 = vor.u32 %v1334, %v1335
        %vm1337 = vcmp.lt.s32.totalorder %v1318, 1
        %vm1338 = vcmp.lt.s32.totalorder %v1318, 2
        %vm1339 = vcmp.lt.s32.totalorder %v1318, 3
        %vm1340 = vcmp.lt.s32.totalorder %v1318, 4
        %v1341 = vsel %vm1337, %v1321, %v1324
        %v1342 = vsel %vm1340, %v1330, 2102212464
        %v1343 = vsel %vm1339, %v1327, %v1342
        %v1344 = vsel %vm1338, %v1341, %v1343
        %v1345 = vsel %vm1337, %v1324, %v1327
        %v1346 = vsel %vm1340, %v1333, 920167782
        %v1347 = vsel %vm1339, %v1330, %v1346
        %v1348 = vsel %vm1338, %v1345, %v1347
        %v1349 = vsel %vm1337, %v1327, %v1330
        %v1350 = vsel %vm1340, %v1336, 1326507024
        %v1351 = vsel %vm1339, %v1333, %v1350
        %v1352 = vsel %vm1338, %v1349, %v1351
        %v1353 = vshll.u32 %v1313, 8
        %v1354 = vmul.u32.u64.compose %v1353, %v1352
        %v1355 = vextract.low.u32 %v1354
        %v1356 = vextract.high.u32 %v1354
        %v1357 = vmul.u32.u64.compose %v1353, %v1348
        %v1358 = vextract.low.u32 %v1357
        %v1359 = vextract.high.u32 %v1357
        %v1360 = vmul.u32 %v1353, %v1344
        %v1361 = vadd.s32 %v1356, %v1358
        %vm1362 = vc.u32 %v1356, %v1358
        %v1363 = vadd.s32 %v1359, 1
        %v1364 = vsel %vm1362, %v1363, %v1359
        %v1365 = vadd.s32 %v1360, %v1364
        %v1366 = vadd.s32 %v1365, 536870912
        %v1367 = vshrl.u32 %v1366, 30
        %v1368 = vshll.u32 %v1367, 30
        %v1369 = vsub.s32 %v1365, %v1368
        %vm1370 = vcmp.lt.s32.totalorder %v1369, 0
        %v1371 = vsub.s32 0, %v1369
        %v1372 = vsel %vm1370, %v1371, %v1369
        %v1373 = vclz %v1372
        %v1374 = vsub.s32 %v1373, 2
        %vm1375 = vcmp.gt.s32.totalorder 0, %v1374
        %v1376 = vsel %vm1375, 0, %v1374
        %v1377 = vsub.s32 32, %v1376
        %v1378 = vshll.u32 %v1369, %v1376
        %v1379 = vshrl.u32 %v1361, %v1377
        %v1380 = vor.u32 %v1378, %v1379
        %v1381 = vsub.s32 4294967266, %v1376
        %v1382 = vadd.s32 %v1381, 127
        %v1383 = vshll.u32 %v1382, 23
        %v1384 = vor.u32 4788187, %v1383
        %v1385 = vand.u32 2147483647, %v1384
        %v1387 = vcvt.s32.f32 %v1380
        %v1388 = vmul.f32 %v1387, %v1385
        %v1389 = vxor.u32 %v1388, 2147483648
        %v1390 = vsel %vm1307, %v1389, %v1388
        %v1391 = vsub.s32 4, %v1367
        %v1392 = vsel %vm1307, %v1391, %v1367
        %v1393 = vsel %vm1306, %v1083, %v1390
        %v1394 = vsel %vm1306, 0, %v1392
        %v1395 = vcosq.f32.pop %v1393
        %v1396 = vsinq.f32.pop %v1393
        %vm1397 = vweird.f32 %v1083
        %v1398 = vadd.s32 %v1394, 3
        %v1399 = vand.u32 %v1398, 3
        %vm1400 = vcmp.lt.s32.totalorder %v1399, 2
        %vm1401 = vcmp.eq.s32.totalorder %v1399, 0
        %v1402 = vxor.u32 %v1396, 2147483648
        %v1403 = vsel %vm1401, %v1395, %v1402
        %vm1404 = vcmp.eq.s32.totalorder %v1399, 2
        %v1405 = vxor.u32 %v1395, 2147483648
        %v1406 = vsel %vm1404, %v1405, %v1396
        %v1407 = vsel %vm1400, %v1403, %v1406
        %v1408 = vsel %vm1397, nan, %v1407
        %v1409 = vand.u32 2147483647, %v1084
        %vm1410 = vcmp.le.f32.partialorder %v1409, 0.7853982
        %vm1411 = vcmp.lt.s32.totalorder %v1084, 0
        %v1412 = vand.u32 %v1084, 2139095040
        %v1413 = vshrl.u32 %v1412, 23
        %v1414 = vsub.s32 %v1413, 127
        %v1415 = vand.u32 2147483647, %v1084
        %v1416 = vand.u32 %v1415, 8388607
        %v1417 = vor.u32 %v1416, 8388608
        %v1418 = vsub.s32 0, %v1417
        %v1419 = vadd.s32 %v1414, 1
        %vm1420 = vcmp.gt.s32.totalorder %v1419, 0
        %v1421 = vsel %vm1420, %v1419, 0
        %v1422 = vshrl.u32 %v1421, 5
        %v1423 = vand.u32 %v1421, 31
        %v1424 = vsub.s32 32, %v1423
        %v1425 = vshrl.u32 683565275, %v1424
        %v1426 = vshll.u32 683565275, %v1423
        %v1427 = vshrl.u32 2475754826, %v1424
        %v1428 = vor.u32 %v1426, %v1427
        %v1429 = vshll.u32 2475754826, %v1423
        %v1430 = vshrl.u32 2131351028, %v1424
        %v1431 = vor.u32 %v1429, %v1430
        %v1432 = vshll.u32 2131351028, %v1423
        %v1433 = vshrl.u32 2102212464, %v1424
        %v1434 = vor.u32 %v1432, %v1433
        %v1435 = vshll.u32 2102212464, %v1423
        %v1436 = vshrl.u32 920167782, %v1424
        %v1437 = vor.u32 %v1435, %v1436
        %v1438 = vshll.u32 920167782, %v1423
        %v1439 = vshrl.u32 1326507024, %v1424
        %v1440 = vor.u32 %v1438, %v1439
        %vm1441 = vcmp.lt.s32.totalorder %v1422, 1
        %vm1442 = vcmp.lt.s32.totalorder %v1422, 2
        %vm1443 = vcmp.lt.s32.totalorder %v1422, 3
        %vm1444 = vcmp.lt.s32.totalorder %v1422, 4
        %v1445 = vsel %vm1441, %v1425, %v1428
        %v1446 = vsel %vm1444, %v1434, 2102212464
        %v1447 = vsel %vm1443, %v1431, %v1446
        %v1448 = vsel %vm1442, %v1445, %v1447
        %v1449 = vsel %vm1441, %v1428, %v1431
        %v1450 = vsel %vm1444, %v1437, 920167782
        %v1451 = vsel %vm1443, %v1434, %v1450
        %v1452 = vsel %vm1442, %v1449, %v1451
        %v1453 = vsel %vm1441, %v1431, %v1434
        %v1454 = vsel %vm1444, %v1440, 1326507024
        %v1455 = vsel %vm1443, %v1437, %v1454
        %v1456 = vsel %vm1442, %v1453, %v1455
        %v1457 = vshll.u32 %v1417, 8
        %v1458 = vmul.u32.u64.compose %v1457, %v1456
        %v1459 = vextract.low.u32 %v1458
        %v1460 = vextract.high.u32 %v1458
        %v1461 = vmul.u32.u64.compose %v1457, %v1452
        %v1462 = vextract.low.u32 %v1461
        %v1463 = vextract.high.u32 %v1461
        %v1464 = vmul.u32 %v1457, %v1448
        %v1465 = vadd.s32 %v1460, %v1462
        %vm1466 = vc.u32 %v1460, %v1462
        %v1467 = vadd.s32 %v1463, 1
        %v1468 = vsel %vm1466, %v1467, %v1463
        %v1469 = vadd.s32 %v1464, %v1468
        %v1470 = vadd.s32 %v1469, 536870912
        %v1471 = vshrl.u32 %v1470, 30
        %v1472 = vshll.u32 %v1471, 30
        %v1473 = vsub.s32 %v1469, %v1472
        %vm1474 = vcmp.lt.s32.totalorder %v1473, 0
        %v1475 = vsub.s32 0, %v1473
        %v1476 = vsel %vm1474, %v1475, %v1473
        %v1477 = vclz %v1476
        %v1478 = vsub.s32 %v1477, 2
        %vm1479 = vcmp.gt.s32.totalorder 0, %v1478
        %v1480 = vsel %vm1479, 0, %v1478
        %v1481 = vsub.s32 32, %v1480
        %v1482 = vshll.u32 %v1473, %v1480
        %v1483 = vshrl.u32 %v1465, %v1481
        %v1484 = vor.u32 %v1482, %v1483
        %v1485 = vsub.s32 4294967266, %v1480
        %v1486 = vadd.s32 %v1485, 127
        %v1487 = vshll.u32 %v1486, 23
        %v1488 = vor.u32 4788187, %v1487
        %v1489 = vand.u32 2147483647, %v1488
        %v1491 = vcvt.s32.f32 %v1484
        %v1492 = vmul.f32 %v1491, %v1489
        %v1493 = vxor.u32 %v1492, 2147483648
        %v1494 = vsel %vm1411, %v1493, %v1492
        %v1495 = vsub.s32 4, %v1471
        %v1496 = vsel %vm1411, %v1495, %v1471
        %v1497 = vsel %vm1410, %v1084, %v1494
        %v1498 = vsel %vm1410, 0, %v1496
        %v1499 = vcosq.f32.pop %v1497
        %v1500 = vsinq.f32.pop %v1497
        %vm1501 = vweird.f32 %v1084
        %v1502 = vadd.s32 %v1498, 3
        %v1503 = vand.u32 %v1502, 3
        %vm1504 = vcmp.lt.s32.totalorder %v1503, 2
        %vm1505 = vcmp.eq.s32.totalorder %v1503, 0
        %v1506 = vxor.u32 %v1500, 2147483648
        %v1507 = vsel %vm1505, %v1499, %v1506
        %vm1508 = vcmp.eq.s32.totalorder %v1503, 2
        %v1509 = vxor.u32 %v1499, 2147483648
        %v1510 = vsel %vm1508, %v1509, %v1500
        %v1511 = vsel %vm1504, %v1507, %v1510
        %v1512 = vsel %vm1501, nan, %v1511
        %v1513 = vand.u32 2147483647, %v1085
        %vm1514 = vcmp.le.f32.partialorder %v1513, 0.7853982
        %vm1515 = vcmp.lt.s32.totalorder %v1085, 0
        %v1516 = vand.u32 %v1085, 2139095040
        %v1517 = vshrl.u32 %v1516, 23
        %v1518 = vsub.s32 %v1517, 127
        %v1519 = vand.u32 2147483647, %v1085
        %v1520 = vand.u32 %v1519, 8388607
        %v1521 = vor.u32 %v1520, 8388608
        %v1522 = vsub.s32 0, %v1521
        %v1523 = vadd.s32 %v1518, 1
        %vm1524 = vcmp.gt.s32.totalorder %v1523, 0
        %v1525 = vsel %vm1524, %v1523, 0
        %v1526 = vshrl.u32 %v1525, 5
        %v1527 = vand.u32 %v1525, 31
        %v1528 = vsub.s32 32, %v1527
        %v1529 = vshrl.u32 683565275, %v1528
        %v1530 = vshll.u32 683565275, %v1527
        %v1531 = vshrl.u32 2475754826, %v1528
        %v1532 = vor.u32 %v1530, %v1531
        %v1533 = vshll.u32 2475754826, %v1527
        %v1534 = vshrl.u32 2131351028, %v1528
        %v1535 = vor.u32 %v1533, %v1534
        %v1536 = vshll.u32 2131351028, %v1527
        %v1537 = vshrl.u32 2102212464, %v1528
        %v1538 = vor.u32 %v1536, %v1537
        %v1539 = vshll.u32 2102212464, %v1527
        %v1540 = vshrl.u32 920167782, %v1528
        %v1541 = vor.u32 %v1539, %v1540
        %v1542 = vshll.u32 920167782, %v1527
        %v1543 = vshrl.u32 1326507024, %v1528
        %v1544 = vor.u32 %v1542, %v1543
        %vm1545 = vcmp.lt.s32.totalorder %v1526, 1
        %vm1546 = vcmp.lt.s32.totalorder %v1526, 2
        %vm1547 = vcmp.lt.s32.totalorder %v1526, 3
        %vm1548 = vcmp.lt.s32.totalorder %v1526, 4
        %v1549 = vsel %vm1545, %v1529, %v1532
        %v1550 = vsel %vm1548, %v1538, 2102212464
        %v1551 = vsel %vm1547, %v1535, %v1550
        %v1552 = vsel %vm1546, %v1549, %v1551
        %v1553 = vsel %vm1545, %v1532, %v1535
        %v1554 = vsel %vm1548, %v1541, 920167782
        %v1555 = vsel %vm1547, %v1538, %v1554
        %v1556 = vsel %vm1546, %v1553, %v1555
        %v1557 = vsel %vm1545, %v1535, %v1538
        %v1558 = vsel %vm1548, %v1544, 1326507024
        %v1559 = vsel %vm1547, %v1541, %v1558
        %v1560 = vsel %vm1546, %v1557, %v1559
        %v1561 = vshll.u32 %v1521, 8
        %v1562 = vmul.u32.u64.compose %v1561, %v1560
        %v1563 = vextract.low.u32 %v1562
        %v1564 = vextract.high.u32 %v1562
        %v1565 = vmul.u32.u64.compose %v1561, %v1556
        %v1566 = vextract.low.u32 %v1565
        %v1567 = vextract.high.u32 %v1565
        %v1568 = vmul.u32 %v1561, %v1552
        %v1569 = vadd.s32 %v1564, %v1566
        %vm1570 = vc.u32 %v1564, %v1566
        %v1571 = vadd.s32 %v1567, 1
        %v1572 = vsel %vm1570, %v1571, %v1567
        %v1573 = vadd.s32 %v1568, %v1572
        %v1574 = vadd.s32 %v1573, 536870912
        %v1575 = vshrl.u32 %v1574, 30
        %v1576 = vshll.u32 %v1575, 30
        %v1577 = vsub.s32 %v1573, %v1576
        %vm1578 = vcmp.lt.s32.totalorder %v1577, 0
        %v1579 = vsub.s32 0, %v1577
        %v1580 = vsel %vm1578, %v1579, %v1577
        %v1581 = vclz %v1580
        %v1582 = vsub.s32 %v1581, 2
        %vm1583 = vcmp.gt.s32.totalorder 0, %v1582
        %v1584 = vsel %vm1583, 0, %v1582
        %v1585 = vsub.s32 32, %v1584
        %v1586 = vshll.u32 %v1577, %v1584
        %v1587 = vshrl.u32 %v1569, %v1585
        %v1588 = vor.u32 %v1586, %v1587
        %v1589 = vsub.s32 4294967266, %v1584
        %v1590 = vadd.s32 %v1589, 127
        %v1591 = vshll.u32 %v1590, 23
        %v1592 = vor.u32 4788187, %v1591
        %v1593 = vand.u32 2147483647, %v1592
        %v1595 = vcvt.s32.f32 %v1588
        %v1596 = vmul.f32 %v1595, %v1593
        %v1597 = vxor.u32 %v1596, 2147483648
        %v1598 = vsel %vm1515, %v1597, %v1596
        %v1599 = vsub.s32 4, %v1575
        %v1600 = vsel %vm1515, %v1599, %v1575
        %v1601 = vsel %vm1514, %v1085, %v1598
        %v1602 = vsel %vm1514, 0, %v1600
        %v1603 = vcosq.f32.pop %v1601
        %v1604 = vsinq.f32.pop %v1601
        %vm1605 = vweird.f32 %v1085
        %v1606 = vadd.s32 %v1602, 3
        %v1607 = vand.u32 %v1606, 3
        %vm1608 = vcmp.lt.s32.totalorder %v1607, 2
        %vm1609 = vcmp.eq.s32.totalorder %v1607, 0
        %v1610 = vxor.u32 %v1604, 2147483648
        %v1611 = vsel %vm1609, %v1603, %v1610
        %vm1612 = vcmp.eq.s32.totalorder %v1607, 2
        %v1613 = vxor.u32 %v1603, 2147483648
        %v1614 = vsel %vm1612, %v1613, %v1604
        %v1615 = vsel %vm1608, %v1611, %v1614
        %v1616 = vsel %vm1605, nan, %v1615
        %v1617 = vand.u32 2147483647, %v1086
        %vm1618 = vcmp.le.f32.partialorder %v1617, 0.7853982
        %vm1619 = vcmp.lt.s32.totalorder %v1086, 0
        %v1620 = vand.u32 %v1086, 2139095040
        %v1621 = vshrl.u32 %v1620, 23
        %v1622 = vsub.s32 %v1621, 127
        %v1623 = vand.u32 2147483647, %v1086
        %v1624 = vand.u32 %v1623, 8388607
        %v1625 = vor.u32 %v1624, 8388608
        %v1626 = vsub.s32 0, %v1625
        %v1627 = vadd.s32 %v1622, 1
        %vm1628 = vcmp.gt.s32.totalorder %v1627, 0
        %v1629 = vsel %vm1628, %v1627, 0
        %v1630 = vshrl.u32 %v1629, 5
        %v1631 = vand.u32 %v1629, 31
        %v1632 = vsub.s32 32, %v1631
        %v1633 = vshrl.u32 683565275, %v1632
        %v1634 = vshll.u32 683565275, %v1631
        %v1635 = vshrl.u32 2475754826, %v1632
        %v1636 = vor.u32 %v1634, %v1635
        %v1637 = vshll.u32 2475754826, %v1631
        %v1638 = vshrl.u32 2131351028, %v1632
        %v1639 = vor.u32 %v1637, %v1638
        %v1640 = vshll.u32 2131351028, %v1631
        %v1641 = vshrl.u32 2102212464, %v1632
        %v1642 = vor.u32 %v1640, %v1641
        %v1643 = vshll.u32 2102212464, %v1631
        %v1644 = vshrl.u32 920167782, %v1632
        %v1645 = vor.u32 %v1643, %v1644
        %v1646 = vshll.u32 920167782, %v1631
        %v1647 = vshrl.u32 1326507024, %v1632
        %v1648 = vor.u32 %v1646, %v1647
        %vm1649 = vcmp.lt.s32.totalorder %v1630, 1
        %vm1650 = vcmp.lt.s32.totalorder %v1630, 2
        %vm1651 = vcmp.lt.s32.totalorder %v1630, 3
        %vm1652 = vcmp.lt.s32.totalorder %v1630, 4
        %v1653 = vsel %vm1649, %v1633, %v1636
        %v1654 = vsel %vm1652, %v1642, 2102212464
        %v1655 = vsel %vm1651, %v1639, %v1654
        %v1656 = vsel %vm1650, %v1653, %v1655
        %v1657 = vsel %vm1649, %v1636, %v1639
        %v1658 = vsel %vm1652, %v1645, 920167782
        %v1659 = vsel %vm1651, %v1642, %v1658
        %v1660 = vsel %vm1650, %v1657, %v1659
        %v1661 = vsel %vm1649, %v1639, %v1642
        %v1662 = vsel %vm1652, %v1648, 1326507024
        %v1663 = vsel %vm1651, %v1645, %v1662
        %v1664 = vsel %vm1650, %v1661, %v1663
        %v1665 = vshll.u32 %v1625, 8
        %v1666 = vmul.u32.u64.compose %v1665, %v1664
        %v1667 = vextract.low.u32 %v1666
        %v1668 = vextract.high.u32 %v1666
        %v1669 = vmul.u32.u64.compose %v1665, %v1660
        %v1670 = vextract.low.u32 %v1669
        %v1671 = vextract.high.u32 %v1669
        %v1672 = vmul.u32 %v1665, %v1656
        %v1673 = vadd.s32 %v1668, %v1670
        %vm1674 = vc.u32 %v1668, %v1670
        %v1675 = vadd.s32 %v1671, 1
        %v1676 = vsel %vm1674, %v1675, %v1671
        %v1677 = vadd.s32 %v1672, %v1676
        %v1678 = vadd.s32 %v1677, 536870912
        %v1679 = vshrl.u32 %v1678, 30
        %v1680 = vshll.u32 %v1679, 30
        %v1681 = vsub.s32 %v1677, %v1680
        %vm1682 = vcmp.lt.s32.totalorder %v1681, 0
        %v1683 = vsub.s32 0, %v1681
        %v1684 = vsel %vm1682, %v1683, %v1681
        %v1685 = vclz %v1684
        %v1686 = vsub.s32 %v1685, 2
        %vm1687 = vcmp.gt.s32.totalorder 0, %v1686
        %v1688 = vsel %vm1687, 0, %v1686
        %v1689 = vsub.s32 32, %v1688
        %v1690 = vshll.u32 %v1681, %v1688
        %v1691 = vshrl.u32 %v1673, %v1689
        %v1692 = vor.u32 %v1690, %v1691
        %v1693 = vsub.s32 4294967266, %v1688
        %v1694 = vadd.s32 %v1693, 127
        %v1695 = vshll.u32 %v1694, 23
        %v1696 = vor.u32 4788187, %v1695
        %v1697 = vand.u32 2147483647, %v1696
        %v1699 = vcvt.s32.f32 %v1692
        %v1700 = vmul.f32 %v1699, %v1697
        %v1701 = vxor.u32 %v1700, 2147483648
        %v1702 = vsel %vm1619, %v1701, %v1700
        %v1703 = vsub.s32 4, %v1679
        %v1704 = vsel %vm1619, %v1703, %v1679
        %v1705 = vsel %vm1618, %v1086, %v1702
        %v1706 = vsel %vm1618, 0, %v1704
        %v1707 = vcosq.f32.pop %v1705
        %v1708 = vsinq.f32.pop %v1705
        %vm1709 = vweird.f32 %v1086
        %v1710 = vadd.s32 %v1706, 3
        %v1711 = vand.u32 %v1710, 3
        %vm1712 = vcmp.lt.s32.totalorder %v1711, 2
        %vm1713 = vcmp.eq.s32.totalorder %v1711, 0
        %v1714 = vxor.u32 %v1708, 2147483648
        %v1715 = vsel %vm1713, %v1707, %v1714
        %vm1716 = vcmp.eq.s32.totalorder %v1711, 2
        %v1717 = vxor.u32 %v1707, 2147483648
        %v1718 = vsel %vm1716, %v1717, %v1708
        %v1719 = vsel %vm1712, %v1715, %v1718
        %v1720 = vsel %vm1709, nan, %v1719
        %v1721 = vand.u32 2147483647, %v1087
        %vm1722 = vcmp.le.f32.partialorder %v1721, 0.7853982
        %vm1723 = vcmp.lt.s32.totalorder %v1087, 0
        %v1724 = vand.u32 %v1087, 2139095040
        %v1725 = vshrl.u32 %v1724, 23
        %v1726 = vsub.s32 %v1725, 127
        %v1727 = vand.u32 2147483647, %v1087
        %v1728 = vand.u32 %v1727, 8388607
        %v1729 = vor.u32 %v1728, 8388608
        %v1730 = vsub.s32 0, %v1729
        %v1731 = vadd.s32 %v1726, 1
        %vm1732 = vcmp.gt.s32.totalorder %v1731, 0
        %v1733 = vsel %vm1732, %v1731, 0
        %v1734 = vshrl.u32 %v1733, 5
        %v1735 = vand.u32 %v1733, 31
        %v1736 = vsub.s32 32, %v1735
        %v1737 = vshrl.u32 683565275, %v1736
        %v1738 = vshll.u32 683565275, %v1735
        %v1739 = vshrl.u32 2475754826, %v1736
        %v1740 = vor.u32 %v1738, %v1739
        %v1741 = vshll.u32 2475754826, %v1735
        %v1742 = vshrl.u32 2131351028, %v1736
        %v1743 = vor.u32 %v1741, %v1742
        %v1744 = vshll.u32 2131351028, %v1735
        %v1745 = vshrl.u32 2102212464, %v1736
        %v1746 = vor.u32 %v1744, %v1745
        %v1747 = vshll.u32 2102212464, %v1735
        %v1748 = vshrl.u32 920167782, %v1736
        %v1749 = vor.u32 %v1747, %v1748
        %v1750 = vshll.u32 920167782, %v1735
        %v1751 = vshrl.u32 1326507024, %v1736
        %v1752 = vor.u32 %v1750, %v1751
        %vm1753 = vcmp.lt.s32.totalorder %v1734, 1
        %vm1754 = vcmp.lt.s32.totalorder %v1734, 2
        %vm1755 = vcmp.lt.s32.totalorder %v1734, 3
        %vm1756 = vcmp.lt.s32.totalorder %v1734, 4
        %v1757 = vsel %vm1753, %v1737, %v1740
        %v1758 = vsel %vm1756, %v1746, 2102212464
        %v1759 = vsel %vm1755, %v1743, %v1758
        %v1760 = vsel %vm1754, %v1757, %v1759
        %v1761 = vsel %vm1753, %v1740, %v1743
        %v1762 = vsel %vm1756, %v1749, 920167782
        %v1763 = vsel %vm1755, %v1746, %v1762
        %v1764 = vsel %vm1754, %v1761, %v1763
        %v1765 = vsel %vm1753, %v1743, %v1746
        %v1766 = vsel %vm1756, %v1752, 1326507024
        %v1767 = vsel %vm1755, %v1749, %v1766
        %v1768 = vsel %vm1754, %v1765, %v1767
        %v1769 = vshll.u32 %v1729, 8
        %v1770 = vmul.u32.u64.compose %v1769, %v1768
        %v1771 = vextract.low.u32 %v1770
        %v1772 = vextract.high.u32 %v1770
        %v1773 = vmul.u32.u64.compose %v1769, %v1764
        %v1774 = vextract.low.u32 %v1773
        %v1775 = vextract.high.u32 %v1773
        %v1776 = vmul.u32 %v1769, %v1760
        %v1777 = vadd.s32 %v1772, %v1774
        %vm1778 = vc.u32 %v1772, %v1774
        %v1779 = vadd.s32 %v1775, 1
        %v1780 = vsel %vm1778, %v1779, %v1775
        %v1781 = vadd.s32 %v1776, %v1780
        %v1782 = vadd.s32 %v1781, 536870912
        %v1783 = vshrl.u32 %v1782, 30
        %v1784 = vshll.u32 %v1783, 30
        %v1785 = vsub.s32 %v1781, %v1784
        %vm1786 = vcmp.lt.s32.totalorder %v1785, 0
        %v1787 = vsub.s32 0, %v1785
        %v1788 = vsel %vm1786, %v1787, %v1785
        %v1789 = vclz %v1788
        %v1790 = vsub.s32 %v1789, 2
        %vm1791 = vcmp.gt.s32.totalorder 0, %v1790
        %v1792 = vsel %vm1791, 0, %v1790
        %v1793 = vsub.s32 32, %v1792
        %v1794 = vshll.u32 %v1785, %v1792
        %v1795 = vshrl.u32 %v1777, %v1793
        %v1796 = vor.u32 %v1794, %v1795
        %v1797 = vsub.s32 4294967266, %v1792
        %v1798 = vadd.s32 %v1797, 127
        %v1799 = vshll.u32 %v1798, 23
        %v1800 = vor.u32 4788187, %v1799
        %v1801 = vand.u32 2147483647, %v1800
        %v1803 = vcvt.s32.f32 %v1796
        %v1804 = vmul.f32 %v1803, %v1801
        %v1805 = vxor.u32 %v1804, 2147483648
        %v1806 = vsel %vm1723, %v1805, %v1804
        %v1807 = vsub.s32 4, %v1783
        %v1808 = vsel %vm1723, %v1807, %v1783
        %v1809 = vsel %vm1722, %v1087, %v1806
        %v1810 = vsel %vm1722, 0, %v1808
        %v1811 = vcosq.f32.pop %v1809
        %v1812 = vsinq.f32.pop %v1809
        %vm1813 = vweird.f32 %v1087
        %v1814 = vadd.s32 %v1810, 3
        %v1815 = vand.u32 %v1814, 3
        %vm1816 = vcmp.lt.s32.totalorder %v1815, 2
        %vm1817 = vcmp.eq.s32.totalorder %v1815, 0
        %v1818 = vxor.u32 %v1812, 2147483648
        %v1819 = vsel %vm1817, %v1811, %v1818
        %vm1820 = vcmp.eq.s32.totalorder %v1815, 2
        %v1821 = vxor.u32 %v1811, 2147483648
        %v1822 = vsel %vm1820, %v1821, %v1812
        %v1823 = vsel %vm1816, %v1819, %v1822
        %v1824 = vsel %vm1813, nan, %v1823
        %v1825 = vand.u32 2147483647, %v1088
        %vm1826 = vcmp.le.f32.partialorder %v1825, 0.7853982
        %vm1827 = vcmp.lt.s32.totalorder %v1088, 0
        %v1828 = vand.u32 %v1088, 2139095040
        %v1829 = vshrl.u32 %v1828, 23
        %v1830 = vsub.s32 %v1829, 127
        %v1831 = vand.u32 2147483647, %v1088
        %v1832 = vand.u32 %v1831, 8388607
        %v1833 = vor.u32 %v1832, 8388608
        %v1834 = vsub.s32 0, %v1833
        %v1835 = vadd.s32 %v1830, 1
        %vm1836 = vcmp.gt.s32.totalorder %v1835, 0
        %v1837 = vsel %vm1836, %v1835, 0
        %v1838 = vshrl.u32 %v1837, 5
        %v1839 = vand.u32 %v1837, 31
        %v1840 = vsub.s32 32, %v1839
        %v1841 = vshrl.u32 683565275, %v1840
        %v1842 = vshll.u32 683565275, %v1839
        %v1843 = vshrl.u32 2475754826, %v1840
        %v1844 = vor.u32 %v1842, %v1843
        %v1845 = vshll.u32 2475754826, %v1839
        %v1846 = vshrl.u32 2131351028, %v1840
        %v1847 = vor.u32 %v1845, %v1846
        %v1848 = vshll.u32 2131351028, %v1839
        %v1849 = vshrl.u32 2102212464, %v1840
        %v1850 = vor.u32 %v1848, %v1849
        %v1851 = vshll.u32 2102212464, %v1839
        %v1852 = vshrl.u32 920167782, %v1840
        %v1853 = vor.u32 %v1851, %v1852
        %v1854 = vshll.u32 920167782, %v1839
        %v1855 = vshrl.u32 1326507024, %v1840
        %v1856 = vor.u32 %v1854, %v1855
        %vm1857 = vcmp.lt.s32.totalorder %v1838, 1
        %vm1858 = vcmp.lt.s32.totalorder %v1838, 2
        %vm1859 = vcmp.lt.s32.totalorder %v1838, 3
        %vm1860 = vcmp.lt.s32.totalorder %v1838, 4
        %v1861 = vsel %vm1857, %v1841, %v1844
        %v1862 = vsel %vm1860, %v1850, 2102212464
        %v1863 = vsel %vm1859, %v1847, %v1862
        %v1864 = vsel %vm1858, %v1861, %v1863
        %v1865 = vsel %vm1857, %v1844, %v1847
        %v1866 = vsel %vm1860, %v1853, 920167782
        %v1867 = vsel %vm1859, %v1850, %v1866
        %v1868 = vsel %vm1858, %v1865, %v1867
        %v1869 = vsel %vm1857, %v1847, %v1850
        %v1870 = vsel %vm1860, %v1856, 1326507024
        %v1871 = vsel %vm1859, %v1853, %v1870
        %v1872 = vsel %vm1858, %v1869, %v1871
        %v1873 = vshll.u32 %v1833, 8
        %v1874 = vmul.u32.u64.compose %v1873, %v1872
        %v1875 = vextract.low.u32 %v1874
        %v1876 = vextract.high.u32 %v1874
        %v1877 = vmul.u32.u64.compose %v1873, %v1868
        %v1878 = vextract.low.u32 %v1877
        %v1879 = vextract.high.u32 %v1877
        %v1880 = vmul.u32 %v1873, %v1864
        %v1881 = vadd.s32 %v1876, %v1878
        %vm1882 = vc.u32 %v1876, %v1878
        %v1883 = vadd.s32 %v1879, 1
        %v1884 = vsel %vm1882, %v1883, %v1879
        %v1885 = vadd.s32 %v1880, %v1884
        %v1886 = vadd.s32 %v1885, 536870912
        %v1887 = vshrl.u32 %v1886, 30
        %v1888 = vshll.u32 %v1887, 30
        %v1889 = vsub.s32 %v1885, %v1888
        %vm1890 = vcmp.lt.s32.totalorder %v1889, 0
        %v1891 = vsub.s32 0, %v1889
        %v1892 = vsel %vm1890, %v1891, %v1889
        %v1893 = vclz %v1892
        %v1894 = vsub.s32 %v1893, 2
        %vm1895 = vcmp.gt.s32.totalorder 0, %v1894
        %v1896 = vsel %vm1895, 0, %v1894
        %v1897 = vsub.s32 32, %v1896
        %v1898 = vshll.u32 %v1889, %v1896
        %v1899 = vshrl.u32 %v1881, %v1897
        %v1900 = vor.u32 %v1898, %v1899
        %v1901 = vsub.s32 4294967266, %v1896
        %v1902 = vadd.s32 %v1901, 127
        %v1903 = vshll.u32 %v1902, 23
        %v1904 = vor.u32 4788187, %v1903
        %v1905 = vand.u32 2147483647, %v1904
        %v1907 = vcvt.s32.f32 %v1900
        %v1908 = vmul.f32 %v1907, %v1905
        %v1909 = vxor.u32 %v1908, 2147483648
        %v1910 = vsel %vm1827, %v1909, %v1908
        %v1911 = vsub.s32 4, %v1887
        %v1912 = vsel %vm1827, %v1911, %v1887
        %v1913 = vsel %vm1826, %v1088, %v1910
        %v1914 = vsel %vm1826, 0, %v1912
        %v1915 = vcosq.f32.pop %v1913
        %v1916 = vsinq.f32.pop %v1913
        %vm1917 = vweird.f32 %v1088
        %v1918 = vadd.s32 %v1914, 3
        %v1919 = vand.u32 %v1918, 3
        %vm1920 = vcmp.lt.s32.totalorder %v1919, 2
        %vm1921 = vcmp.eq.s32.totalorder %v1919, 0
        %v1922 = vxor.u32 %v1916, 2147483648
        %v1923 = vsel %vm1921, %v1915, %v1922
        %vm1924 = vcmp.eq.s32.totalorder %v1919, 2
        %v1925 = vxor.u32 %v1915, 2147483648
        %v1926 = vsel %vm1924, %v1925, %v1916
        %v1927 = vsel %vm1920, %v1923, %v1926
        %v1928 = vsel %vm1917, nan, %v1927
        %v1929 = vand.u32 2147483647, %v1089
        %vm1930 = vcmp.le.f32.partialorder %v1929, 0.7853982
        %vm1931 = vcmp.lt.s32.totalorder %v1089, 0
        %v1932 = vand.u32 %v1089, 2139095040
        %v1933 = vshrl.u32 %v1932, 23
        %v1934 = vsub.s32 %v1933, 127
        %v1935 = vand.u32 2147483647, %v1089
        %v1936 = vand.u32 %v1935, 8388607
        %v1937 = vor.u32 %v1936, 8388608
        %v1938 = vsub.s32 0, %v1937
        %v1939 = vadd.s32 %v1934, 1
        %vm1940 = vcmp.gt.s32.totalorder %v1939, 0
        %v1941 = vsel %vm1940, %v1939, 0
        %v1942 = vshrl.u32 %v1941, 5
        %v1943 = vand.u32 %v1941, 31
        %v1944 = vsub.s32 32, %v1943
        %v1945 = vshrl.u32 683565275, %v1944
        %v1946 = vshll.u32 683565275, %v1943
        %v1947 = vshrl.u32 2475754826, %v1944
        %v1948 = vor.u32 %v1946, %v1947
        %v1949 = vshll.u32 2475754826, %v1943
        %v1950 = vshrl.u32 2131351028, %v1944
        %v1951 = vor.u32 %v1949, %v1950
        %v1952 = vshll.u32 2131351028, %v1943
        %v1953 = vshrl.u32 2102212464, %v1944
        %v1954 = vor.u32 %v1952, %v1953
        %v1955 = vshll.u32 2102212464, %v1943
        %v1956 = vshrl.u32 920167782, %v1944
        %v1957 = vor.u32 %v1955, %v1956
        %v1958 = vshll.u32 920167782, %v1943
        %v1959 = vshrl.u32 1326507024, %v1944
        %v1960 = vor.u32 %v1958, %v1959
        %vm1961 = vcmp.lt.s32.totalorder %v1942, 1
        %vm1962 = vcmp.lt.s32.totalorder %v1942, 2
        %vm1963 = vcmp.lt.s32.totalorder %v1942, 3
        %vm1964 = vcmp.lt.s32.totalorder %v1942, 4
        %v1965 = vsel %vm1961, %v1945, %v1948
        %v1966 = vsel %vm1964, %v1954, 2102212464
        %v1967 = vsel %vm1963, %v1951, %v1966
        %v1968 = vsel %vm1962, %v1965, %v1967
        %v1969 = vsel %vm1961, %v1948, %v1951
        %v1970 = vsel %vm1964, %v1957, 920167782
        %v1971 = vsel %vm1963, %v1954, %v1970
        %v1972 = vsel %vm1962, %v1969, %v1971
        %v1973 = vsel %vm1961, %v1951, %v1954
        %v1974 = vsel %vm1964, %v1960, 1326507024
        %v1975 = vsel %vm1963, %v1957, %v1974
        %v1976 = vsel %vm1962, %v1973, %v1975
        %v1977 = vshll.u32 %v1937, 8
        %v1978 = vmul.u32.u64.compose %v1977, %v1976
        %v1979 = vextract.low.u32 %v1978
        %v1980 = vextract.high.u32 %v1978
        %v1981 = vmul.u32.u64.compose %v1977, %v1972
        %v1982 = vextract.low.u32 %v1981
        %v1983 = vextract.high.u32 %v1981
        %v1984 = vmul.u32 %v1977, %v1968
        %v1985 = vadd.s32 %v1980, %v1982
        %vm1986 = vc.u32 %v1980, %v1982
        %v1987 = vadd.s32 %v1983, 1
        %v1988 = vsel %vm1986, %v1987, %v1983
        %v1989 = vadd.s32 %v1984, %v1988
        %v1990 = vadd.s32 %v1989, 536870912
        %v1991 = vshrl.u32 %v1990, 30
        %v1992 = vshll.u32 %v1991, 30
        %v1993 = vsub.s32 %v1989, %v1992
        %vm1994 = vcmp.lt.s32.totalorder %v1993, 0
        %v1995 = vsub.s32 0, %v1993
        %v1996 = vsel %vm1994, %v1995, %v1993
        %v1997 = vclz %v1996
        %v1998 = vsub.s32 %v1997, 2
        %vm1999 = vcmp.gt.s32.totalorder 0, %v1998
        %v2000 = vsel %vm1999, 0, %v1998
        %v2001 = vsub.s32 32, %v2000
        %v2002 = vshll.u32 %v1993, %v2000
        %v2003 = vshrl.u32 %v1985, %v2001
        %v2004 = vor.u32 %v2002, %v2003
        %v2005 = vsub.s32 4294967266, %v2000
        %v2006 = vadd.s32 %v2005, 127
        %v2007 = vshll.u32 %v2006, 23
        %v2008 = vor.u32 4788187, %v2007
        %v2009 = vand.u32 2147483647, %v2008
        %v2011 = vcvt.s32.f32 %v2004
        %v2012 = vmul.f32 %v2011, %v2009
        %v2013 = vxor.u32 %v2012, 2147483648
        %v2014 = vsel %vm1931, %v2013, %v2012
        %v2015 = vsub.s32 4, %v1991
        %v2016 = vsel %vm1931, %v2015, %v1991
        %v2017 = vsel %vm1930, %v1089, %v2014
        %v2018 = vsel %vm1930, 0, %v2016
        %v2019 = vcosq.f32.pop %v2017
        %v2020 = vsinq.f32.pop %v2017
        %vm2021 = vweird.f32 %v1089
        %v2022 = vadd.s32 %v2018, 3
        %v2023 = vand.u32 %v2022, 3
        %vm2024 = vcmp.lt.s32.totalorder %v2023, 2
        %vm2025 = vcmp.eq.s32.totalorder %v2023, 0
        %v2026 = vxor.u32 %v2020, 2147483648
        %v2027 = vsel %vm2025, %v2019, %v2026
        %vm2028 = vcmp.eq.s32.totalorder %v2023, 2
        %v2029 = vxor.u32 %v2019, 2147483648
        %v2030 = vsel %vm2028, %v2029, %v2020
        %v2031 = vsel %vm2024, %v2027, %v2030
        %v2032 = vsel %vm2021, nan, %v2031
        %v2033 = vand.u32 2147483647, %v1090
        %vm2034 = vcmp.le.f32.partialorder %v2033, 0.7853982
        %vm2035 = vcmp.lt.s32.totalorder %v1090, 0
        %v2036 = vand.u32 %v1090, 2139095040
        %v2037 = vshrl.u32 %v2036, 23
        %v2038 = vsub.s32 %v2037, 127
        %v2039 = vand.u32 2147483647, %v1090
        %v2040 = vand.u32 %v2039, 8388607
        %v2041 = vor.u32 %v2040, 8388608
        %v2042 = vsub.s32 0, %v2041
        %v2043 = vadd.s32 %v2038, 1
        %vm2044 = vcmp.gt.s32.totalorder %v2043, 0
        %v2045 = vsel %vm2044, %v2043, 0
        %v2046 = vshrl.u32 %v2045, 5
        %v2047 = vand.u32 %v2045, 31
        %v2048 = vsub.s32 32, %v2047
        %v2049 = vshrl.u32 683565275, %v2048
        %v2050 = vshll.u32 683565275, %v2047
        %v2051 = vshrl.u32 2475754826, %v2048
        %v2052 = vor.u32 %v2050, %v2051
        %v2053 = vshll.u32 2475754826, %v2047
        %v2054 = vshrl.u32 2131351028, %v2048
        %v2055 = vor.u32 %v2053, %v2054
        %v2056 = vshll.u32 2131351028, %v2047
        %v2057 = vshrl.u32 2102212464, %v2048
        %v2058 = vor.u32 %v2056, %v2057
        %v2059 = vshll.u32 2102212464, %v2047
        %v2060 = vshrl.u32 920167782, %v2048
        %v2061 = vor.u32 %v2059, %v2060
        %v2062 = vshll.u32 920167782, %v2047
        %v2063 = vshrl.u32 1326507024, %v2048
        %v2064 = vor.u32 %v2062, %v2063
        %vm2065 = vcmp.lt.s32.totalorder %v2046, 1
        %vm2066 = vcmp.lt.s32.totalorder %v2046, 2
        %vm2067 = vcmp.lt.s32.totalorder %v2046, 3
        %vm2068 = vcmp.lt.s32.totalorder %v2046, 4
        %v2069 = vsel %vm2065, %v2049, %v2052
        %v2070 = vsel %vm2068, %v2058, 2102212464
        %v2071 = vsel %vm2067, %v2055, %v2070
        %v2072 = vsel %vm2066, %v2069, %v2071
        %v2073 = vsel %vm2065, %v2052, %v2055
        %v2074 = vsel %vm2068, %v2061, 920167782
        %v2075 = vsel %vm2067, %v2058, %v2074
        %v2076 = vsel %vm2066, %v2073, %v2075
        %v2077 = vsel %vm2065, %v2055, %v2058
        %v2078 = vsel %vm2068, %v2064, 1326507024
        %v2079 = vsel %vm2067, %v2061, %v2078
        %v2080 = vsel %vm2066, %v2077, %v2079
        %v2081 = vshll.u32 %v2041, 8
        %v2082 = vmul.u32.u64.compose %v2081, %v2080
        %v2083 = vextract.low.u32 %v2082
        %v2084 = vextract.high.u32 %v2082
        %v2085 = vmul.u32.u64.compose %v2081, %v2076
        %v2086 = vextract.low.u32 %v2085
        %v2087 = vextract.high.u32 %v2085
        %v2088 = vmul.u32 %v2081, %v2072
        %v2089 = vadd.s32 %v2084, %v2086
        %vm2090 = vc.u32 %v2084, %v2086
        %v2091 = vadd.s32 %v2087, 1
        %v2092 = vsel %vm2090, %v2091, %v2087
        %v2093 = vadd.s32 %v2088, %v2092
        %v2094 = vadd.s32 %v2093, 536870912
        %v2095 = vshrl.u32 %v2094, 30
        %v2096 = vshll.u32 %v2095, 30
        %v2097 = vsub.s32 %v2093, %v2096
        %vm2098 = vcmp.lt.s32.totalorder %v2097, 0
        %v2099 = vsub.s32 0, %v2097
        %v2100 = vsel %vm2098, %v2099, %v2097
        %v2101 = vclz %v2100
        %v2102 = vsub.s32 %v2101, 2
        %vm2103 = vcmp.gt.s32.totalorder 0, %v2102
        %v2104 = vsel %vm2103, 0, %v2102
        %v2105 = vsub.s32 32, %v2104
        %v2106 = vshll.u32 %v2097, %v2104
        %v2107 = vshrl.u32 %v2089, %v2105
        %v2108 = vor.u32 %v2106, %v2107
        %v2109 = vsub.s32 4294967266, %v2104
        %v2110 = vadd.s32 %v2109, 127
        %v2111 = vshll.u32 %v2110, 23
        %v2112 = vor.u32 4788187, %v2111
        %v2113 = vand.u32 2147483647, %v2112
        %v2115 = vcvt.s32.f32 %v2108
        %v2116 = vmul.f32 %v2115, %v2113
        %v2117 = vxor.u32 %v2116, 2147483648
        %v2118 = vsel %vm2035, %v2117, %v2116
        %v2119 = vsub.s32 4, %v2095
        %v2120 = vsel %vm2035, %v2119, %v2095
        %v2121 = vsel %vm2034, %v1090, %v2118
        %v2122 = vsel %vm2034, 0, %v2120
        %v2123 = vcosq.f32.pop %v2121
        %v2124 = vsinq.f32.pop %v2121
        %vm2125 = vweird.f32 %v1090
        %v2126 = vadd.s32 %v2122, 3
        %v2127 = vand.u32 %v2126, 3
        %vm2128 = vcmp.lt.s32.totalorder %v2127, 2
        %vm2129 = vcmp.eq.s32.totalorder %v2127, 0
        %v2130 = vxor.u32 %v2124, 2147483648
        %v2131 = vsel %vm2129, %v2123, %v2130
        %vm2132 = vcmp.eq.s32.totalorder %v2127, 2
        %v2133 = vxor.u32 %v2123, 2147483648
        %v2134 = vsel %vm2132, %v2133, %v2124
        %v2135 = vsel %vm2128, %v2131, %v2134
        %v2136 = vsel %vm2125, nan, %v2135
        %v2137 = vand.u32 2147483647, %v1091
        %vm2138 = vcmp.le.f32.partialorder %v2137, 0.7853982
        %vm2139 = vcmp.lt.s32.totalorder %v1091, 0
        %v2140 = vand.u32 %v1091, 2139095040
        %v2141 = vshrl.u32 %v2140, 23
        %v2142 = vsub.s32 %v2141, 127
        %v2143 = vand.u32 2147483647, %v1091
        %v2144 = vand.u32 %v2143, 8388607
        %v2145 = vor.u32 %v2144, 8388608
        %v2146 = vsub.s32 0, %v2145
        %v2147 = vadd.s32 %v2142, 1
        %vm2148 = vcmp.gt.s32.totalorder %v2147, 0
        %v2149 = vsel %vm2148, %v2147, 0
        %v2150 = vshrl.u32 %v2149, 5
        %v2151 = vand.u32 %v2149, 31
        %v2152 = vsub.s32 32, %v2151
        %v2153 = vshrl.u32 683565275, %v2152
        %v2154 = vshll.u32 683565275, %v2151
        %v2155 = vshrl.u32 2475754826, %v2152
        %v2156 = vor.u32 %v2154, %v2155
        %v2157 = vshll.u32 2475754826, %v2151
        %v2158 = vshrl.u32 2131351028, %v2152
        %v2159 = vor.u32 %v2157, %v2158
        %v2160 = vshll.u32 2131351028, %v2151
        %v2161 = vshrl.u32 2102212464, %v2152
        %v2162 = vor.u32 %v2160, %v2161
        %v2163 = vshll.u32 2102212464, %v2151
        %v2164 = vshrl.u32 920167782, %v2152
        %v2165 = vor.u32 %v2163, %v2164
        %v2166 = vshll.u32 920167782, %v2151
        %v2167 = vshrl.u32 1326507024, %v2152
        %v2168 = vor.u32 %v2166, %v2167
        %vm2169 = vcmp.lt.s32.totalorder %v2150, 1
        %vm2170 = vcmp.lt.s32.totalorder %v2150, 2
        %vm2171 = vcmp.lt.s32.totalorder %v2150, 3
        %vm2172 = vcmp.lt.s32.totalorder %v2150, 4
        %v2173 = vsel %vm2169, %v2153, %v2156
        %v2174 = vsel %vm2172, %v2162, 2102212464
        %v2175 = vsel %vm2171, %v2159, %v2174
        %v2176 = vsel %vm2170, %v2173, %v2175
        %v2177 = vsel %vm2169, %v2156, %v2159
        %v2178 = vsel %vm2172, %v2165, 920167782
        %v2179 = vsel %vm2171, %v2162, %v2178
        %v2180 = vsel %vm2170, %v2177, %v2179
        %v2181 = vsel %vm2169, %v2159, %v2162
        %v2182 = vsel %vm2172, %v2168, 1326507024
        %v2183 = vsel %vm2171, %v2165, %v2182
        %v2184 = vsel %vm2170, %v2181, %v2183
        %v2185 = vshll.u32 %v2145, 8
        %v2186 = vmul.u32.u64.compose %v2185, %v2184
        %v2187 = vextract.low.u32 %v2186
        %v2188 = vextract.high.u32 %v2186
        %v2189 = vmul.u32.u64.compose %v2185, %v2180
        %v2190 = vextract.low.u32 %v2189
        %v2191 = vextract.high.u32 %v2189
        %v2192 = vmul.u32 %v2185, %v2176
        %v2193 = vadd.s32 %v2188, %v2190
        %vm2194 = vc.u32 %v2188, %v2190
        %v2195 = vadd.s32 %v2191, 1
        %v2196 = vsel %vm2194, %v2195, %v2191
        %v2197 = vadd.s32 %v2192, %v2196
        %v2198 = vadd.s32 %v2197, 536870912
        %v2199 = vshrl.u32 %v2198, 30
        %v2200 = vshll.u32 %v2199, 30
        %v2201 = vsub.s32 %v2197, %v2200
        %vm2202 = vcmp.lt.s32.totalorder %v2201, 0
        %v2203 = vsub.s32 0, %v2201
        %v2204 = vsel %vm2202, %v2203, %v2201
        %v2205 = vclz %v2204
        %v2206 = vsub.s32 %v2205, 2
        %vm2207 = vcmp.gt.s32.totalorder 0, %v2206
        %v2208 = vsel %vm2207, 0, %v2206
        %v2209 = vsub.s32 32, %v2208
        %v2210 = vshll.u32 %v2201, %v2208
        %v2211 = vshrl.u32 %v2193, %v2209
        %v2212 = vor.u32 %v2210, %v2211
        %v2213 = vsub.s32 4294967266, %v2208
        %v2214 = vadd.s32 %v2213, 127
        %v2215 = vshll.u32 %v2214, 23
        %v2216 = vor.u32 4788187, %v2215
        %v2217 = vand.u32 2147483647, %v2216
        %v2219 = vcvt.s32.f32 %v2212
        %v2220 = vmul.f32 %v2219, %v2217
        %v2221 = vxor.u32 %v2220, 2147483648
        %v2222 = vsel %vm2139, %v2221, %v2220
        %v2223 = vsub.s32 4, %v2199
        %v2224 = vsel %vm2139, %v2223, %v2199
        %v2225 = vsel %vm2138, %v1091, %v2222
        %v2226 = vsel %vm2138, 0, %v2224
        %v2227 = vcosq.f32.pop %v2225
        %v2228 = vsinq.f32.pop %v2225
        %vm2229 = vweird.f32 %v1091
        %v2230 = vadd.s32 %v2226, 3
        %v2231 = vand.u32 %v2230, 3
        %vm2232 = vcmp.lt.s32.totalorder %v2231, 2
        %vm2233 = vcmp.eq.s32.totalorder %v2231, 0
        %v2234 = vxor.u32 %v2228, 2147483648
        %v2235 = vsel %vm2233, %v2227, %v2234
        %vm2236 = vcmp.eq.s32.totalorder %v2231, 2
        %v2237 = vxor.u32 %v2227, 2147483648
        %v2238 = vsel %vm2236, %v2237, %v2228
        %v2239 = vsel %vm2232, %v2235, %v2238
        %v2240 = vsel %vm2229, nan, %v2239
        %v2241 = vand.u32 2147483647, %v1092
        %vm2242 = vcmp.le.f32.partialorder %v2241, 0.7853982
        %vm2243 = vcmp.lt.s32.totalorder %v1092, 0
        %v2244 = vand.u32 %v1092, 2139095040
        %v2245 = vshrl.u32 %v2244, 23
        %v2246 = vsub.s32 %v2245, 127
        %v2247 = vand.u32 2147483647, %v1092
        %v2248 = vand.u32 %v2247, 8388607
        %v2249 = vor.u32 %v2248, 8388608
        %v2250 = vsub.s32 0, %v2249
        %v2251 = vadd.s32 %v2246, 1
        %vm2252 = vcmp.gt.s32.totalorder %v2251, 0
        %v2253 = vsel %vm2252, %v2251, 0
        %v2254 = vshrl.u32 %v2253, 5
        %v2255 = vand.u32 %v2253, 31
        %v2256 = vsub.s32 32, %v2255
        %v2257 = vshrl.u32 683565275, %v2256
        %v2258 = vshll.u32 683565275, %v2255
        %v2259 = vshrl.u32 2475754826, %v2256
        %v2260 = vor.u32 %v2258, %v2259
        %v2261 = vshll.u32 2475754826, %v2255
        %v2262 = vshrl.u32 2131351028, %v2256
        %v2263 = vor.u32 %v2261, %v2262
        %v2264 = vshll.u32 2131351028, %v2255
        %v2265 = vshrl.u32 2102212464, %v2256
        %v2266 = vor.u32 %v2264, %v2265
        %v2267 = vshll.u32 2102212464, %v2255
        %v2268 = vshrl.u32 920167782, %v2256
        %v2269 = vor.u32 %v2267, %v2268
        %v2270 = vshll.u32 920167782, %v2255
        %v2271 = vshrl.u32 1326507024, %v2256
        %v2272 = vor.u32 %v2270, %v2271
        %vm2273 = vcmp.lt.s32.totalorder %v2254, 1
        %vm2274 = vcmp.lt.s32.totalorder %v2254, 2
        %vm2275 = vcmp.lt.s32.totalorder %v2254, 3
        %vm2276 = vcmp.lt.s32.totalorder %v2254, 4
        %v2277 = vsel %vm2273, %v2257, %v2260
        %v2278 = vsel %vm2276, %v2266, 2102212464
        %v2279 = vsel %vm2275, %v2263, %v2278
        %v2280 = vsel %vm2274, %v2277, %v2279
        %v2281 = vsel %vm2273, %v2260, %v2263
        %v2282 = vsel %vm2276, %v2269, 920167782
        %v2283 = vsel %vm2275, %v2266, %v2282
        %v2284 = vsel %vm2274, %v2281, %v2283
        %v2285 = vsel %vm2273, %v2263, %v2266
        %v2286 = vsel %vm2276, %v2272, 1326507024
        %v2287 = vsel %vm2275, %v2269, %v2286
        %v2288 = vsel %vm2274, %v2285, %v2287
        %v2289 = vshll.u32 %v2249, 8
        %v2290 = vmul.u32.u64.compose %v2289, %v2288
        %v2291 = vextract.low.u32 %v2290
        %v2292 = vextract.high.u32 %v2290
        %v2293 = vmul.u32.u64.compose %v2289, %v2284
        %v2294 = vextract.low.u32 %v2293
        %v2295 = vextract.high.u32 %v2293
        %v2296 = vmul.u32 %v2289, %v2280
        %v2297 = vadd.s32 %v2292, %v2294
        %vm2298 = vc.u32 %v2292, %v2294
        %v2299 = vadd.s32 %v2295, 1
        %v2300 = vsel %vm2298, %v2299, %v2295
        %v2301 = vadd.s32 %v2296, %v2300
        %v2302 = vadd.s32 %v2301, 536870912
        %v2303 = vshrl.u32 %v2302, 30
        %v2304 = vshll.u32 %v2303, 30
        %v2305 = vsub.s32 %v2301, %v2304
        %vm2306 = vcmp.lt.s32.totalorder %v2305, 0
        %v2307 = vsub.s32 0, %v2305
        %v2308 = vsel %vm2306, %v2307, %v2305
        %v2309 = vclz %v2308
        %v2310 = vsub.s32 %v2309, 2
        %vm2311 = vcmp.gt.s32.totalorder 0, %v2310
        %v2312 = vsel %vm2311, 0, %v2310
        %v2313 = vsub.s32 32, %v2312
        %v2314 = vshll.u32 %v2305, %v2312
        %v2315 = vshrl.u32 %v2297, %v2313
        %v2316 = vor.u32 %v2314, %v2315
        %v2317 = vsub.s32 4294967266, %v2312
        %v2318 = vadd.s32 %v2317, 127
        %v2319 = vshll.u32 %v2318, 23
        %v2320 = vor.u32 4788187, %v2319
        %v2321 = vand.u32 2147483647, %v2320
        %v2323 = vcvt.s32.f32 %v2316
        %v2324 = vmul.f32 %v2323, %v2321
        %v2325 = vxor.u32 %v2324, 2147483648
        %v2326 = vsel %vm2243, %v2325, %v2324
        %v2327 = vsub.s32 4, %v2303
        %v2328 = vsel %vm2243, %v2327, %v2303
        %v2329 = vsel %vm2242, %v1092, %v2326
        %v2330 = vsel %vm2242, 0, %v2328
        %v2331 = vcosq.f32.pop %v2329
        %v2332 = vsinq.f32.pop %v2329
        %vm2333 = vweird.f32 %v1092
        %v2334 = vadd.s32 %v2330, 3
        %v2335 = vand.u32 %v2334, 3
        %vm2336 = vcmp.lt.s32.totalorder %v2335, 2
        %vm2337 = vcmp.eq.s32.totalorder %v2335, 0
        %v2338 = vxor.u32 %v2332, 2147483648
        %v2339 = vsel %vm2337, %v2331, %v2338
        %vm2340 = vcmp.eq.s32.totalorder %v2335, 2
        %v2341 = vxor.u32 %v2331, 2147483648
        %v2342 = vsel %vm2340, %v2341, %v2332
        %v2343 = vsel %vm2336, %v2339, %v2342
        %v2344 = vsel %vm2333, nan, %v2343
        %v2345 = vand.u32 2147483647, %v1093
        %vm2346 = vcmp.le.f32.partialorder %v2345, 0.7853982
        %vm2347 = vcmp.lt.s32.totalorder %v1093, 0
        %v2348 = vand.u32 %v1093, 2139095040
        %v2349 = vshrl.u32 %v2348, 23
        %v2350 = vsub.s32 %v2349, 127
        %v2351 = vand.u32 2147483647, %v1093
        %v2352 = vand.u32 %v2351, 8388607
        %v2353 = vor.u32 %v2352, 8388608
        %v2354 = vsub.s32 0, %v2353
        %v2355 = vadd.s32 %v2350, 1
        %vm2356 = vcmp.gt.s32.totalorder %v2355, 0
        %v2357 = vsel %vm2356, %v2355, 0
        %v2358 = vshrl.u32 %v2357, 5
        %v2359 = vand.u32 %v2357, 31
        %v2360 = vsub.s32 32, %v2359
        %v2361 = vshrl.u32 683565275, %v2360
        %v2362 = vshll.u32 683565275, %v2359
        %v2363 = vshrl.u32 2475754826, %v2360
        %v2364 = vor.u32 %v2362, %v2363
        %v2365 = vshll.u32 2475754826, %v2359
        %v2366 = vshrl.u32 2131351028, %v2360
        %v2367 = vor.u32 %v2365, %v2366
        %v2368 = vshll.u32 2131351028, %v2359
        %v2369 = vshrl.u32 2102212464, %v2360
        %v2370 = vor.u32 %v2368, %v2369
        %v2371 = vshll.u32 2102212464, %v2359
        %v2372 = vshrl.u32 920167782, %v2360
        %v2373 = vor.u32 %v2371, %v2372
        %v2374 = vshll.u32 920167782, %v2359
        %v2375 = vshrl.u32 1326507024, %v2360
        %v2376 = vor.u32 %v2374, %v2375
        %vm2377 = vcmp.lt.s32.totalorder %v2358, 1
        %vm2378 = vcmp.lt.s32.totalorder %v2358, 2
        %vm2379 = vcmp.lt.s32.totalorder %v2358, 3
        %vm2380 = vcmp.lt.s32.totalorder %v2358, 4
        %v2381 = vsel %vm2377, %v2361, %v2364
        %v2382 = vsel %vm2380, %v2370, 2102212464
        %v2383 = vsel %vm2379, %v2367, %v2382
        %v2384 = vsel %vm2378, %v2381, %v2383
        %v2385 = vsel %vm2377, %v2364, %v2367
        %v2386 = vsel %vm2380, %v2373, 920167782
        %v2387 = vsel %vm2379, %v2370, %v2386
        %v2388 = vsel %vm2378, %v2385, %v2387
        %v2389 = vsel %vm2377, %v2367, %v2370
        %v2390 = vsel %vm2380, %v2376, 1326507024
        %v2391 = vsel %vm2379, %v2373, %v2390
        %v2392 = vsel %vm2378, %v2389, %v2391
        %v2393 = vshll.u32 %v2353, 8
        %v2394 = vmul.u32.u64.compose %v2393, %v2392
        %v2395 = vextract.low.u32 %v2394
        %v2396 = vextract.high.u32 %v2394
        %v2397 = vmul.u32.u64.compose %v2393, %v2388
        %v2398 = vextract.low.u32 %v2397
        %v2399 = vextract.high.u32 %v2397
        %v2400 = vmul.u32 %v2393, %v2384
        %v2401 = vadd.s32 %v2396, %v2398
        %vm2402 = vc.u32 %v2396, %v2398
        %v2403 = vadd.s32 %v2399, 1
        %v2404 = vsel %vm2402, %v2403, %v2399
        %v2405 = vadd.s32 %v2400, %v2404
        %v2406 = vadd.s32 %v2405, 536870912
        %v2407 = vshrl.u32 %v2406, 30
        %v2408 = vshll.u32 %v2407, 30
        %v2409 = vsub.s32 %v2405, %v2408
        %vm2410 = vcmp.lt.s32.totalorder %v2409, 0
        %v2411 = vsub.s32 0, %v2409
        %v2412 = vsel %vm2410, %v2411, %v2409
        %v2413 = vclz %v2412
        %v2414 = vsub.s32 %v2413, 2
        %vm2415 = vcmp.gt.s32.totalorder 0, %v2414
        %v2416 = vsel %vm2415, 0, %v2414
        %v2417 = vsub.s32 32, %v2416
        %v2418 = vshll.u32 %v2409, %v2416
        %v2419 = vshrl.u32 %v2401, %v2417
        %v2420 = vor.u32 %v2418, %v2419
        %v2421 = vsub.s32 4294967266, %v2416
        %v2422 = vadd.s32 %v2421, 127
        %v2423 = vshll.u32 %v2422, 23
        %v2424 = vor.u32 4788187, %v2423
        %v2425 = vand.u32 2147483647, %v2424
        %v2427 = vcvt.s32.f32 %v2420
        %v2428 = vmul.f32 %v2427, %v2425
        %v2429 = vxor.u32 %v2428, 2147483648
        %v2430 = vsel %vm2347, %v2429, %v2428
        %v2431 = vsub.s32 4, %v2407
        %v2432 = vsel %vm2347, %v2431, %v2407
        %v2433 = vsel %vm2346, %v1093, %v2430
        %v2434 = vsel %vm2346, 0, %v2432
        %v2435 = vcosq.f32.pop %v2433
        %v2436 = vsinq.f32.pop %v2433
        %vm2437 = vweird.f32 %v1093
        %v2438 = vadd.s32 %v2434, 3
        %v2439 = vand.u32 %v2438, 3
        %vm2440 = vcmp.lt.s32.totalorder %v2439, 2
        %vm2441 = vcmp.eq.s32.totalorder %v2439, 0
        %v2442 = vxor.u32 %v2436, 2147483648
        %v2443 = vsel %vm2441, %v2435, %v2442
        %vm2444 = vcmp.eq.s32.totalorder %v2439, 2
        %v2445 = vxor.u32 %v2435, 2147483648
        %v2446 = vsel %vm2444, %v2445, %v2436
        %v2447 = vsel %vm2440, %v2443, %v2446
        %v2448 = vsel %vm2437, nan, %v2447
        %v2449 = vand.u32 2147483647, %v1094
        %vm2450 = vcmp.le.f32.partialorder %v2449, 0.7853982
        %vm2451 = vcmp.lt.s32.totalorder %v1094, 0
        %v2452 = vand.u32 %v1094, 2139095040
        %v2453 = vshrl.u32 %v2452, 23
        %v2454 = vsub.s32 %v2453, 127
        %v2455 = vand.u32 2147483647, %v1094
        %v2456 = vand.u32 %v2455, 8388607
        %v2457 = vor.u32 %v2456, 8388608
        %v2458 = vsub.s32 0, %v2457
        %v2459 = vadd.s32 %v2454, 1
        %vm2460 = vcmp.gt.s32.totalorder %v2459, 0
        %v2461 = vsel %vm2460, %v2459, 0
        %v2462 = vshrl.u32 %v2461, 5
        %v2463 = vand.u32 %v2461, 31
        %v2464 = vsub.s32 32, %v2463
        %v2465 = vshrl.u32 683565275, %v2464
        %v2466 = vshll.u32 683565275, %v2463
        %v2467 = vshrl.u32 2475754826, %v2464
        %v2468 = vor.u32 %v2466, %v2467
        %v2469 = vshll.u32 2475754826, %v2463
        %v2470 = vshrl.u32 2131351028, %v2464
        %v2471 = vor.u32 %v2469, %v2470
        %v2472 = vshll.u32 2131351028, %v2463
        %v2473 = vshrl.u32 2102212464, %v2464
        %v2474 = vor.u32 %v2472, %v2473
        %v2475 = vshll.u32 2102212464, %v2463
        %v2476 = vshrl.u32 920167782, %v2464
        %v2477 = vor.u32 %v2475, %v2476
        %v2478 = vshll.u32 920167782, %v2463
        %v2479 = vshrl.u32 1326507024, %v2464
        %v2480 = vor.u32 %v2478, %v2479
        %vm2481 = vcmp.lt.s32.totalorder %v2462, 1
        %vm2482 = vcmp.lt.s32.totalorder %v2462, 2
        %vm2483 = vcmp.lt.s32.totalorder %v2462, 3
        %vm2484 = vcmp.lt.s32.totalorder %v2462, 4
        %v2485 = vsel %vm2481, %v2465, %v2468
        %v2486 = vsel %vm2484, %v2474, 2102212464
        %v2487 = vsel %vm2483, %v2471, %v2486
        %v2488 = vsel %vm2482, %v2485, %v2487
        %v2489 = vsel %vm2481, %v2468, %v2471
        %v2490 = vsel %vm2484, %v2477, 920167782
        %v2491 = vsel %vm2483, %v2474, %v2490
        %v2492 = vsel %vm2482, %v2489, %v2491
        %v2493 = vsel %vm2481, %v2471, %v2474
        %v2494 = vsel %vm2484, %v2480, 1326507024
        %v2495 = vsel %vm2483, %v2477, %v2494
        %v2496 = vsel %vm2482, %v2493, %v2495
        %v2497 = vshll.u32 %v2457, 8
        %v2498 = vmul.u32.u64.compose %v2497, %v2496
        %v2499 = vextract.low.u32 %v2498
        %v2500 = vextract.high.u32 %v2498
        %v2501 = vmul.u32.u64.compose %v2497, %v2492
        %v2502 = vextract.low.u32 %v2501
        %v2503 = vextract.high.u32 %v2501
        %v2504 = vmul.u32 %v2497, %v2488
        %v2505 = vadd.s32 %v2500, %v2502
        %vm2506 = vc.u32 %v2500, %v2502
        %v2507 = vadd.s32 %v2503, 1
        %v2508 = vsel %vm2506, %v2507, %v2503
        %v2509 = vadd.s32 %v2504, %v2508
        %v2510 = vadd.s32 %v2509, 536870912
        %v2511 = vshrl.u32 %v2510, 30
        %v2512 = vshll.u32 %v2511, 30
        %v2513 = vsub.s32 %v2509, %v2512
        %vm2514 = vcmp.lt.s32.totalorder %v2513, 0
        %v2515 = vsub.s32 0, %v2513
        %v2516 = vsel %vm2514, %v2515, %v2513
        %v2517 = vclz %v2516
        %v2518 = vsub.s32 %v2517, 2
        %vm2519 = vcmp.gt.s32.totalorder 0, %v2518
        %v2520 = vsel %vm2519, 0, %v2518
        %v2521 = vsub.s32 32, %v2520
        %v2522 = vshll.u32 %v2513, %v2520
        %v2523 = vshrl.u32 %v2505, %v2521
        %v2524 = vor.u32 %v2522, %v2523
        %v2525 = vsub.s32 4294967266, %v2520
        %v2526 = vadd.s32 %v2525, 127
        %v2527 = vshll.u32 %v2526, 23
        %v2528 = vor.u32 4788187, %v2527
        %v2529 = vand.u32 2147483647, %v2528
        %v2531 = vcvt.s32.f32 %v2524
        %v2532 = vmul.f32 %v2531, %v2529
        %v2533 = vxor.u32 %v2532, 2147483648
        %v2534 = vsel %vm2451, %v2533, %v2532
        %v2535 = vsub.s32 4, %v2511
        %v2536 = vsel %vm2451, %v2535, %v2511
        %v2537 = vsel %vm2450, %v1094, %v2534
        %v2538 = vsel %vm2450, 0, %v2536
        %v2539 = vcosq.f32.pop %v2537
        %v2540 = vsinq.f32.pop %v2537
        %vm2541 = vweird.f32 %v1094
        %v2542 = vadd.s32 %v2538, 3
        %v2543 = vand.u32 %v2542, 3
        %vm2544 = vcmp.lt.s32.totalorder %v2543, 2
        %vm2545 = vcmp.eq.s32.totalorder %v2543, 0
        %v2546 = vxor.u32 %v2540, 2147483648
        %v2547 = vsel %vm2545, %v2539, %v2546
        %vm2548 = vcmp.eq.s32.totalorder %v2543, 2
        %v2549 = vxor.u32 %v2539, 2147483648
        %v2550 = vsel %vm2548, %v2549, %v2540
        %v2551 = vsel %vm2544, %v2547, %v2550
        %v2552 = vsel %vm2541, nan, %v2551
        %v2553 = vand.u32 2147483647, %v1095
        %vm2554 = vcmp.le.f32.partialorder %v2553, 0.7853982
        %vm2555 = vcmp.lt.s32.totalorder %v1095, 0
        %v2556 = vand.u32 %v1095, 2139095040
        %v2557 = vshrl.u32 %v2556, 23
        %v2558 = vsub.s32 %v2557, 127
        %v2559 = vand.u32 2147483647, %v1095
        %v2560 = vand.u32 %v2559, 8388607
        %v2561 = vor.u32 %v2560, 8388608
        %v2562 = vsub.s32 0, %v2561
        %v2563 = vadd.s32 %v2558, 1
        %vm2564 = vcmp.gt.s32.totalorder %v2563, 0
        %v2565 = vsel %vm2564, %v2563, 0
        %v2566 = vshrl.u32 %v2565, 5
        %v2567 = vand.u32 %v2565, 31
        %v2568 = vsub.s32 32, %v2567
        %v2569 = vshrl.u32 683565275, %v2568
        %v2570 = vshll.u32 683565275, %v2567
        %v2571 = vshrl.u32 2475754826, %v2568
        %v2572 = vor.u32 %v2570, %v2571
        %v2573 = vshll.u32 2475754826, %v2567
        %v2574 = vshrl.u32 2131351028, %v2568
        %v2575 = vor.u32 %v2573, %v2574
        %v2576 = vshll.u32 2131351028, %v2567
        %v2577 = vshrl.u32 2102212464, %v2568
        %v2578 = vor.u32 %v2576, %v2577
        %v2579 = vshll.u32 2102212464, %v2567
        %v2580 = vshrl.u32 920167782, %v2568
        %v2581 = vor.u32 %v2579, %v2580
        %v2582 = vshll.u32 920167782, %v2567
        %v2583 = vshrl.u32 1326507024, %v2568
        %v2584 = vor.u32 %v2582, %v2583
        %vm2585 = vcmp.lt.s32.totalorder %v2566, 1
        %vm2586 = vcmp.lt.s32.totalorder %v2566, 2
        %vm2587 = vcmp.lt.s32.totalorder %v2566, 3
        %vm2588 = vcmp.lt.s32.totalorder %v2566, 4
        %v2589 = vsel %vm2585, %v2569, %v2572
        %v2590 = vsel %vm2588, %v2578, 2102212464
        %v2591 = vsel %vm2587, %v2575, %v2590
        %v2592 = vsel %vm2586, %v2589, %v2591
        %v2593 = vsel %vm2585, %v2572, %v2575
        %v2594 = vsel %vm2588, %v2581, 920167782
        %v2595 = vsel %vm2587, %v2578, %v2594
        %v2596 = vsel %vm2586, %v2593, %v2595
        %v2597 = vsel %vm2585, %v2575, %v2578
        %v2598 = vsel %vm2588, %v2584, 1326507024
        %v2599 = vsel %vm2587, %v2581, %v2598
        %v2600 = vsel %vm2586, %v2597, %v2599
        %v2601 = vshll.u32 %v2561, 8
        %v2602 = vmul.u32.u64.compose %v2601, %v2600
        %v2603 = vextract.low.u32 %v2602
        %v2604 = vextract.high.u32 %v2602
        %v2605 = vmul.u32.u64.compose %v2601, %v2596
        %v2606 = vextract.low.u32 %v2605
        %v2607 = vextract.high.u32 %v2605
        %v2608 = vmul.u32 %v2601, %v2592
        %v2609 = vadd.s32 %v2604, %v2606
        %vm2610 = vc.u32 %v2604, %v2606
        %v2611 = vadd.s32 %v2607, 1
        %v2612 = vsel %vm2610, %v2611, %v2607
        %v2613 = vadd.s32 %v2608, %v2612
        %v2614 = vadd.s32 %v2613, 536870912
        %v2615 = vshrl.u32 %v2614, 30
        %v2616 = vshll.u32 %v2615, 30
        %v2617 = vsub.s32 %v2613, %v2616
        %vm2618 = vcmp.lt.s32.totalorder %v2617, 0
        %v2619 = vsub.s32 0, %v2617
        %v2620 = vsel %vm2618, %v2619, %v2617
        %v2621 = vclz %v2620
        %v2622 = vsub.s32 %v2621, 2
        %vm2623 = vcmp.gt.s32.totalorder 0, %v2622
        %v2624 = vsel %vm2623, 0, %v2622
        %v2625 = vsub.s32 32, %v2624
        %v2626 = vshll.u32 %v2617, %v2624
        %v2627 = vshrl.u32 %v2609, %v2625
        %v2628 = vor.u32 %v2626, %v2627
        %v2629 = vsub.s32 4294967266, %v2624
        %v2630 = vadd.s32 %v2629, 127
        %v2631 = vshll.u32 %v2630, 23
        %v2632 = vor.u32 4788187, %v2631
        %v2633 = vand.u32 2147483647, %v2632
        %v2635 = vcvt.s32.f32 %v2628
        %v2636 = vmul.f32 %v2635, %v2633
        %v2637 = vxor.u32 %v2636, 2147483648
        %v2638 = vsel %vm2555, %v2637, %v2636
        %v2639 = vsub.s32 4, %v2615
        %v2640 = vsel %vm2555, %v2639, %v2615
        %v2641 = vsel %vm2554, %v1095, %v2638
        %v2642 = vsel %vm2554, 0, %v2640
        %v2643 = vcosq.f32.pop %v2641
        %v2644 = vsinq.f32.pop %v2641
        %vm2645 = vweird.f32 %v1095
        %v2646 = vadd.s32 %v2642, 3
        %v2647 = vand.u32 %v2646, 3
        %vm2648 = vcmp.lt.s32.totalorder %v2647, 2
        %vm2649 = vcmp.eq.s32.totalorder %v2647, 0
        %v2650 = vxor.u32 %v2644, 2147483648
        %v2651 = vsel %vm2649, %v2643, %v2650
        %vm2652 = vcmp.eq.s32.totalorder %v2647, 2
        %v2653 = vxor.u32 %v2643, 2147483648
        %v2654 = vsel %vm2652, %v2653, %v2644
        %v2655 = vsel %vm2648, %v2651, %v2654
        %v2656 = vsel %vm2645, nan, %v2655
        %v2657 = vand.u32 2147483647, %v1096
        %vm2658 = vcmp.le.f32.partialorder %v2657, 0.7853982
        %vm2659 = vcmp.lt.s32.totalorder %v1096, 0
        %v2660 = vand.u32 %v1096, 2139095040
        %v2661 = vshrl.u32 %v2660, 23
        %v2662 = vsub.s32 %v2661, 127
        %v2663 = vand.u32 2147483647, %v1096
        %v2664 = vand.u32 %v2663, 8388607
        %v2665 = vor.u32 %v2664, 8388608
        %v2666 = vsub.s32 0, %v2665
        %v2667 = vadd.s32 %v2662, 1
        %vm2668 = vcmp.gt.s32.totalorder %v2667, 0
        %v2669 = vsel %vm2668, %v2667, 0
        %v2670 = vshrl.u32 %v2669, 5
        %v2671 = vand.u32 %v2669, 31
        %v2672 = vsub.s32 32, %v2671
        %v2673 = vshrl.u32 683565275, %v2672
        %v2674 = vshll.u32 683565275, %v2671
        %v2675 = vshrl.u32 2475754826, %v2672
        %v2676 = vor.u32 %v2674, %v2675
        %v2677 = vshll.u32 2475754826, %v2671
        %v2678 = vshrl.u32 2131351028, %v2672
        %v2679 = vor.u32 %v2677, %v2678
        %v2680 = vshll.u32 2131351028, %v2671
        %v2681 = vshrl.u32 2102212464, %v2672
        %v2682 = vor.u32 %v2680, %v2681
        %v2683 = vshll.u32 2102212464, %v2671
        %v2684 = vshrl.u32 920167782, %v2672
        %v2685 = vor.u32 %v2683, %v2684
        %v2686 = vshll.u32 920167782, %v2671
        %v2687 = vshrl.u32 1326507024, %v2672
        %v2688 = vor.u32 %v2686, %v2687
        %vm2689 = vcmp.lt.s32.totalorder %v2670, 1
        %vm2690 = vcmp.lt.s32.totalorder %v2670, 2
        %vm2691 = vcmp.lt.s32.totalorder %v2670, 3
        %vm2692 = vcmp.lt.s32.totalorder %v2670, 4
        %v2693 = vsel %vm2689, %v2673, %v2676
        %v2694 = vsel %vm2692, %v2682, 2102212464
        %v2695 = vsel %vm2691, %v2679, %v2694
        %v2696 = vsel %vm2690, %v2693, %v2695
        %v2697 = vsel %vm2689, %v2676, %v2679
        %v2698 = vsel %vm2692, %v2685, 920167782
        %v2699 = vsel %vm2691, %v2682, %v2698
        %v2700 = vsel %vm2690, %v2697, %v2699
        %v2701 = vsel %vm2689, %v2679, %v2682
        %v2702 = vsel %vm2692, %v2688, 1326507024
        %v2703 = vsel %vm2691, %v2685, %v2702
        %v2704 = vsel %vm2690, %v2701, %v2703
        %v2705 = vshll.u32 %v2665, 8
        %v2706 = vmul.u32.u64.compose %v2705, %v2704
        %v2707 = vextract.low.u32 %v2706
        %v2708 = vextract.high.u32 %v2706
        %v2709 = vmul.u32.u64.compose %v2705, %v2700
        %v2710 = vextract.low.u32 %v2709
        %v2711 = vextract.high.u32 %v2709
        %v2712 = vmul.u32 %v2705, %v2696
        %v2713 = vadd.s32 %v2708, %v2710
        %vm2714 = vc.u32 %v2708, %v2710
        %v2715 = vadd.s32 %v2711, 1
        %v2716 = vsel %vm2714, %v2715, %v2711
        %v2717 = vadd.s32 %v2712, %v2716
        %v2718 = vadd.s32 %v2717, 536870912
        %v2719 = vshrl.u32 %v2718, 30
        %v2720 = vshll.u32 %v2719, 30
        %v2721 = vsub.s32 %v2717, %v2720
        %vm2722 = vcmp.lt.s32.totalorder %v2721, 0
        %v2723 = vsub.s32 0, %v2721
        %v2724 = vsel %vm2722, %v2723, %v2721
        %v2725 = vclz %v2724
        %v2726 = vsub.s32 %v2725, 2
        %vm2727 = vcmp.gt.s32.totalorder 0, %v2726
        %v2728 = vsel %vm2727, 0, %v2726
        %v2729 = vsub.s32 32, %v2728
        %v2730 = vshll.u32 %v2721, %v2728
        %v2731 = vshrl.u32 %v2713, %v2729
        %v2732 = vor.u32 %v2730, %v2731
        %v2733 = vsub.s32 4294967266, %v2728
        %v2734 = vadd.s32 %v2733, 127
        %v2735 = vshll.u32 %v2734, 23
        %v2736 = vor.u32 4788187, %v2735
        %v2737 = vand.u32 2147483647, %v2736
        %v2739 = vcvt.s32.f32 %v2732
        %v2740 = vmul.f32 %v2739, %v2737
        %v2741 = vxor.u32 %v2740, 2147483648
        %v2742 = vsel %vm2659, %v2741, %v2740
        %v2743 = vsub.s32 4, %v2719
        %v2744 = vsel %vm2659, %v2743, %v2719
        %v2745 = vsel %vm2658, %v1096, %v2742
        %v2746 = vsel %vm2658, 0, %v2744
        %v2747 = vcosq.f32.pop %v2745
        %v2748 = vsinq.f32.pop %v2745
        %vm2749 = vweird.f32 %v1096
        %v2750 = vadd.s32 %v2746, 3
        %v2751 = vand.u32 %v2750, 3
        %vm2752 = vcmp.lt.s32.totalorder %v2751, 2
        %vm2753 = vcmp.eq.s32.totalorder %v2751, 0
        %v2754 = vxor.u32 %v2748, 2147483648
        %v2755 = vsel %vm2753, %v2747, %v2754
        %vm2756 = vcmp.eq.s32.totalorder %v2751, 2
        %v2757 = vxor.u32 %v2747, 2147483648
        %v2758 = vsel %vm2756, %v2757, %v2748
        %v2759 = vsel %vm2752, %v2755, %v2758
        %v2760 = vsel %vm2749, nan, %v2759
        %2777 = vrot.lane.b32.xlu0 %v1200, 19
        %v2778 = vpop.permute.xlu0 %2777
        %2779 = vrot.lane.b32.xlu0 %v1304, 19
        %v2780 = vpop.permute.xlu0 %2779
        %2781 = vrot.lane.b32.xlu0 %v1408, 19
        %v2782 = vpop.permute.xlu0 %2781
        %2783 = vrot.lane.b32.xlu0 %v1512, 19
        %v2784 = vpop.permute.xlu0 %2783
        %2785 = vrot.lane.b32.xlu0 %v1616, 19
        %v2786 = vpop.permute.xlu0 %2785
        %2787 = vrot.lane.b32.xlu0 %v1720, 19
        %v2788 = vpop.permute.xlu0 %2787
        %2789 = vrot.lane.b32.xlu0 %v1824, 19
        %v2790 = vpop.permute.xlu0 %2789
        %2791 = vrot.lane.b32.xlu0 %v1928, 19
        %v2792 = vpop.permute.xlu0 %2791
        %2793 = vrot.lane.b32.xlu0 %v2032, 19
        %v2794 = vpop.permute.xlu0 %2793
        %2795 = vrot.lane.b32.xlu0 %v2136, 19
        %v2796 = vpop.permute.xlu0 %2795
        %2797 = vrot.lane.b32.xlu0 %v2240, 19
        %v2798 = vpop.permute.xlu0 %2797
        %2799 = vrot.lane.b32.xlu0 %v2344, 19
        %v2800 = vpop.permute.xlu0 %2799
        %2801 = vrot.lane.b32.xlu0 %v2448, 19
        %v2802 = vpop.permute.xlu0 %2801
        %2803 = vrot.lane.b32.xlu0 %v2552, 19
        %v2804 = vpop.permute.xlu0 %2803
        %2805 = vrot.lane.b32.xlu0 %v2656, 19
        %v2806 = vpop.permute.xlu0 %2805
        %2807 = vrot.lane.b32.xlu0 %v2760, 19
        %v2808 = vpop.permute.xlu0 %2807
        %vm2825 = vcmask 154624
        %v2826 = vsel %vm2825, %v308, %v2778
        %v2827 = vsel %vm2825, %v309, %v2780
        %v2828 = vsel %vm2825, %v310, %v2782
        %v2829 = vsel %vm2825, %v311, %v2784
        %v2830 = vsel %vm2825, %v312, %v2786
        %v2831 = vsel %vm2825, %v313, %v2788
        %v2832 = vsel %vm2825, %v314, %v2790
        %v2833 = vsel %vm2825, %v315, %v2792
        %v2834 = vsel %vm2825, %v316, %v2794
        %v2835 = vsel %vm2825, %v317, %v2796
        %v2836 = vsel %vm2825, %v318, %v2798
        %v2837 = vsel %vm2825, %v319, %v2800
        %v2838 = vsel %vm2825, %v320, %v2802
        %v2839 = vsel %vm2825, %v321, %v2804
        %v2840 = vsel %vm2825, %v322, %v2806
        %v2841 = vsel %vm2825, %v323, %v2808
        %v2842 = vpack.c.bf16 %v2827, %v2826
        %v2843 = vpack.c.bf16 %v2829, %v2828
        %v2844 = vpack.c.bf16 %v2831, %v2830
        %v2845 = vpack.c.bf16 %v2833, %v2832
        %v2846 = vpack.c.bf16 %v2835, %v2834
        %v2847 = vpack.c.bf16 %v2837, %v2836
        %v2848 = vpack.c.bf16 %v2839, %v2838
        %v2849 = vpack.c.bf16 %v2841, %v2840
        %v2850 = vld [vmem:[%s2] sm:$0xf]
        %v2851 = vld [vmem:[%s2 + $0x4] sm:$0xf]
        %v2852 = vld [vmem:[%s2 + $0x8] sm:$0xf]
        %v2853 = vld [vmem:[%s2 + $0xc] sm:$0xf]
        %v2854 = vld [vmem:[%s2 + $0x10] sm:$0xf]
        %v2855 = vld [vmem:[%s2 + $0x14] sm:$0xf]
        %v2856 = vld [vmem:[%s2 + $0x18] sm:$0xf]
        %v2857 = vld [vmem:[%s3] sm:$0x1]
        %v2859 = vlaneseq
        %v2860 = vshrl.u32 %v2859, 7
        %v2861 = vsub.s32 0, %v2860
        %v2862 = vrot.slane %v2857, %v2861
        %v2871 = vunpack.c.l.b16 %v2850
        %v2872 = vunpack.c.l.b16 %v2851
        %v2873 = vunpack.c.l.b16 %v2852
        %v2874 = vunpack.c.l.b16 %v2853
        %v2875 = vunpack.c.l.b16 %v2854
        %v2876 = vunpack.c.l.b16 %v2855
        %v2877 = vunpack.c.l.b16 %v2856
        %v2878 = vpack.c.b16 %v2872, %v2871
        %v2879 = vpack.c.b16 %v2874, %v2873
        %v2880 = vpack.c.b16 %v2876, %v2875
        %v2881 = vpack.c.b16 %v2877, %v2877
        %vm2885 = vcmask 449536
        %v2887 = vsel %vm2885, %v2842, 0
        %v2890 = vsel %vm2885, %v2843, 0
        %v2893 = vsel %vm2885, %v2844, 0
        %v2896 = vsel %vm2885, %v2845, 0
        %v2899 = vsel %vm2885, %v2846, 0
        %v2902 = vsel %vm2885, %v2847, 0
        %v2905 = vsel %vm2885, %v2848, 0
        %v2908 = vsel %vm2885, %v2849, 0
        %vm2910 = vcmask 1042432
        %vm2911 = vcmask 1043456
        %v2912 = vsel %vm2910, 4294967295, 65535
        %v2913 = vsel %vm2911, %v2912, 0
        %v2915 = vand.u32 %v2881, %v2913
        %2917 = vmatprep.subr.bf16.mxu0 0
        %2918 = vmatpush1.bf16.msra.mxu0 0
        %2919 = vmatprep.subr.bf16.mxu0 0
        %2920 = vmatpush1.bf16.msra.mxu0 0
        %2921 = vmatprep.subr.bf16.mxu0 0
        %2922 = vmatpush1.bf16.msra.mxu0 0
        %2923 = vmatprep.subr.bf16.mxu0 0
        %2924 = vmatpush1.bf16.msra.mxu0 0
        %2925 = vmatprep.subr.bf16.mxu0 0
        %2926 = vmatpush1.bf16.msra.mxu0 %v2915
        %2927 = vmatprep.subr.bf16.mxu0 0
        %2928 = vmatpush1.bf16.msra.mxu0 %v2880
        %2929 = vmatprep.subr.bf16.mxu0 0
        %2930 = vmatpush1.bf16.msra.mxu0 %v2879
        %2931 = vmatprep.subr.bf16.mxu0 0
        %2932 = vmatpush1.bf16.msra.mxu0 %v2878
        %2933 = vmatprep.subr.bf16.mxu0 0
        %2934 = vmatpush2.bf16.msra.mxu0 0
        %2935 = vmatprep.subr.bf16.mxu0 0
        %2936 = vmatpush2.bf16.msra.mxu0 0
        %2937 = vmatprep.subr.bf16.mxu0 0
        %2938 = vmatpush2.bf16.msra.mxu0 0
        %2939 = vmatprep.subr.bf16.mxu0 0
        %2940 = vmatpush2.bf16.msra.mxu0 0
        %2941 = vmatprep.subr.bf16.mxu0 0
        %2942 = vmatpush2.bf16.msra.mxu0 0
        %2943 = vmatprep.subr.bf16.mxu0 0
        %2944 = vmatpush2.bf16.msra.mxu0 0
        %2945 = vmatprep.subr.bf16.mxu0 0
        %2946 = vmatpush2.bf16.msra.mxu0 0
        %2947 = vmatprep.subr.bf16.mxu0 0
        %2948 = vmatpush2.bf16.msra.mxu0 0
        %2949 = vmatprep.mubr.bf16.mxu0 0
        %2950 = vmatmul.mubr.bf16.gmra.mxu0 %v2887
        %v2951 = vpop.f32.mrf.mxu0
        %v2952 = vadd.f32 %v2862, %v2951
        %v2953 = vpop.f32.mrf.mxu0
        %v2954 = vpop.f32.mrf.mxu0
        %v2955 = vadd.f32 %v2862, %v2954
        %v2956 = vpop.f32.mrf.mxu0
        %2957 = vmatprep.mubr.bf16.mxu0 0
        %2958 = vmatmul.mubr.bf16.gmra.mxu0 %v2890
        %v2959 = vpop.f32.mrf.mxu0
        %v2960 = vadd.f32 %v2862, %v2959
        %v2961 = vpop.f32.mrf.mxu0
        %v2962 = vpop.f32.mrf.mxu0
        %v2963 = vadd.f32 %v2862, %v2962
        %v2964 = vpop.f32.mrf.mxu0
        %2965 = vmatprep.mubr.bf16.mxu0 0
        %2966 = vmatmul.mubr.bf16.gmra.mxu0 %v2893
        %v2967 = vpop.f32.mrf.mxu0
        %v2968 = vadd.f32 %v2862, %v2967
        %v2969 = vpop.f32.mrf.mxu0
        %v2970 = vpop.f32.mrf.mxu0
        %v2971 = vadd.f32 %v2862, %v2970
        %v2972 = vpop.f32.mrf.mxu0
        %2973 = vmatprep.mubr.bf16.mxu0 0
        %2974 = vmatmul.mubr.bf16.gmra.mxu0 %v2896
        %v2975 = vpop.f32.mrf.mxu0
        %v2976 = vadd.f32 %v2862, %v2975
        %v2977 = vpop.f32.mrf.mxu0
        %v2978 = vpop.f32.mrf.mxu0
        %v2979 = vadd.f32 %v2862, %v2978
        %v2980 = vpop.f32.mrf.mxu0
        %2981 = vmatprep.mubr.bf16.mxu0 0
        %2982 = vmatmul.mubr.bf16.gmra.mxu0 %v2899
        %v2983 = vpop.f32.mrf.mxu0
        %v2984 = vadd.f32 %v2862, %v2983
        %v2985 = vpop.f32.mrf.mxu0
        %v2986 = vpop.f32.mrf.mxu0
        %v2987 = vadd.f32 %v2862, %v2986
        %v2988 = vpop.f32.mrf.mxu0
        %2989 = vmatprep.mubr.bf16.mxu0 0
        %2990 = vmatmul.mubr.bf16.gmra.mxu0 %v2902
        %v2991 = vpop.f32.mrf.mxu0
        %v2992 = vadd.f32 %v2862, %v2991
        %v2993 = vpop.f32.mrf.mxu0
        %v2994 = vpop.f32.mrf.mxu0
        %v2995 = vadd.f32 %v2862, %v2994
        %v2996 = vpop.f32.mrf.mxu0
        %2997 = vmatprep.mubr.bf16.mxu0 0
        %2998 = vmatmul.mubr.bf16.gmra.mxu0 %v2905
        %v2999 = vpop.f32.mrf.mxu0
        %v3000 = vadd.f32 %v2862, %v2999
        %v3001 = vpop.f32.mrf.mxu0
        %v3002 = vpop.f32.mrf.mxu0
        %v3003 = vadd.f32 %v2862, %v3002
        %v3004 = vpop.f32.mrf.mxu0
        %3005 = vmatprep.mubr.bf16.mxu0 0
        %3006 = vmatmul.mubr.bf16.gmra.mxu0 %v2908
        %v3007 = vpop.f32.mrf.mxu0
        %v3008 = vadd.f32 %v2862, %v3007
        %v3009 = vpop.f32.mrf.mxu0
        %v3010 = vpop.f32.mrf.mxu0
        %v3011 = vadd.f32 %v2862, %v3010
        %v3012 = vpop.f32.mrf.mxu0
        %3013 = vdwg.mxu0
        %v3014 = vand.u32 2147483647, %v2952
        %v3015 = vand.u32 2147483647, %v2955
        %v3016 = vand.u32 2147483647, %v2960
        %v3017 = vand.u32 2147483647, %v2963
        %v3018 = vand.u32 2147483647, %v2968
        %v3019 = vand.u32 2147483647, %v2971
        %v3020 = vand.u32 2147483647, %v2976
        %v3021 = vand.u32 2147483647, %v2979
        %v3022 = vand.u32 2147483647, %v2984
        %v3023 = vand.u32 2147483647, %v2987
        %v3024 = vand.u32 2147483647, %v2992
        %v3025 = vand.u32 2147483647, %v2995
        %v3026 = vand.u32 2147483647, %v3000
        %v3027 = vand.u32 2147483647, %v3003
        %v3028 = vand.u32 2147483647, %v3008
        %v3029 = vand.u32 2147483647, %v3011
        %v3030 = vsub.f32 0.0, %v3014
        %v3031 = vsub.f32 0.0, %v3015
        %v3032 = vsub.f32 0.0, %v3016
        %v3033 = vsub.f32 0.0, %v3017
        %v3034 = vsub.f32 0.0, %v3018
        %v3035 = vsub.f32 0.0, %v3019
        %v3036 = vsub.f32 0.0, %v3020
        %v3037 = vsub.f32 0.0, %v3021
        %v3038 = vsub.f32 0.0, %v3022
        %v3039 = vsub.f32 0.0, %v3023
        %v3040 = vsub.f32 0.0, %v3024
        %v3041 = vsub.f32 0.0, %v3025
        %v3042 = vsub.f32 0.0, %v3026
        %v3043 = vsub.f32 0.0, %v3027
        %v3044 = vsub.f32 0.0, %v3028
        %v3045 = vsub.f32 0.0, %v3029
        %v3046 = vmul.f32 %v3030, 1.442695
        %v3047 = vpow.pop %v3046
        %v3048 = vmul.f32 %v3031, 1.442695
        %v3049 = vpow.pop %v3048
        %v3050 = vmul.f32 %v3032, 1.442695
        %v3051 = vpow.pop %v3050
        %v3052 = vmul.f32 %v3033, 1.442695
        %v3053 = vpow.pop %v3052
        %v3054 = vmul.f32 %v3034, 1.442695
        %v3055 = vpow.pop %v3054
        %v3056 = vmul.f32 %v3035, 1.442695
        %v3057 = vpow.pop %v3056
        %v3058 = vmul.f32 %v3036, 1.442695
        %v3059 = vpow.pop %v3058
        %v3060 = vmul.f32 %v3037, 1.442695
        %v3061 = vpow.pop %v3060
        %v3062 = vmul.f32 %v3038, 1.442695
        %v3063 = vpow.pop %v3062
        %v3064 = vmul.f32 %v3039, 1.442695
        %v3065 = vpow.pop %v3064
        %v3066 = vmul.f32 %v3040, 1.442695
        %v3067 = vpow.pop %v3066
        %v3068 = vmul.f32 %v3041, 1.442695
        %v3069 = vpow.pop %v3068
        %v3070 = vmul.f32 %v3042, 1.442695
        %v3071 = vpow.pop %v3070
        %v3072 = vmul.f32 %v3043, 1.442695
        %v3073 = vpow.pop %v3072
        %v3074 = vmul.f32 %v3044, 1.442695
        %v3075 = vpow.pop %v3074
        %v3076 = vmul.f32 %v3045, 1.442695
        %v3077 = vpow.pop %v3076
        %v3078 = vadd.f32 %v3047, 1.0
        %v3079 = vlog2.pop %v3078
        %v3080 = vmul.f32 %v3079, 0.6931472
        %v3081 = vmul.f32 -0.5, %v3047
        %v3082 = vadd.f32 %v3081, 1.0
        %v3083 = vmul.f32 %v3082, %v3047
        %v3084 = vand.u32 2147483647, %v3047
        %vm3085 = vcmp.lt.f32.partialorder %v3084, 0.0004427343
        %v3086 = vsel %vm3085, %v3083, %v3080
        %v3087 = vadd.f32 %v3049, 1.0
        %v3088 = vlog2.pop %v3087
        %v3089 = vmul.f32 %v3088, 0.6931472
        %v3090 = vmul.f32 -0.5, %v3049
        %v3091 = vadd.f32 %v3090, 1.0
        %v3092 = vmul.f32 %v3091, %v3049
        %v3093 = vand.u32 2147483647, %v3049
        %vm3094 = vcmp.lt.f32.partialorder %v3093, 0.0004427343
        %v3095 = vsel %vm3094, %v3092, %v3089
        %v3096 = vadd.f32 %v3051, 1.0
        %v3097 = vlog2.pop %v3096
        %v3098 = vmul.f32 %v3097, 0.6931472
        %v3099 = vmul.f32 -0.5, %v3051
        %v3100 = vadd.f32 %v3099, 1.0
        %v3101 = vmul.f32 %v3100, %v3051
        %v3102 = vand.u32 2147483647, %v3051
        %vm3103 = vcmp.lt.f32.partialorder %v3102, 0.0004427343
        %v3104 = vsel %vm3103, %v3101, %v3098
        %v3105 = vadd.f32 %v3053, 1.0
        %v3106 = vlog2.pop %v3105
        %v3107 = vmul.f32 %v3106, 0.6931472
        %v3108 = vmul.f32 -0.5, %v3053
        %v3109 = vadd.f32 %v3108, 1.0
        %v3110 = vmul.f32 %v3109, %v3053
        %v3111 = vand.u32 2147483647, %v3053
        %vm3112 = vcmp.lt.f32.partialorder %v3111, 0.0004427343
        %v3113 = vsel %vm3112, %v3110, %v3107
        %v3114 = vadd.f32 %v3055, 1.0
        %v3115 = vlog2.pop %v3114
        %v3116 = vmul.f32 %v3115, 0.6931472
        %v3117 = vmul.f32 -0.5, %v3055
        %v3118 = vadd.f32 %v3117, 1.0
        %v3119 = vmul.f32 %v3118, %v3055
        %v3120 = vand.u32 2147483647, %v3055
        %vm3121 = vcmp.lt.f32.partialorder %v3120, 0.0004427343
        %v3122 = vsel %vm3121, %v3119, %v3116
        %v3123 = vadd.f32 %v3057, 1.0
        %v3124 = vlog2.pop %v3123
        %v3125 = vmul.f32 %v3124, 0.6931472
        %v3126 = vmul.f32 -0.5, %v3057
        %v3127 = vadd.f32 %v3126, 1.0
        %v3128 = vmul.f32 %v3127, %v3057
        %v3129 = vand.u32 2147483647, %v3057
        %vm3130 = vcmp.lt.f32.partialorder %v3129, 0.0004427343
        %v3131 = vsel %vm3130, %v3128, %v3125
        %v3132 = vadd.f32 %v3059, 1.0
        %v3133 = vlog2.pop %v3132
        %v3134 = vmul.f32 %v3133, 0.6931472
        %v3135 = vmul.f32 -0.5, %v3059
        %v3136 = vadd.f32 %v3135, 1.0
        %v3137 = vmul.f32 %v3136, %v3059
        %v3138 = vand.u32 2147483647, %v3059
        %vm3139 = vcmp.lt.f32.partialorder %v3138, 0.0004427343
        %v3140 = vsel %vm3139, %v3137, %v3134
        %v3141 = vadd.f32 %v3061, 1.0
        %v3142 = vlog2.pop %v3141
        %v3143 = vmul.f32 %v3142, 0.6931472
        %v3144 = vmul.f32 -0.5, %v3061
        %v3145 = vadd.f32 %v3144, 1.0
        %v3146 = vmul.f32 %v3145, %v3061
        %v3147 = vand.u32 2147483647, %v3061
        %vm3148 = vcmp.lt.f32.partialorder %v3147, 0.0004427343
        %v3149 = vsel %vm3148, %v3146, %v3143
        %v3150 = vadd.f32 %v3063, 1.0
        %v3151 = vlog2.pop %v3150
        %v3152 = vmul.f32 %v3151, 0.6931472
        %v3153 = vmul.f32 -0.5, %v3063
        %v3154 = vadd.f32 %v3153, 1.0
        %v3155 = vmul.f32 %v3154, %v3063
        %v3156 = vand.u32 2147483647, %v3063
        %vm3157 = vcmp.lt.f32.partialorder %v3156, 0.0004427343
        %v3158 = vsel %vm3157, %v3155, %v3152
        %v3159 = vadd.f32 %v3065, 1.0
        %v3160 = vlog2.pop %v3159
        %v3161 = vmul.f32 %v3160, 0.6931472
        %v3162 = vmul.f32 -0.5, %v3065
        %v3163 = vadd.f32 %v3162, 1.0
        %v3164 = vmul.f32 %v3163, %v3065
        %v3165 = vand.u32 2147483647, %v3065
        %vm3166 = vcmp.lt.f32.partialorder %v3165, 0.0004427343
        %v3167 = vsel %vm3166, %v3164, %v3161
        %v3168 = vadd.f32 %v3067, 1.0
        %v3169 = vlog2.pop %v3168
        %v3170 = vmul.f32 %v3169, 0.6931472
        %v3171 = vmul.f32 -0.5, %v3067
        %v3172 = vadd.f32 %v3171, 1.0
        %v3173 = vmul.f32 %v3172, %v3067
        %v3174 = vand.u32 2147483647, %v3067
        %vm3175 = vcmp.lt.f32.partialorder %v3174, 0.0004427343
        %v3176 = vsel %vm3175, %v3173, %v3170
        %v3177 = vadd.f32 %v3069, 1.0
        %v3178 = vlog2.pop %v3177
        %v3179 = vmul.f32 %v3178, 0.6931472
        %v3180 = vmul.f32 -0.5, %v3069
        %v3181 = vadd.f32 %v3180, 1.0
        %v3182 = vmul.f32 %v3181, %v3069
        %v3183 = vand.u32 2147483647, %v3069
        %vm3184 = vcmp.lt.f32.partialorder %v3183, 0.0004427343
        %v3185 = vsel %vm3184, %v3182, %v3179
        %v3186 = vadd.f32 %v3071, 1.0
        %v3187 = vlog2.pop %v3186
        %v3188 = vmul.f32 %v3187, 0.6931472
        %v3189 = vmul.f32 -0.5, %v3071
        %v3190 = vadd.f32 %v3189, 1.0
        %v3191 = vmul.f32 %v3190, %v3071
        %v3192 = vand.u32 2147483647, %v3071
        %vm3193 = vcmp.lt.f32.partialorder %v3192, 0.0004427343
        %v3194 = vsel %vm3193, %v3191, %v3188
        %v3195 = vadd.f32 %v3073, 1.0
        %v3196 = vlog2.pop %v3195
        %v3197 = vmul.f32 %v3196, 0.6931472
        %v3198 = vmul.f32 -0.5, %v3073
        %v3199 = vadd.f32 %v3198, 1.0
        %v3200 = vmul.f32 %v3199, %v3073
        %v3201 = vand.u32 2147483647, %v3073
        %vm3202 = vcmp.lt.f32.partialorder %v3201, 0.0004427343
        %v3203 = vsel %vm3202, %v3200, %v3197
        %v3204 = vadd.f32 %v3075, 1.0
        %v3205 = vlog2.pop %v3204
        %v3206 = vmul.f32 %v3205, 0.6931472
        %v3207 = vmul.f32 -0.5, %v3075
        %v3208 = vadd.f32 %v3207, 1.0
        %v3209 = vmul.f32 %v3208, %v3075
        %v3210 = vand.u32 2147483647, %v3075
        %vm3211 = vcmp.lt.f32.partialorder %v3210, 0.0004427343
        %v3212 = vsel %vm3211, %v3209, %v3206
        %v3213 = vadd.f32 %v3077, 1.0
        %v3214 = vlog2.pop %v3213
        %v3215 = vmul.f32 %v3214, 0.6931472
        %v3216 = vmul.f32 -0.5, %v3077
        %v3217 = vadd.f32 %v3216, 1.0
        %v3218 = vmul.f32 %v3217, %v3077
        %v3219 = vand.u32 2147483647, %v3077
        %vm3220 = vcmp.lt.f32.partialorder %v3219, 0.0004427343
        %v3221 = vsel %vm3220, %v3218, %v3215
        %v3222 = vmax.f32 %v2952, 0.0
        %v3223 = vmax.f32 %v2955, 0.0
        %v3224 = vmax.f32 %v2960, 0.0
        %v3225 = vmax.f32 %v2963, 0.0
        %v3226 = vmax.f32 %v2968, 0.0
        %v3227 = vmax.f32 %v2971, 0.0
        %v3228 = vmax.f32 %v2976, 0.0
        %v3229 = vmax.f32 %v2979, 0.0
        %v3230 = vmax.f32 %v2984, 0.0
        %v3231 = vmax.f32 %v2987, 0.0
        %v3232 = vmax.f32 %v2992, 0.0
        %v3233 = vmax.f32 %v2995, 0.0
        %v3234 = vmax.f32 %v3000, 0.0
        %v3235 = vmax.f32 %v3003, 0.0
        %v3236 = vmax.f32 %v3008, 0.0
        %v3237 = vmax.f32 %v3011, 0.0
        %v3238 = vadd.f32 %v3222, %v3086
        %v3239 = vadd.f32 %v3223, %v3095
        %v3240 = vadd.f32 %v3224, %v3104
        %v3241 = vadd.f32 %v3225, %v3113
        %v3242 = vadd.f32 %v3226, %v3122
        %v3243 = vadd.f32 %v3227, %v3131
        %v3244 = vadd.f32 %v3228, %v3140
        %v3245 = vadd.f32 %v3229, %v3149
        %v3246 = vadd.f32 %v3230, %v3158
        %v3247 = vadd.f32 %v3231, %v3167
        %v3248 = vadd.f32 %v3232, %v3176
        %v3249 = vadd.f32 %v3233, %v3185
        %v3250 = vadd.f32 %v3234, %v3194
        %v3251 = vadd.f32 %v3235, %v3203
        %v3252 = vadd.f32 %v3236, %v3212
        %v3253 = vadd.f32 %v3237, %v3221
        %v3254 = vpack.c.bf16 %v3239, %v3238
        %v3255 = vpack.c.bf16 %v3241, %v3240
        %v3256 = vpack.c.bf16 %v3243, %v3242
        %v3257 = vpack.c.bf16 %v3245, %v3244
        %v3258 = vpack.c.bf16 %v3247, %v3246
        %v3259 = vpack.c.bf16 %v3249, %v3248
        %v3260 = vpack.c.bf16 %v3251, %v3250
        %v3261 = vpack.c.bf16 %v3253, %v3252
        %v3262 = vld [vmem:[%s4] sm:$0xf]
        %v3263 = vld [vmem:[%s4 + $0x4] sm:$0xf]
        %v3264 = vld [vmem:[%s4 + $0x8] sm:$0xf]
        %v3265 = vld [vmem:[%s4 + $0xc] sm:$0xf]
        %v3266 = vld [vmem:[%s4 + $0x10] sm:$0xf]
        %v3267 = vld [vmem:[%s4 + $0x14] sm:$0xf]
        %v3268 = vld [vmem:[%s4 + $0x18] sm:$0xf]
        %v3269 = vld [vmem:[%s4 + $0x1c] sm:$0xf]
        %v3270 = vld [vmem:[%s4 + $0x20] sm:$0xf]
        %v3271 = vld [vmem:[%s4 + $0x24] sm:$0xf]
        %v3272 = vld [vmem:[%s4 + $0x28] sm:$0xf]
        %v3273 = vld [vmem:[%s4 + $0x2c] sm:$0xf]
        %v3274 = vld [vmem:[%s4 + $0x30] sm:$0xf]
        %v3275 = vld [vmem:[%s4 + $0x34] sm:$0xf]
        %v3276 = vld [vmem:[%s4 + $0x38] sm:$0xf]
        %v3277 = vld [vmem:[%s4 + $0x3c] sm:$0xf]
        %v3278 = vld [vmem:[%s5] sm:$0x1]
        %v3280 = vlaneseq
        %v3281 = vshrl.u32 %v3280, 7
        %v3282 = vsub.s32 0, %v3281
        %v3283 = vrot.slane %v3278, %v3282
        %v3301 = vunpack.c.l.b16 %v3262
        %v3302 = vunpack.c.l.b16 %v3263
        %v3303 = vunpack.c.l.b16 %v3264
        %v3304 = vunpack.c.l.b16 %v3265
        %v3305 = vunpack.c.l.b16 %v3266
        %v3306 = vunpack.c.l.b16 %v3267
        %v3307 = vunpack.c.l.b16 %v3268
        %v3308 = vunpack.c.l.b16 %v3269
        %v3309 = vunpack.c.l.b16 %v3270
        %v3310 = vunpack.c.l.b16 %v3271
        %v3311 = vunpack.c.l.b16 %v3272
        %v3312 = vunpack.c.l.b16 %v3273
        %v3313 = vunpack.c.l.b16 %v3274
        %v3314 = vunpack.c.l.b16 %v3275
        %v3315 = vunpack.c.l.b16 %v3276
        %v3316 = vunpack.c.l.b16 %v3277
        %v3317 = vpack.c.b16 %v3302, %v3301
        %v3318 = vpack.c.b16 %v3304, %v3303
        %v3319 = vpack.c.b16 %v3306, %v3305
        %v3320 = vpack.c.b16 %v3308, %v3307
        %v3321 = vpack.c.b16 %v3310, %v3309
        %v3322 = vpack.c.b16 %v3312, %v3311
        %v3323 = vpack.c.b16 %v3314, %v3313
        %v3324 = vpack.c.b16 %v3316, %v3315
        %3333 = vmatprep.subr.bf16.mxu0 0
        %3334 = vmatpush1.bf16.msra.mxu0 %v3324
        %3335 = vmatprep.subr.bf16.mxu0 0
        %3336 = vmatpush1.bf16.msra.mxu0 %v3323
        %3337 = vmatprep.subr.bf16.mxu0 0
        %3338 = vmatpush1.bf16.msra.mxu0 %v3322
        %3339 = vmatprep.subr.bf16.mxu0 0
        %3340 = vmatpush1.bf16.msra.mxu0 %v3321
        %3341 = vmatprep.subr.bf16.mxu0 0
        %3342 = vmatpush1.bf16.msra.mxu0 %v3320
        %3343 = vmatprep.subr.bf16.mxu0 0
        %3344 = vmatpush1.bf16.msra.mxu0 %v3319
        %3345 = vmatprep.subr.bf16.mxu0 0
        %3346 = vmatpush1.bf16.msra.mxu0 %v3318
        %3347 = vmatprep.subr.bf16.mxu0 0
        %3348 = vmatpush1.bf16.msra.mxu0 %v3317
        %3349 = vmatprep.subr.bf16.mxu0 0
        %3350 = vmatpush2.bf16.msra.mxu0 0
        %3351 = vmatprep.subr.bf16.mxu0 0
        %3352 = vmatpush2.bf16.msra.mxu0 0
        %3353 = vmatprep.subr.bf16.mxu0 0
        %3354 = vmatpush2.bf16.msra.mxu0 0
        %3355 = vmatprep.subr.bf16.mxu0 0
        %3356 = vmatpush2.bf16.msra.mxu0 0
        %3357 = vmatprep.subr.bf16.mxu0 0
        %3358 = vmatpush2.bf16.msra.mxu0 0
        %3359 = vmatprep.subr.bf16.mxu0 0
        %3360 = vmatpush2.bf16.msra.mxu0 0
        %3361 = vmatprep.subr.bf16.mxu0 0
        %3362 = vmatpush2.bf16.msra.mxu0 0
        %3363 = vmatprep.subr.bf16.mxu0 0
        %3364 = vmatpush2.bf16.msra.mxu0 0
        %3365 = vmatprep.mubr.bf16.mxu0 0
        %3366 = vmatmul.mubr.bf16.gmra.mxu0 %v3254
        %v3367 = vpop.f32.mrf.mxu0
        %v3368 = vadd.f32 %v3283, %v3367
        %v3369 = vpop.f32.mrf.mxu0
        %v3370 = vpop.f32.mrf.mxu0
        %v3371 = vadd.f32 %v3283, %v3370
        %v3372 = vpop.f32.mrf.mxu0
        %3373 = vmatprep.mubr.bf16.mxu0 0
        %3374 = vmatmul.mubr.bf16.gmra.mxu0 %v3255
        %v3375 = vpop.f32.mrf.mxu0
        %v3376 = vadd.f32 %v3283, %v3375
        %v3377 = vpop.f32.mrf.mxu0
        %v3378 = vpop.f32.mrf.mxu0
        %v3379 = vadd.f32 %v3283, %v3378
        %v3380 = vpop.f32.mrf.mxu0
        %3381 = vmatprep.mubr.bf16.mxu0 0
        %3382 = vmatmul.mubr.bf16.gmra.mxu0 %v3256
        %v3383 = vpop.f32.mrf.mxu0
        %v3384 = vadd.f32 %v3283, %v3383
        %v3385 = vpop.f32.mrf.mxu0
        %v3386 = vpop.f32.mrf.mxu0
        %v3387 = vadd.f32 %v3283, %v3386
        %v3388 = vpop.f32.mrf.mxu0
        %3389 = vmatprep.mubr.bf16.mxu0 0
        %3390 = vmatmul.mubr.bf16.gmra.mxu0 %v3257
        %v3391 = vpop.f32.mrf.mxu0
        %v3392 = vadd.f32 %v3283, %v3391
        %v3393 = vpop.f32.mrf.mxu0
        %v3394 = vpop.f32.mrf.mxu0
        %v3395 = vadd.f32 %v3283, %v3394
        %v3396 = vpop.f32.mrf.mxu0
        %3397 = vmatprep.mubr.bf16.mxu0 0
        %3398 = vmatmul.mubr.bf16.gmra.mxu0 %v3258
        %v3399 = vpop.f32.mrf.mxu0
        %v3400 = vadd.f32 %v3283, %v3399
        %v3401 = vpop.f32.mrf.mxu0
        %v3402 = vpop.f32.mrf.mxu0
        %v3403 = vadd.f32 %v3283, %v3402
        %v3404 = vpop.f32.mrf.mxu0
        %3405 = vmatprep.mubr.bf16.mxu0 0
        %3406 = vmatmul.mubr.bf16.gmra.mxu0 %v3259
        %v3407 = vpop.f32.mrf.mxu0
        %v3408 = vadd.f32 %v3283, %v3407
        %v3409 = vpop.f32.mrf.mxu0
        %v3410 = vpop.f32.mrf.mxu0
        %v3411 = vadd.f32 %v3283, %v3410
        %v3412 = vpop.f32.mrf.mxu0
        %3413 = vmatprep.mubr.bf16.mxu0 0
        %3414 = vmatmul.mubr.bf16.gmra.mxu0 %v3260
        %v3415 = vpop.f32.mrf.mxu0
        %v3416 = vadd.f32 %v3283, %v3415
        %v3417 = vpop.f32.mrf.mxu0
        %v3418 = vpop.f32.mrf.mxu0
        %v3419 = vadd.f32 %v3283, %v3418
        %v3420 = vpop.f32.mrf.mxu0
        %3421 = vmatprep.mubr.bf16.mxu0 0
        %3422 = vmatmul.mubr.bf16.gmra.mxu0 %v3261
        %v3423 = vpop.f32.mrf.mxu0
        %v3424 = vadd.f32 %v3283, %v3423
        %v3425 = vpop.f32.mrf.mxu0
        %v3426 = vpop.f32.mrf.mxu0
        %v3427 = vadd.f32 %v3283, %v3426
        %v3428 = vpop.f32.mrf.mxu0
        %3429 = vdwg.mxu0
        %v3430 = vand.u32 2147483647, %v3368
        %v3431 = vand.u32 2147483647, %v3371
        %v3432 = vand.u32 2147483647, %v3376
        %v3433 = vand.u32 2147483647, %v3379
        %v3434 = vand.u32 2147483647, %v3384
        %v3435 = vand.u32 2147483647, %v3387
        %v3436 = vand.u32 2147483647, %v3392
        %v3437 = vand.u32 2147483647, %v3395
        %v3438 = vand.u32 2147483647, %v3400
        %v3439 = vand.u32 2147483647, %v3403
        %v3440 = vand.u32 2147483647, %v3408
        %v3441 = vand.u32 2147483647, %v3411
        %v3442 = vand.u32 2147483647, %v3416
        %v3443 = vand.u32 2147483647, %v3419
        %v3444 = vand.u32 2147483647, %v3424
        %v3445 = vand.u32 2147483647, %v3427
        %v3446 = vsub.f32 0.0, %v3430
        %v3447 = vsub.f32 0.0, %v3431
        %v3448 = vsub.f32 0.0, %v3432
        %v3449 = vsub.f32 0.0, %v3433
        %v3450 = vsub.f32 0.0, %v3434
        %v3451 = vsub.f32 0.0, %v3435
        %v3452 = vsub.f32 0.0, %v3436
        %v3453 = vsub.f32 0.0, %v3437
        %v3454 = vsub.f32 0.0, %v3438
        %v3455 = vsub.f32 0.0, %v3439
        %v3456 = vsub.f32 0.0, %v3440
        %v3457 = vsub.f32 0.0, %v3441
        %v3458 = vsub.f32 0.0, %v3442
        %v3459 = vsub.f32 0.0, %v3443
        %v3460 = vsub.f32 0.0, %v3444
        %v3461 = vsub.f32 0.0, %v3445
        %v3462 = vmul.f32 %v3446, 1.442695
        %v3463 = vpow.pop %v3462
        %v3464 = vmul.f32 %v3447, 1.442695
        %v3465 = vpow.pop %v3464
        %v3466 = vmul.f32 %v3448, 1.442695
        %v3467 = vpow.pop %v3466
        %v3468 = vmul.f32 %v3449, 1.442695
        %v3469 = vpow.pop %v3468
        %v3470 = vmul.f32 %v3450, 1.442695
        %v3471 = vpow.pop %v3470
        %v3472 = vmul.f32 %v3451, 1.442695
        %v3473 = vpow.pop %v3472
        %v3474 = vmul.f32 %v3452, 1.442695
        %v3475 = vpow.pop %v3474
        %v3476 = vmul.f32 %v3453, 1.442695
        %v3477 = vpow.pop %v3476
        %v3478 = vmul.f32 %v3454, 1.442695
        %v3479 = vpow.pop %v3478
        %v3480 = vmul.f32 %v3455, 1.442695
        %v3481 = vpow.pop %v3480
        %v3482 = vmul.f32 %v3456, 1.442695
        %v3483 = vpow.pop %v3482
        %v3484 = vmul.f32 %v3457, 1.442695
        %v3485 = vpow.pop %v3484
        %v3486 = vmul.f32 %v3458, 1.442695
        %v3487 = vpow.pop %v3486
        %v3488 = vmul.f32 %v3459, 1.442695
        %v3489 = vpow.pop %v3488
        %v3490 = vmul.f32 %v3460, 1.442695
        %v3491 = vpow.pop %v3490
        %v3492 = vmul.f32 %v3461, 1.442695
        %v3493 = vpow.pop %v3492
        %v3494 = vadd.f32 %v3463, 1.0
        %v3495 = vlog2.pop %v3494
        %v3496 = vmul.f32 %v3495, 0.6931472
        %v3497 = vmul.f32 -0.5, %v3463
        %v3498 = vadd.f32 %v3497, 1.0
        %v3499 = vmul.f32 %v3498, %v3463
        %v3500 = vand.u32 2147483647, %v3463
        %vm3501 = vcmp.lt.f32.partialorder %v3500, 0.0004427343
        %v3502 = vsel %vm3501, %v3499, %v3496
        %v3503 = vadd.f32 %v3465, 1.0
        %v3504 = vlog2.pop %v3503
        %v3505 = vmul.f32 %v3504, 0.6931472
        %v3506 = vmul.f32 -0.5, %v3465
        %v3507 = vadd.f32 %v3506, 1.0
        %v3508 = vmul.f32 %v3507, %v3465
        %v3509 = vand.u32 2147483647, %v3465
        %vm3510 = vcmp.lt.f32.partialorder %v3509, 0.0004427343
        %v3511 = vsel %vm3510, %v3508, %v3505
        %v3512 = vadd.f32 %v3467, 1.0
        %v3513 = vlog2.pop %v3512
        %v3514 = vmul.f32 %v3513, 0.6931472
        %v3515 = vmul.f32 -0.5, %v3467
        %v3516 = vadd.f32 %v3515, 1.0
        %v3517 = vmul.f32 %v3516, %v3467
        %v3518 = vand.u32 2147483647, %v3467
        %vm3519 = vcmp.lt.f32.partialorder %v3518, 0.0004427343
        %v3520 = vsel %vm3519, %v3517, %v3514
        %v3521 = vadd.f32 %v3469, 1.0
        %v3522 = vlog2.pop %v3521
        %v3523 = vmul.f32 %v3522, 0.6931472
        %v3524 = vmul.f32 -0.5, %v3469
        %v3525 = vadd.f32 %v3524, 1.0
        %v3526 = vmul.f32 %v3525, %v3469
        %v3527 = vand.u32 2147483647, %v3469
        %vm3528 = vcmp.lt.f32.partialorder %v3527, 0.0004427343
        %v3529 = vsel %vm3528, %v3526, %v3523
        %v3530 = vadd.f32 %v3471, 1.0
        %v3531 = vlog2.pop %v3530
        %v3532 = vmul.f32 %v3531, 0.6931472
        %v3533 = vmul.f32 -0.5, %v3471
        %v3534 = vadd.f32 %v3533, 1.0
        %v3535 = vmul.f32 %v3534, %v3471
        %v3536 = vand.u32 2147483647, %v3471
        %vm3537 = vcmp.lt.f32.partialorder %v3536, 0.0004427343
        %v3538 = vsel %vm3537, %v3535, %v3532
        %v3539 = vadd.f32 %v3473, 1.0
        %v3540 = vlog2.pop %v3539
        %v3541 = vmul.f32 %v3540, 0.6931472
        %v3542 = vmul.f32 -0.5, %v3473
        %v3543 = vadd.f32 %v3542, 1.0
        %v3544 = vmul.f32 %v3543, %v3473
        %v3545 = vand.u32 2147483647, %v3473
        %vm3546 = vcmp.lt.f32.partialorder %v3545, 0.0004427343
        %v3547 = vsel %vm3546, %v3544, %v3541
        %v3548 = vadd.f32 %v3475, 1.0
        %v3549 = vlog2.pop %v3548
        %v3550 = vmul.f32 %v3549, 0.6931472
        %v3551 = vmul.f32 -0.5, %v3475
        %v3552 = vadd.f32 %v3551, 1.0
        %v3553 = vmul.f32 %v3552, %v3475
        %v3554 = vand.u32 2147483647, %v3475
        %vm3555 = vcmp.lt.f32.partialorder %v3554, 0.0004427343
        %v3556 = vsel %vm3555, %v3553, %v3550
        %v3557 = vadd.f32 %v3477, 1.0
        %v3558 = vlog2.pop %v3557
        %v3559 = vmul.f32 %v3558, 0.6931472
        %v3560 = vmul.f32 -0.5, %v3477
        %v3561 = vadd.f32 %v3560, 1.0
        %v3562 = vmul.f32 %v3561, %v3477
        %v3563 = vand.u32 2147483647, %v3477
        %vm3564 = vcmp.lt.f32.partialorder %v3563, 0.0004427343
        %v3565 = vsel %vm3564, %v3562, %v3559
        %v3566 = vadd.f32 %v3479, 1.0
        %v3567 = vlog2.pop %v3566
        %v3568 = vmul.f32 %v3567, 0.6931472
        %v3569 = vmul.f32 -0.5, %v3479
        %v3570 = vadd.f32 %v3569, 1.0
        %v3571 = vmul.f32 %v3570, %v3479
        %v3572 = vand.u32 2147483647, %v3479
        %vm3573 = vcmp.lt.f32.partialorder %v3572, 0.0004427343
        %v3574 = vsel %vm3573, %v3571, %v3568
        %v3575 = vadd.f32 %v3481, 1.0
        %v3576 = vlog2.pop %v3575
        %v3577 = vmul.f32 %v3576, 0.6931472
        %v3578 = vmul.f32 -0.5, %v3481
        %v3579 = vadd.f32 %v3578, 1.0
        %v3580 = vmul.f32 %v3579, %v3481
        %v3581 = vand.u32 2147483647, %v3481
        %vm3582 = vcmp.lt.f32.partialorder %v3581, 0.0004427343
        %v3583 = vsel %vm3582, %v3580, %v3577
        %v3584 = vadd.f32 %v3483, 1.0
        %v3585 = vlog2.pop %v3584
        %v3586 = vmul.f32 %v3585, 0.6931472
        %v3587 = vmul.f32 -0.5, %v3483
        %v3588 = vadd.f32 %v3587, 1.0
        %v3589 = vmul.f32 %v3588, %v3483
        %v3590 = vand.u32 2147483647, %v3483
        %vm3591 = vcmp.lt.f32.partialorder %v3590, 0.0004427343
        %v3592 = vsel %vm3591, %v3589, %v3586
        %v3593 = vadd.f32 %v3485, 1.0
        %v3594 = vlog2.pop %v3593
        %v3595 = vmul.f32 %v3594, 0.6931472
        %v3596 = vmul.f32 -0.5, %v3485
        %v3597 = vadd.f32 %v3596, 1.0
        %v3598 = vmul.f32 %v3597, %v3485
        %v3599 = vand.u32 2147483647, %v3485
        %vm3600 = vcmp.lt.f32.partialorder %v3599, 0.0004427343
        %v3601 = vsel %vm3600, %v3598, %v3595
        %v3602 = vadd.f32 %v3487, 1.0
        %v3603 = vlog2.pop %v3602
        %v3604 = vmul.f32 %v3603, 0.6931472
        %v3605 = vmul.f32 -0.5, %v3487
        %v3606 = vadd.f32 %v3605, 1.0
        %v3607 = vmul.f32 %v3606, %v3487
        %v3608 = vand.u32 2147483647, %v3487
        %vm3609 = vcmp.lt.f32.partialorder %v3608, 0.0004427343
        %v3610 = vsel %vm3609, %v3607, %v3604
        %v3611 = vadd.f32 %v3489, 1.0
        %v3612 = vlog2.pop %v3611
        %v3613 = vmul.f32 %v3612, 0.6931472
        %v3614 = vmul.f32 -0.5, %v3489
        %v3615 = vadd.f32 %v3614, 1.0
        %v3616 = vmul.f32 %v3615, %v3489
        %v3617 = vand.u32 2147483647, %v3489
        %vm3618 = vcmp.lt.f32.partialorder %v3617, 0.0004427343
        %v3619 = vsel %vm3618, %v3616, %v3613
        %v3620 = vadd.f32 %v3491, 1.0
        %v3621 = vlog2.pop %v3620
        %v3622 = vmul.f32 %v3621, 0.6931472
        %v3623 = vmul.f32 -0.5, %v3491
        %v3624 = vadd.f32 %v3623, 1.0
        %v3625 = vmul.f32 %v3624, %v3491
        %v3626 = vand.u32 2147483647, %v3491
        %vm3627 = vcmp.lt.f32.partialorder %v3626, 0.0004427343
        %v3628 = vsel %vm3627, %v3625, %v3622
        %v3629 = vadd.f32 %v3493, 1.0
        %v3630 = vlog2.pop %v3629
        %v3631 = vmul.f32 %v3630, 0.6931472
        %v3632 = vmul.f32 -0.5, %v3493
        %v3633 = vadd.f32 %v3632, 1.0
        %v3634 = vmul.f32 %v3633, %v3493
        %v3635 = vand.u32 2147483647, %v3493
        %vm3636 = vcmp.lt.f32.partialorder %v3635, 0.0004427343
        %v3637 = vsel %vm3636, %v3634, %v3631
        %v3638 = vmax.f32 %v3368, 0.0
        %v3639 = vmax.f32 %v3371, 0.0
        %v3640 = vmax.f32 %v3376, 0.0
        %v3641 = vmax.f32 %v3379, 0.0
        %v3642 = vmax.f32 %v3384, 0.0
        %v3643 = vmax.f32 %v3387, 0.0
        %v3644 = vmax.f32 %v3392, 0.0
        %v3645 = vmax.f32 %v3395, 0.0
        %v3646 = vmax.f32 %v3400, 0.0
        %v3647 = vmax.f32 %v3403, 0.0
        %v3648 = vmax.f32 %v3408, 0.0
        %v3649 = vmax.f32 %v3411, 0.0
        %v3650 = vmax.f32 %v3416, 0.0
        %v3651 = vmax.f32 %v3419, 0.0
        %v3652 = vmax.f32 %v3424, 0.0
        %v3653 = vmax.f32 %v3427, 0.0
        %v3654 = vadd.f32 %v3638, %v3502
        %v3655 = vadd.f32 %v3639, %v3511
        %v3656 = vadd.f32 %v3640, %v3520
        %v3657 = vadd.f32 %v3641, %v3529
        %v3658 = vadd.f32 %v3642, %v3538
        %v3659 = vadd.f32 %v3643, %v3547
        %v3660 = vadd.f32 %v3644, %v3556
        %v3661 = vadd.f32 %v3645, %v3565
        %v3662 = vadd.f32 %v3646, %v3574
        %v3663 = vadd.f32 %v3647, %v3583
        %v3664 = vadd.f32 %v3648, %v3592
        %v3665 = vadd.f32 %v3649, %v3601
        %v3666 = vadd.f32 %v3650, %v3610
        %v3667 = vadd.f32 %v3651, %v3619
        %v3668 = vadd.f32 %v3652, %v3628
        %v3669 = vadd.f32 %v3653, %v3637
        %v3670 = vpack.c.bf16 %v3655, %v3654
        %v3671 = vpack.c.bf16 %v3657, %v3656
        %v3672 = vpack.c.bf16 %v3659, %v3658
        %v3673 = vpack.c.bf16 %v3661, %v3660
        %v3674 = vpack.c.bf16 %v3663, %v3662
        %v3675 = vpack.c.bf16 %v3665, %v3664
        %v3676 = vpack.c.bf16 %v3667, %v3666
        %v3677 = vpack.c.bf16 %v3669, %v3668
        %v3678 = vld [vmem:[%s6] sm:$0xf]
        %v3679 = vld [vmem:[%s6 + $0x4] sm:$0xf]
        %v3680 = vld [vmem:[%s6 + $0x8] sm:$0xf]
        %v3681 = vld [vmem:[%s6 + $0xc] sm:$0xf]
        %v3682 = vld [vmem:[%s6 + $0x10] sm:$0xf]
        %v3683 = vld [vmem:[%s6 + $0x14] sm:$0xf]
        %v3684 = vld [vmem:[%s6 + $0x18] sm:$0xf]
        %v3685 = vld [vmem:[%s6 + $0x1c] sm:$0xf]
        %v3686 = vld [vmem:[%s7] sm:$0x1]
        %v3688 = vlaneseq
        %v3689 = vshrl.u32 %v3688, 7
        %v3690 = vsub.s32 0, %v3689
        %v3691 = vrot.slane %v3686, %v3690
        %v3701 = vunpack.c.l.b16 %v3678
        %v3702 = vunpack.c.l.b16 %v3679
        %v3703 = vunpack.c.l.b16 %v3680
        %v3704 = vunpack.c.l.b16 %v3681
        %v3705 = vunpack.c.l.b16 %v3682
        %v3706 = vunpack.c.l.b16 %v3683
        %v3707 = vunpack.c.l.b16 %v3684
        %v3708 = vunpack.c.l.b16 %v3685
        %v3709 = vpack.c.b16 %v3702, %v3701
        %v3710 = vpack.c.b16 %v3704, %v3703
        %v3711 = vpack.c.b16 %v3706, %v3705
        %v3712 = vpack.c.b16 %v3708, %v3707
        %vm3717 = vcmask 523264
        %v3719 = vsel %vm3717, %v3670, 0
        %v3722 = vsel %vm3717, %v3671, 0
        %v3725 = vsel %vm3717, %v3672, 0
        %v3728 = vsel %vm3717, %v3673, 0
        %v3731 = vsel %vm3717, %v3674, 0
        %v3734 = vsel %vm3717, %v3675, 0
        %v3737 = vsel %vm3717, %v3676, 0
        %v3740 = vsel %vm3717, %v3677, 0
        %3742 = vmatprep.subr.bf16.mxu0 0
        %3743 = vmatpush1.bf16.msra.mxu0 0
        %3744 = vmatprep.subr.bf16.mxu0 0
        %3745 = vmatpush1.bf16.msra.mxu0 0
        %3746 = vmatprep.subr.bf16.mxu0 0
        %3747 = vmatpush1.bf16.msra.mxu0 0
        %3748 = vmatprep.subr.bf16.mxu0 0
        %3749 = vmatpush1.bf16.msra.mxu0 0
        %3750 = vmatprep.subr.bf16.mxu0 0
        %3751 = vmatpush1.bf16.msra.mxu0 %v3712
        %3752 = vmatprep.subr.bf16.mxu0 0
        %3753 = vmatpush1.bf16.msra.mxu0 %v3711
        %3754 = vmatprep.subr.bf16.mxu0 0
        %3755 = vmatpush1.bf16.msra.mxu0 %v3710
        %3756 = vmatprep.subr.bf16.mxu0 0
        %3757 = vmatpush1.bf16.msra.mxu0 %v3709
        %3758 = vmatprep.subr.bf16.mxu0 0
        %3759 = vmatpush2.bf16.msra.mxu0 0
        %3760 = vmatprep.subr.bf16.mxu0 0
        %3761 = vmatpush2.bf16.msra.mxu0 0
        %3762 = vmatprep.subr.bf16.mxu0 0
        %3763 = vmatpush2.bf16.msra.mxu0 0
        %3764 = vmatprep.subr.bf16.mxu0 0
        %3765 = vmatpush2.bf16.msra.mxu0 0
        %3766 = vmatprep.subr.bf16.mxu0 0
        %3767 = vmatpush2.bf16.msra.mxu0 0
        %3768 = vmatprep.subr.bf16.mxu0 0
        %3769 = vmatpush2.bf16.msra.mxu0 0
        %3770 = vmatprep.subr.bf16.mxu0 0
        %3771 = vmatpush2.bf16.msra.mxu0 0
        %3772 = vmatprep.subr.bf16.mxu0 0
        %3773 = vmatpush2.bf16.msra.mxu0 0
        %3774 = vmatprep.mubr.bf16.mxu0 0
        %3775 = vmatmul.mubr.bf16.gmra.mxu0 %v3719
        %v3776 = vpop.f32.mrf.mxu0
        %v3777 = vadd.f32 %v3691, %v3776
        %v3778 = vpop.f32.mrf.mxu0
        %v3779 = vpop.f32.mrf.mxu0
        %v3780 = vadd.f32 %v3691, %v3779
        %v3781 = vpop.f32.mrf.mxu0
        %3782 = vmatprep.mubr.bf16.mxu0 0
        %3783 = vmatmul.mubr.bf16.gmra.mxu0 %v3722
        %v3784 = vpop.f32.mrf.mxu0
        %v3785 = vadd.f32 %v3691, %v3784
        %v3786 = vpop.f32.mrf.mxu0
        %v3787 = vpop.f32.mrf.mxu0
        %v3788 = vadd.f32 %v3691, %v3787
        %v3789 = vpop.f32.mrf.mxu0
        %3790 = vmatprep.mubr.bf16.mxu0 0
        %3791 = vmatmul.mubr.bf16.gmra.mxu0 %v3725
        %v3792 = vpop.f32.mrf.mxu0
        %v3793 = vadd.f32 %v3691, %v3792
        %v3794 = vpop.f32.mrf.mxu0
        %v3795 = vpop.f32.mrf.mxu0
        %v3796 = vadd.f32 %v3691, %v3795
        %v3797 = vpop.f32.mrf.mxu0
        %3798 = vmatprep.mubr.bf16.mxu0 0
        %3799 = vmatmul.mubr.bf16.gmra.mxu0 %v3728
        %v3800 = vpop.f32.mrf.mxu0
        %v3801 = vadd.f32 %v3691, %v3800
        %v3802 = vpop.f32.mrf.mxu0
        %v3803 = vpop.f32.mrf.mxu0
        %v3804 = vadd.f32 %v3691, %v3803
        %v3805 = vpop.f32.mrf.mxu0
        %3806 = vmatprep.mubr.bf16.mxu0 0
        %3807 = vmatmul.mubr.bf16.gmra.mxu0 %v3731
        %v3808 = vpop.f32.mrf.mxu0
        %v3809 = vadd.f32 %v3691, %v3808
        %v3810 = vpop.f32.mrf.mxu0
        %v3811 = vpop.f32.mrf.mxu0
        %v3812 = vadd.f32 %v3691, %v3811
        %v3813 = vpop.f32.mrf.mxu0
        %3814 = vmatprep.mubr.bf16.mxu0 0
        %3815 = vmatmul.mubr.bf16.gmra.mxu0 %v3734
        %v3816 = vpop.f32.mrf.mxu0
        %v3817 = vadd.f32 %v3691, %v3816
        %v3818 = vpop.f32.mrf.mxu0
        %v3819 = vpop.f32.mrf.mxu0
        %v3820 = vadd.f32 %v3691, %v3819
        %v3821 = vpop.f32.mrf.mxu0
        %3822 = vmatprep.mubr.bf16.mxu0 0
        %3823 = vmatmul.mubr.bf16.gmra.mxu0 %v3737
        %v3824 = vpop.f32.mrf.mxu0
        %v3825 = vadd.f32 %v3691, %v3824
        %v3826 = vpop.f32.mrf.mxu0
        %v3827 = vpop.f32.mrf.mxu0
        %v3828 = vadd.f32 %v3691, %v3827
        %v3829 = vpop.f32.mrf.mxu0
        %3830 = vmatprep.mubr.bf16.mxu0 0
        %3831 = vmatmul.mubr.bf16.gmra.mxu0 %v3740
        %v3832 = vpop.f32.mrf.mxu0
        %v3833 = vadd.f32 %v3691, %v3832
        %v3834 = vpop.f32.mrf.mxu0
        %v3835 = vpop.f32.mrf.mxu0
        %v3836 = vadd.f32 %v3691, %v3835
        %v3837 = vpop.f32.mrf.mxu0
        %3838 = vdwg.mxu0
        %3839 = vst [vmem:[%s299] sm:$0xff] %v3777
        %3840 = vst [vmem:[%s299 + $0x8] sm:$0xff] %v3780
        %3841 = vst [vmem:[%s299 + $0x10] sm:$0xff] %v3785
        %3842 = vst [vmem:[%s299 + $0x18] sm:$0xff] %v3788
        %3843 = vst [vmem:[%s299 + $0x20] sm:$0xff] %v3793
        %3844 = vst [vmem:[%s299 + $0x28] sm:$0xff] %v3796
        %3845 = vst [vmem:[%s299 + $0x30] sm:$0xff] %v3801
        %3846 = vst [vmem:[%s299 + $0x38] sm:$0xff] %v3804
        %3847 = vst [vmem:[%s299 + $0x40] sm:$0xff] %v3809
        %3848 = vst [vmem:[%s299 + $0x48] sm:$0xff] %v3812
        %3849 = vst [vmem:[%s299 + $0x50] sm:$0xff] %v3817
        %3850 = vst [vmem:[%s299 + $0x58] sm:$0xff] %v3820
        %3851 = vst [vmem:[%s299 + $0x60] sm:$0xff] %v3825
        %3852 = vst [vmem:[%s299 + $0x68] sm:$0xff] %v3828
        %3853 = vst [vmem:[%s299 + $0x70] sm:$0xff] %v3833
        %3854 = vst [vmem:[%s299 + $0x78] sm:$0xff] %v3836
        %s3855 = sand.u32 %s203, 1
        %s3856 = scalar_lea.sflag [#allocation3], %s3855
        %s3857 = sand.u32 %s203, 1
        %s3858 = smul.addr %s3857, 128
        %s3859 = scalar_lea.vmem [#allocation2], %s3858
        // Predicated region
        $region53: #{tpu_custom_call.1} parent=51 // pred_check
          %p3860 = pneg %p213
        $region54: #{tpu_custom_call.1} parent=51 // pred_check_branch
          %3862 = sbr.rel (%p3860) target = $region56
        $region55: #{tpu_custom_call.1} parent=51 // pred_region
          %s3863 = smul.u32 16, %s22
          %s3865 = ssub.s32 2048, 2048
          %3866 = vsyncadd %s3856, %s3865
          %s3867 = smul.addr %s3863, 128
          %s3868 = scalar_lea.hbm %s8, %s3867
          %s3869 = sshll.u32 %s3859, 4
          %s3870 = int_to_ptr.vmem [resolvable:$true] %s3869
          %3875 = dma.vmem_to_hbm [thread:$0]  %s3870, 2048, %s3868, %s3856, 128, 128, 8
        $region56: #{tpu_custom_call.1} parent=51 // pred_fallthru
          _
      $region52: #{tpu_custom_call.1} parent=5 // pred_fallthru
        _
      %p3876 = scmp.le.s32.totalorder 2, %s17
      // Predicated region
      $region57: #{tpu_custom_call.1} parent=5 // pred_check
        %p3877 = pneg %p3876
      $region58: #{tpu_custom_call.1} parent=5 // pred_check_branch
        %3879 = sbr.rel (%p3877) target = $region60
      $region59: #{tpu_custom_call.1} parent=5 // pred_region
        %s3880 = ssub.s32 %s17, 2
        // Predicated region
        $region61: #{tpu_custom_call.1} parent=59 // pred_check
          %p3881 = pneg %p219
        $region62: #{tpu_custom_call.1} parent=59 // pred_check_branch
          %3883 = sbr.rel (%p3881) target = $region64
        $region63: #{tpu_custom_call.1} parent=59 // pred_region
          %s3884 = sand.u32 %s204, 1
          %s3885 = scalar_lea.sflag [#allocation3], %s3884
          %s3886 = sand.u32 %s204, 1
          %s3887 = smul.addr %s3886, 128
          %s3888 = scalar_lea.vmem [#allocation2], %s3887
          %3889 = dma.done %s3885, 2048
        $region64: #{tpu_custom_call.1} parent=59 // pred_fallthru
          _
      $region60: #{tpu_custom_call.1} parent=5 // pred_fallthru
        _
    $region6: #{tpu_custom_call.1} parent=1 // loop_footer
      %s21 = sadd.s32 1, %s17
    $region7: #{tpu_custom_call.1} parent=1 // loop_footer_branch
      %16 = sbr.rel target = $region3
    $region8: #{tpu_custom_call.1} parent=1 // loop_exit
      _
    %3890 = vsyncpa [#allocation3], 1
    %s3891 = scalar_lea.sflag [#allocation3], 1
    %3892 = vsyncpa %s3891, 1

</llo_original>
